<compile_context>
chip_gen: v6e
topology: v6e:2x2x1
jax: 0.10.0
libtpu: 0.0.40
codegen_flags: <defaults>
</compile_context>

<pallas_src>
import functools

import jax
import jax.numpy as jnp
from jax.experimental import pallas as pl
from jax.experimental.pallas import tpu as pltpu

LN_EPS = 1e-5  # nn.LayerNorm default


def _layernorm(x, gamma, beta):
    mu = jnp.mean(x, axis=-1, keepdims=True)
    var = jnp.mean((x - mu) ** 2, axis=-1, keepdims=True)
    return (x - mu) * jax.lax.rsqrt(var + LN_EPS) * gamma + beta


# ------------------------------------------------------------------ fused kernel


def transformer_kernel(x_ref,
                       ln1_g_ref, ln1_b_ref, wqkv_ref, wout_ref, bout_ref,
                       ln2_g_ref, ln2_b_ref, w1_ref, b1_ref, w2_ref, b2_ref,
                       o_ref,
                       *, depth, heads, dim_head, n_tokens, patches_per_block,
                       d_model, matmul_dtype):
    """Full transformer stack for one block of `patches_per_block` patches.

    x_ref block: (patches_per_block * n_tokens, d_model).  Attention is computed
    per-patch via batched einsums; token-wise matmuls run over all rows at once.
    """
    scale = dim_head ** -0.5
    inner = heads * dim_head
    rows = patches_per_block * n_tokens

    # Residual stream lives in registers/VMEM for the whole depth loop (f32).
    h = x_ref[...].astype(jnp.float32)                                  # (rows, D)

    for layer in range(depth):                                          # static unroll (depth small)
        # ------------------- PreNorm + Attention + residual -------------------
        y = _layernorm(h, ln1_g_ref[layer], ln1_b_ref[layer])           # (rows, D)
        qkv = jnp.dot(y.astype(matmul_dtype),
                      wqkv_ref[layer].astype(matmul_dtype),
                      preferred_element_type=jnp.float32)               # (rows, 3*inner)

        w_out = wout_ref[layer]                                         # (inner, D)
        attn_out = jnp.zeros((rows, d_model), jnp.float32)
        for hh in range(heads):                                         # static; no lane concat
            lo = hh * dim_head
            q = qkv[:, lo:lo + dim_head].reshape(patches_per_block, n_tokens, dim_head)
            k = qkv[:, inner + lo:inner + lo + dim_head].reshape(
                patches_per_block, n_tokens, dim_head)
            v = qkv[:, 2 * inner + lo:2 * inner + lo + dim_head].reshape(
                patches_per_block, n_tokens, dim_head)

            dots = jnp.einsum('bnd,bmd->bnm',
                              q.astype(matmul_dtype), k.astype(matmul_dtype),
                              preferred_element_type=jnp.float32) * scale
            dots = dots - jnp.max(dots, axis=-1, keepdims=True)
            e = jnp.exp(dots)
            p = e * pl.reciprocal(jnp.sum(e, axis=-1, keepdims=True), approx=True)
            oh = jnp.einsum('bnm,bmd->bnd',
                            p.astype(matmul_dtype), v.astype(matmul_dtype),
                            preferred_element_type=jnp.float32)          # (bpb, N, dh)
            oh = oh.reshape(rows, dim_head)
            # Fold the output projection per head into one accumulator.
            attn_out = attn_out + jnp.dot(
                oh.astype(matmul_dtype),
                w_out[lo:lo + dim_head, :].astype(matmul_dtype),
                preferred_element_type=jnp.float32)

        h = attn_out + bout_ref[layer] + h                               # residual

        # ------------------- PreNorm + FeedForward + residual -------------------
        y2 = _layernorm(h, ln2_g_ref[layer], ln2_b_ref[layer])
        f = jnp.dot(y2.astype(matmul_dtype), w1_ref[layer].astype(matmul_dtype),
                    preferred_element_type=jnp.float32) + b1_ref[layer]
        f = f * jax.nn.sigmoid(f)                                        # SiLU
        h = jnp.dot(f.astype(matmul_dtype), w2_ref[layer].astype(matmul_dtype),
                    preferred_element_type=jnp.float32) + b2_ref[layer] + h

    o_ref[...] = h.astype(o_ref.dtype)


# ------------------------------------------------------------------------ wrapper


def _full_spec(shape):
    # Whole array, resident (constant block index) for every grid step.
    return pl.BlockSpec(shape, lambda g: (0,) * len(shape))


def transformer_forward(x, params, *, heads, dim_head, matmul_dtype=jnp.float32):
    B, P, N, D = x.shape
    depth = params['w_qkv'].shape[0]
    inner = heads * dim_head
    mlp_dim = params['w1'].shape[-1]
    BP = B * P

    # ---- pick patches per grid block: big row blocks for MXU occupancy, but keep
    # ---- >= 2 grid steps (when possible) so v7x's two TCs can both be used.
    target_rows = 512
    ppb = max(1, min(BP, target_rows // max(N, 1)))
    if BP >= 2:
        ppb = min(ppb, BP // 2)
    while BP % ppb:
        ppb -= 1
    grid = (BP // ppb,)
    rows_blk = ppb * N

    x2 = x.reshape(BP * N, D)

    kernel = functools.partial(
        transformer_kernel, depth=depth, heads=heads, dim_head=dim_head,
        n_tokens=N, patches_per_block=ppb, d_model=D, matmul_dtype=matmul_dtype)

    out = pl.pallas_call(
        kernel,
        out_shape=jax.ShapeDtypeStruct((BP * N, D), x.dtype),
        grid=grid,
        in_specs=[
            pl.BlockSpec((rows_blk, D), lambda g: (g, 0)),   # activations (row block)
            _full_spec((depth, 1, D)),                       # ln1 gamma
            _full_spec((depth, 1, D)),                       # ln1 beta
            _full_spec((depth, D, 3 * inner)),               # W_qkv (no bias, matches PyTorch)
            _full_spec((depth, inner, D)),                   # W_out
            _full_spec((depth, 1, D)),                       # b_out
            _full_spec((depth, 1, D)),                       # ln2 gamma
            _full_spec((depth, 1, D)),                       # ln2 beta
            _full_spec((depth, D, mlp_dim)),                 # W1
            _full_spec((depth, 1, mlp_dim)),                 # b1
            _full_spec((depth, mlp_dim, D)),                 # W2
            _full_spec((depth, 1, D)),                       # b2
        ],
        out_specs=pl.BlockSpec((rows_blk, D), lambda g: (g, 0)),
        compiler_params=pltpu.CompilerParams(
            dimension_semantics=("parallel",),
            vmem_limit_bytes=32 * 1024 * 1024),
    )(x2, params['ln1_g'], params['ln1_b'], params['w_qkv'], params['w_out'],
      params['b_out'], params['ln2_g'], params['ln2_b'], params['w1'],
      params['b1'], params['w2'], params['b2'])

    return out.reshape(B, P, N, D)


# ---------------------------------------------------------------- reference (plain JAX)


def transformer_reference(x, params, *, heads, dim_head):
    B, P, N, D = x.shape
    depth = params['w_qkv'].shape[0]
    inner = heads * dim_head
    h = x
    for l in range(depth):
        y = _layernorm(h, params['ln1_g'][l, 0], params['ln1_b'][l, 0])
        qkv = jnp.einsum('bpnd,de->bpne', y, params['w_qkv'][l])
        q, k, v = qkv[..., :inner], qkv[..., inner:2 * inner], qkv[..., 2 * inner:]

        def split(t):
            return t.reshape(B, P, N, heads, dim_head).transpose(0, 1, 3, 2, 4)

        q, k, v = split(q), split(k), split(v)
        dots = jnp.einsum('bphnd,bphmd->bphnm', q, k) * (dim_head ** -0.5)
        attn = jax.nn.softmax(dots, axis=-1)
        o = jnp.einsum('bphnm,bphmd->bphnd', attn, v)
        o = o.transpose(0, 1, 3, 2, 4).reshape(B, P, N, inner)
        h = jnp.einsum('bpni,id->bpnd', o, params['w_out'][l]) + params['b_out'][l, 0] + h

        y2 = _layernorm(h, params['ln2_g'][l, 0], params['ln2_b'][l, 0])
        f = jnp.einsum('bpnd,dm->bpnm', y2, params['w1'][l]) + params['b1'][l, 0]
        f = f * jax.nn.sigmoid(f)
        h = jnp.einsum('bpnm,md->bpnd', f, params['w2'][l]) + params['b2'][l, 0] + h
    return h


# ------------------------------------------------------------------------------- main


def init_params(key, *, dim, depth, heads, dim_head, mlp_dim):
    inner = heads * dim_head
    ks = jax.random.split(key, 4)

    def rnd(k, shape):
        return jax.random.normal(k, (depth,) + shape, jnp.float32) * 0.05

    return dict(
        ln1_g=jnp.ones((depth, 1, dim), jnp.float32),
        ln1_b=jnp.zeros((depth, 1, dim), jnp.float32),
        w_qkv=rnd(ks[0], (dim, 3 * inner)),
        w_out=rnd(ks[1], (inner, dim)),
        b_out=jnp.zeros((depth, 1, dim), jnp.float32),
        ln2_g=jnp.ones((depth, 1, dim), jnp.float32),
        ln2_b=jnp.zeros((depth, 1, dim), jnp.float32),
        w1=rnd(ks[2], (dim, mlp_dim)),
        b1=jnp.zeros((depth, 1, mlp_dim), jnp.float32),
        w2=rnd(ks[3], (mlp_dim, dim)),
        b2=jnp.zeros((depth, 1, dim), jnp.float32),
    )


if __name__ == "__main__":
    # Transformer(dim=32, depth=2, heads=2, dim_head=16, mlp_dim=64), x: [B=2, P=4, N=8, D=32]
    dim, depth, heads, dim_head, mlp_dim = 32, 2, 2, 16, 64
    B, P, N = 2, 4, 8

    key = jax.random.PRNGKey(0)
    kx, kp = jax.random.split(key)
    x = jax.random.normal(kx, (B, P, N, dim), jnp.float32)
    params = init_params(kp, dim=dim, depth=depth, heads=heads,
                         dim_head=dim_head, mlp_dim=mlp_dim)

    # On v6e/v7x with realistically sized configs, pass matmul_dtype=jnp.bfloat16
    # (f32 accumulation is kept via preferred_element_type).  Kept f32 here to stay
    # comfortably inside the 1e-2 reference tolerance at this tiny config.
    out = transformer_forward(x, params, heads=heads, dim_head=dim_head,
                              matmul_dtype=jnp.float32)
    out = jax.block_until_ready(out)

    ref = transformer_reference(x, params, heads=heads, dim_head=dim_head)
    assert out.shape == (B, P, N, dim)
    assert bool(jnp.all(jnp.isfinite(out)))
    # loose tolerance: TPU MXU f32 matmul + approx reciprocal vs XLA einsum
    assert bool(jnp.allclose(out, ref, rtol=1e-2, atol=1e-2)), "mismatch vs JAX reference"

    print("KERNEL_OK")
</pallas_src>

<mosaic_0001>
module attributes {stable_mosaic.version = 11 : i64} {
  func.func @transformer_kernel(%arg0: i32, %arg1: memref<32x32xf32, #tpu.memory_space<vmem>>, %arg2: memref<2x1x32xf32, #tpu.memory_space<vmem>>, %arg3: memref<2x1x32xf32, #tpu.memory_space<vmem>>, %arg4: memref<2x32x96xf32, #tpu.memory_space<vmem>>, %arg5: memref<2x32x32xf32, #tpu.memory_space<vmem>>, %arg6: memref<2x1x32xf32, #tpu.memory_space<vmem>>, %arg7: memref<2x1x32xf32, #tpu.memory_space<vmem>>, %arg8: memref<2x1x32xf32, #tpu.memory_space<vmem>>, %arg9: memref<2x32x64xf32, #tpu.memory_space<vmem>>, %arg10: memref<2x1x64xf32, #tpu.memory_space<vmem>>, %arg11: memref<2x64x32xf32, #tpu.memory_space<vmem>>, %arg12: memref<2x1x32xf32, #tpu.memory_space<vmem>>, %arg13: memref<32x32xf32, #tpu.memory_space<vmem>>) attributes {dimension_semantics = [#tpu.dimension_semantics<parallel>], iteration_bounds = array<i64: 2>, scalar_prefetch = 0 : i64, scratch_operands = 0 : i64, tpu.core_type = #tpu.core_type<tc>, window_params = [{transform_indices = @transform_0, window_bounds = array<i64: 32, 32>}, {pipeline_mode = #tpu.pipeline_mode<synchronous>, transform_indices = @transform_1, window_bounds = array<i64: 2, 1, 32>}, {pipeline_mode = #tpu.pipeline_mode<synchronous>, transform_indices = @transform_2, window_bounds = array<i64: 2, 1, 32>}, {pipeline_mode = #tpu.pipeline_mode<synchronous>, transform_indices = @transform_3, window_bounds = array<i64: 2, 32, 96>}, {pipeline_mode = #tpu.pipeline_mode<synchronous>, transform_indices = @transform_4, window_bounds = array<i64: 2, 32, 32>}, {pipeline_mode = #tpu.pipeline_mode<synchronous>, transform_indices = @transform_5, window_bounds = array<i64: 2, 1, 32>}, {pipeline_mode = #tpu.pipeline_mode<synchronous>, transform_indices = @transform_6, window_bounds = array<i64: 2, 1, 32>}, {pipeline_mode = #tpu.pipeline_mode<synchronous>, transform_indices = @transform_7, window_bounds = array<i64: 2, 1, 32>}, {pipeline_mode = #tpu.pipeline_mode<synchronous>, transform_indices = @transform_8, window_bounds = array<i64: 2, 32, 64>}, {pipeline_mode = #tpu.pipeline_mode<synchronous>, transform_indices = @transform_9, window_bounds = array<i64: 2, 1, 64>}, {pipeline_mode = #tpu.pipeline_mode<synchronous>, transform_indices = @transform_10, window_bounds = array<i64: 2, 64, 32>}, {pipeline_mode = #tpu.pipeline_mode<synchronous>, transform_indices = @transform_11, window_bounds = array<i64: 2, 1, 32>}, {transform_indices = @transform_12, window_bounds = array<i64: 32, 32>}]} {
    %c0 = arith.constant 0 : index
    %c0_0 = arith.constant 0 : index
    %0 = vector.load %arg1[%c0, %c0_0] : memref<32x32xf32, #tpu.memory_space<vmem>>, vector<32x32xf32>
    %c0_1 = arith.constant 0 : index
    %c0_2 = arith.constant 0 : index
    %c0_3 = arith.constant 0 : index
    %1 = vector.load %arg2[%c0_1, %c0_2, %c0_3] : memref<2x1x32xf32, #tpu.memory_space<vmem>>, vector<1x1x32xf32>
    %2 = vector.shape_cast %1 : vector<1x1x32xf32> to vector<1x32xf32>
    %c0_4 = arith.constant 0 : index
    %c0_5 = arith.constant 0 : index
    %c0_6 = arith.constant 0 : index
    %3 = vector.load %arg3[%c0_4, %c0_5, %c0_6] : memref<2x1x32xf32, #tpu.memory_space<vmem>>, vector<1x1x32xf32>
    %4 = vector.shape_cast %3 : vector<1x1x32xf32> to vector<1x32xf32>
    %cst = arith.constant dense<0.000000e+00> : vector<32xf32>
    %5 = vector.multi_reduction <add>, %0, %cst [1] : vector<32x32xf32> to vector<32xf32>
    %6 = vector.shape_cast %5 : vector<32xf32> to vector<32x1xf32>
    %cst_7 = arith.constant 3.200000e+01 : f32
    %7 = vector.broadcast %cst_7 : f32 to vector<32x1xf32>
    %8 = arith.divf %6, %7 : vector<32x1xf32>
    %9 = vector.broadcast %8 : vector<32x1xf32> to vector<32x32xf32>
    %10 = arith.subf %0, %9 : vector<32x32xf32>
    %11 = arith.mulf %10, %10 : vector<32x32xf32>
    %cst_8 = arith.constant dense<0.000000e+00> : vector<32xf32>
    %12 = vector.multi_reduction <add>, %11, %cst_8 [1] : vector<32x32xf32> to vector<32xf32>
    %13 = vector.shape_cast %12 : vector<32xf32> to vector<32x1xf32>
    %cst_9 = arith.constant 3.200000e+01 : f32
    %14 = vector.broadcast %cst_9 : f32 to vector<32x1xf32>
    %15 = arith.divf %13, %14 : vector<32x1xf32>
    %16 = vector.broadcast %8 : vector<32x1xf32> to vector<32x32xf32>
    %17 = arith.subf %0, %16 : vector<32x32xf32>
    %cst_10 = arith.constant 9.99999974E-6 : f32
    %18 = vector.broadcast %cst_10 : f32 to vector<32x1xf32>
    %19 = arith.addf %15, %18 : vector<32x1xf32>
    %20 = math.rsqrt %19 : vector<32x1xf32>
    %21 = vector.broadcast %20 : vector<32x1xf32> to vector<32x32xf32>
    %22 = arith.mulf %17, %21 : vector<32x32xf32>
    %23 = vector.broadcast %2 : vector<1x32xf32> to vector<32x32xf32>
    %24 = arith.mulf %22, %23 : vector<32x32xf32>
    %25 = vector.broadcast %4 : vector<1x32xf32> to vector<32x32xf32>
    %26 = arith.addf %24, %25 : vector<32x32xf32>
    %c0_11 = arith.constant 0 : index
    %c0_12 = arith.constant 0 : index
    %c0_13 = arith.constant 0 : index
    %27 = vector.load %arg4[%c0_11, %c0_12, %c0_13] : memref<2x32x96xf32, #tpu.memory_space<vmem>>, vector<1x32x96xf32>
    %28 = vector.shape_cast %27 : vector<1x32x96xf32> to vector<32x96xf32>
    %cst_14 = arith.constant dense<0.000000e+00> : vector<32x96xf32>
    %29 = tpu.matmul %26, %28, %cst_14 {dimension_numbers = #tpu.dot_dimension_numbers<[1], [0], [0], [1], [0, 0, 1, 1], [], []>} : vector<32x32xf32>, vector<32x96xf32>, vector<32x96xf32> -> vector<32x96xf32>
    %c0_15 = arith.constant 0 : index
    %c0_16 = arith.constant 0 : index
    %c0_17 = arith.constant 0 : index
    %30 = vector.load %arg5[%c0_15, %c0_16, %c0_17] : memref<2x32x32xf32, #tpu.memory_space<vmem>>, vector<1x32x32xf32>
    %31 = vector.shape_cast %30 : vector<1x32x32xf32> to vector<32x32xf32>
    %cst_18 = arith.constant 0.000000e+00 : f32
    %32 = vector.broadcast %cst_18 : f32 to vector<32x32xf32>
    %33 = vector.extract_strided_slice %29 {offsets = [0, 0], sizes = [32, 16], strides = [1, 1]} : vector<32x96xf32> to vector<32x16xf32>
    %34 = vector.shape_cast %33 : vector<32x16xf32> to vector<4x8x16xf32>
    %35 = vector.extract_strided_slice %29 {offsets = [0, 32], sizes = [32, 16], strides = [1, 1]} : vector<32x96xf32> to vector<32x16xf32>
    %36 = vector.shape_cast %35 : vector<32x16xf32> to vector<4x8x16xf32>
    %37 = vector.extract_strided_slice %29 {offsets = [0, 64], sizes = [32, 16], strides = [1, 1]} : vector<32x96xf32> to vector<32x16xf32>
    %38 = vector.shape_cast %37 : vector<32x16xf32> to vector<4x8x16xf32>
    "tpu.trace_start"() <{level = 10 : i32, message = "bnd,bmd->bnm"}> : () -> ()
    %cst_19 = arith.constant dense<0.000000e+00> : vector<4x8x8xf32>
    %39 = tpu.matmul %34, %36, %cst_19 {dimension_numbers = #tpu.dot_dimension_numbers<[2], [2], [1], [1], [0, 0, 0, 1, 1, 1], [0], [0]>} : vector<4x8x16xf32>, vector<4x8x16xf32>, vector<4x8x8xf32> -> vector<4x8x8xf32>
    "tpu.trace_stop"() : () -> ()
    %cst_20 = arith.constant 2.500000e-01 : f32
    %40 = vector.broadcast %cst_20 : f32 to vector<4x8x8xf32>
    %41 = arith.mulf %39, %40 : vector<4x8x8xf32>
    %cst_21 = arith.constant dense<0xFF800000> : vector<4x8xf32>
    %42 = vector.multi_reduction <maximumf>, %41, %cst_21 [2] : vector<4x8x8xf32> to vector<4x8xf32>
    %43 = vector.shape_cast %42 : vector<4x8xf32> to vector<4x8x1xf32>
    %44 = vector.broadcast %43 : vector<4x8x1xf32> to vector<4x8x8xf32>
    %45 = arith.subf %41, %44 : vector<4x8x8xf32>
    %46 = math.exp %45 : vector<4x8x8xf32>
    %cst_22 = arith.constant dense<0.000000e+00> : vector<4x8xf32>
    %47 = vector.multi_reduction <add>, %46, %cst_22 [2] : vector<4x8x8xf32> to vector<4x8xf32>
    %48 = vector.shape_cast %47 : vector<4x8xf32> to vector<4x8x1xf32>
    %49 = tpu.reciprocal %48 {approx = true} : vector<4x8x1xf32> -> vector<4x8x1xf32>
    %50 = vector.broadcast %49 : vector<4x8x1xf32> to vector<4x8x8xf32>
    %51 = arith.mulf %46, %50 : vector<4x8x8xf32>
    "tpu.trace_start"() <{level = 10 : i32, message = "bnm,bmd->bnd"}> : () -> ()
    %cst_23 = arith.constant dense<0.000000e+00> : vector<4x8x16xf32>
    %52 = tpu.matmul %51, %38, %cst_23 {dimension_numbers = #tpu.dot_dimension_numbers<[2], [1], [1], [2], [0, 0, 0, 1, 1, 2], [0], [0]>} : vector<4x8x8xf32>, vector<4x8x16xf32>, vector<4x8x16xf32> -> vector<4x8x16xf32>
    "tpu.trace_stop"() : () -> ()
    %53 = vector.shape_cast %52 : vector<4x8x16xf32> to vector<32x16xf32>
    %54 = vector.extract_strided_slice %31 {offsets = [0, 0], sizes = [16, 32], strides = [1, 1]} : vector<32x32xf32> to vector<16x32xf32>
    %cst_24 = arith.constant dense<0.000000e+00> : vector<32x32xf32>
    %55 = tpu.matmul %53, %54, %cst_24 {dimension_numbers = #tpu.dot_dimension_numbers<[1], [0], [0], [1], [0, 0, 1, 1], [], []>} : vector<32x16xf32>, vector<16x32xf32>, vector<32x32xf32> -> vector<32x32xf32>
    %56 = arith.addf %32, %55 : vector<32x32xf32>
    %57 = vector.extract_strided_slice %29 {offsets = [0, 16], sizes = [32, 16], strides = [1, 1]} : vector<32x96xf32> to vector<32x16xf32>
    %58 = vector.shape_cast %57 : vector<32x16xf32> to vector<4x8x16xf32>
    %59 = vector.extract_strided_slice %29 {offsets = [0, 48], sizes = [32, 16], strides = [1, 1]} : vector<32x96xf32> to vector<32x16xf32>
    %60 = vector.shape_cast %59 : vector<32x16xf32> to vector<4x8x16xf32>
    %61 = vector.extract_strided_slice %29 {offsets = [0, 80], sizes = [32, 16], strides = [1, 1]} : vector<32x96xf32> to vector<32x16xf32>
    %62 = vector.shape_cast %61 : vector<32x16xf32> to vector<4x8x16xf32>
    "tpu.trace_start"() <{level = 10 : i32, message = "bnd,bmd->bnm"}> : () -> ()
    %cst_25 = arith.constant dense<0.000000e+00> : vector<4x8x8xf32>
    %63 = tpu.matmul %58, %60, %cst_25 {dimension_numbers = #tpu.dot_dimension_numbers<[2], [2], [1], [1], [0, 0, 0, 1, 1, 1], [0], [0]>} : vector<4x8x16xf32>, vector<4x8x16xf32>, vector<4x8x8xf32> -> vector<4x8x8xf32>
    "tpu.trace_stop"() : () -> ()
    %cst_26 = arith.constant 2.500000e-01 : f32
    %64 = vector.broadcast %cst_26 : f32 to vector<4x8x8xf32>
    %65 = arith.mulf %63, %64 : vector<4x8x8xf32>
    %cst_27 = arith.constant dense<0xFF800000> : vector<4x8xf32>
    %66 = vector.multi_reduction <maximumf>, %65, %cst_27 [2] : vector<4x8x8xf32> to vector<4x8xf32>
    %67 = vector.shape_cast %66 : vector<4x8xf32> to vector<4x8x1xf32>
    %68 = vector.broadcast %67 : vector<4x8x1xf32> to vector<4x8x8xf32>
    %69 = arith.subf %65, %68 : vector<4x8x8xf32>
    %70 = math.exp %69 : vector<4x8x8xf32>
    %cst_28 = arith.constant dense<0.000000e+00> : vector<4x8xf32>
    %71 = vector.multi_reduction <add>, %70, %cst_28 [2] : vector<4x8x8xf32> to vector<4x8xf32>
    %72 = vector.shape_cast %71 : vector<4x8xf32> to vector<4x8x1xf32>
    %73 = tpu.reciprocal %72 {approx = true} : vector<4x8x1xf32> -> vector<4x8x1xf32>
    %74 = vector.broadcast %73 : vector<4x8x1xf32> to vector<4x8x8xf32>
    %75 = arith.mulf %70, %74 : vector<4x8x8xf32>
    "tpu.trace_start"() <{level = 10 : i32, message = "bnm,bmd->bnd"}> : () -> ()
    %cst_29 = arith.constant dense<0.000000e+00> : vector<4x8x16xf32>
    %76 = tpu.matmul %75, %62, %cst_29 {dimension_numbers = #tpu.dot_dimension_numbers<[2], [1], [1], [2], [0, 0, 0, 1, 1, 2], [0], [0]>} : vector<4x8x8xf32>, vector<4x8x16xf32>, vector<4x8x16xf32> -> vector<4x8x16xf32>
    "tpu.trace_stop"() : () -> ()
    %77 = vector.shape_cast %76 : vector<4x8x16xf32> to vector<32x16xf32>
    %78 = vector.extract_strided_slice %31 {offsets = [16, 0], sizes = [16, 32], strides = [1, 1]} : vector<32x32xf32> to vector<16x32xf32>
    %cst_30 = arith.constant dense<0.000000e+00> : vector<32x32xf32>
    %79 = tpu.matmul %77, %78, %cst_30 {dimension_numbers = #tpu.dot_dimension_numbers<[1], [0], [0], [1], [0, 0, 1, 1], [], []>} : vector<32x16xf32>, vector<16x32xf32>, vector<32x32xf32> -> vector<32x32xf32>
    %80 = arith.addf %56, %79 : vector<32x32xf32>
    %c0_31 = arith.constant 0 : index
    %c0_32 = arith.constant 0 : index
    %c0_33 = arith.constant 0 : index
    %81 = vector.load %arg6[%c0_31, %c0_32, %c0_33] : memref<2x1x32xf32, #tpu.memory_space<vmem>>, vector<1x1x32xf32>
    %82 = vector.shape_cast %81 : vector<1x1x32xf32> to vector<1x32xf32>
    %83 = vector.broadcast %82 : vector<1x32xf32> to vector<32x32xf32>
    %84 = arith.addf %80, %83 : vector<32x32xf32>
    %85 = arith.addf %84, %0 : vector<32x32xf32>
    %c0_34 = arith.constant 0 : index
    %c0_35 = arith.constant 0 : index
    %c0_36 = arith.constant 0 : index
    %86 = vector.load %arg7[%c0_34, %c0_35, %c0_36] : memref<2x1x32xf32, #tpu.memory_space<vmem>>, vector<1x1x32xf32>
    %87 = vector.shape_cast %86 : vector<1x1x32xf32> to vector<1x32xf32>
    %c0_37 = arith.constant 0 : index
    %c0_38 = arith.constant 0 : index
    %c0_39 = arith.constant 0 : index
    %88 = vector.load %arg8[%c0_37, %c0_38, %c0_39] : memref<2x1x32xf32, #tpu.memory_space<vmem>>, vector<1x1x32xf32>
    %89 = vector.shape_cast %88 : vector<1x1x32xf32> to vector<1x32xf32>
    %cst_40 = arith.constant dense<0.000000e+00> : vector<32xf32>
    %90 = vector.multi_reduction <add>, %85, %cst_40 [1] : vector<32x32xf32> to vector<32xf32>
    %91 = vector.shape_cast %90 : vector<32xf32> to vector<32x1xf32>
    %cst_41 = arith.constant 3.200000e+01 : f32
    %92 = vector.broadcast %cst_41 : f32 to vector<32x1xf32>
    %93 = arith.divf %91, %92 : vector<32x1xf32>
    %94 = vector.broadcast %93 : vector<32x1xf32> to vector<32x32xf32>
    %95 = arith.subf %85, %94 : vector<32x32xf32>
    %96 = arith.mulf %95, %95 : vector<32x32xf32>
    %cst_42 = arith.constant dense<0.000000e+00> : vector<32xf32>
    %97 = vector.multi_reduction <add>, %96, %cst_42 [1] : vector<32x32xf32> to vector<32xf32>
    %98 = vector.shape_cast %97 : vector<32xf32> to vector<32x1xf32>
    %cst_43 = arith.constant 3.200000e+01 : f32
    %99 = vector.broadcast %cst_43 : f32 to vector<32x1xf32>
    %100 = arith.divf %98, %99 : vector<32x1xf32>
    %101 = vector.broadcast %93 : vector<32x1xf32> to vector<32x32xf32>
    %102 = arith.subf %85, %101 : vector<32x32xf32>
    %cst_44 = arith.constant 9.99999974E-6 : f32
    %103 = vector.broadcast %cst_44 : f32 to vector<32x1xf32>
    %104 = arith.addf %100, %103 : vector<32x1xf32>
    %105 = math.rsqrt %104 : vector<32x1xf32>
    %106 = vector.broadcast %105 : vector<32x1xf32> to vector<32x32xf32>
    %107 = arith.mulf %102, %106 : vector<32x32xf32>
    %108 = vector.broadcast %87 : vector<1x32xf32> to vector<32x32xf32>
    %109 = arith.mulf %107, %108 : vector<32x32xf32>
    %110 = vector.broadcast %89 : vector<1x32xf32> to vector<32x32xf32>
    %111 = arith.addf %109, %110 : vector<32x32xf32>
    %c0_45 = arith.constant 0 : index
    %c0_46 = arith.constant 0 : index
    %c0_47 = arith.constant 0 : index
    %112 = vector.load %arg9[%c0_45, %c0_46, %c0_47] : memref<2x32x64xf32, #tpu.memory_space<vmem>>, vector<1x32x64xf32>
    %113 = vector.shape_cast %112 : vector<1x32x64xf32> to vector<32x64xf32>
    %cst_48 = arith.constant dense<0.000000e+00> : vector<32x64xf32>
    %114 = tpu.matmul %111, %113, %cst_48 {dimension_numbers = #tpu.dot_dimension_numbers<[1], [0], [0], [1], [0, 0, 1, 1], [], []>} : vector<32x32xf32>, vector<32x64xf32>, vector<32x64xf32> -> vector<32x64xf32>
    %c0_49 = arith.constant 0 : index
    %c0_50 = arith.constant 0 : index
    %c0_51 = arith.constant 0 : index
    %115 = vector.load %arg10[%c0_49, %c0_50, %c0_51] : memref<2x1x64xf32, #tpu.memory_space<vmem>>, vector<1x1x64xf32>
    %116 = vector.shape_cast %115 : vector<1x1x64xf32> to vector<1x64xf32>
    %117 = vector.broadcast %116 : vector<1x64xf32> to vector<32x64xf32>
    %118 = arith.addf %114, %117 : vector<32x64xf32>
    %119 = arith.negf %118 : vector<32x64xf32>
    %120 = math.exp %119 : vector<32x64xf32>
    %cst_52 = arith.constant 1.000000e+00 : f32
    %121 = vector.broadcast %cst_52 : f32 to vector<32x64xf32>
    %122 = arith.addf %121, %120 : vector<32x64xf32>
    %123 = arith.divf %121, %122 : vector<32x64xf32>
    %124 = arith.mulf %118, %123 : vector<32x64xf32>
    %c0_53 = arith.constant 0 : index
    %c0_54 = arith.constant 0 : index
    %c0_55 = arith.constant 0 : index
    %125 = vector.load %arg11[%c0_53, %c0_54, %c0_55] : memref<2x64x32xf32, #tpu.memory_space<vmem>>, vector<1x64x32xf32>
    %126 = vector.shape_cast %125 : vector<1x64x32xf32> to vector<64x32xf32>
    %cst_56 = arith.constant dense<0.000000e+00> : vector<32x32xf32>
    %127 = tpu.matmul %124, %126, %cst_56 {dimension_numbers = #tpu.dot_dimension_numbers<[1], [0], [0], [1], [0, 0, 1, 1], [], []>} : vector<32x64xf32>, vector<64x32xf32>, vector<32x32xf32> -> vector<32x32xf32>
    %c0_57 = arith.constant 0 : index
    %c0_58 = arith.constant 0 : index
    %c0_59 = arith.constant 0 : index
    %128 = vector.load %arg12[%c0_57, %c0_58, %c0_59] : memref<2x1x32xf32, #tpu.memory_space<vmem>>, vector<1x1x32xf32>
    %129 = vector.shape_cast %128 : vector<1x1x32xf32> to vector<1x32xf32>
    %130 = vector.broadcast %129 : vector<1x32xf32> to vector<32x32xf32>
    %131 = arith.addf %127, %130 : vector<32x32xf32>
    %132 = arith.addf %131, %85 : vector<32x32xf32>
    %c1 = arith.constant 1 : index
    %c0_60 = arith.constant 0 : index
    %c0_61 = arith.constant 0 : index
    %133 = vector.load %arg2[%c1, %c0_60, %c0_61] : memref<2x1x32xf32, #tpu.memory_space<vmem>>, vector<1x1x32xf32>
    %134 = vector.shape_cast %133 : vector<1x1x32xf32> to vector<1x32xf32>
    %c1_62 = arith.constant 1 : index
    %c0_63 = arith.constant 0 : index
    %c0_64 = arith.constant 0 : index
    %135 = vector.load %arg3[%c1_62, %c0_63, %c0_64] : memref<2x1x32xf32, #tpu.memory_space<vmem>>, vector<1x1x32xf32>
    %136 = vector.shape_cast %135 : vector<1x1x32xf32> to vector<1x32xf32>
    %cst_65 = arith.constant dense<0.000000e+00> : vector<32xf32>
    %137 = vector.multi_reduction <add>, %132, %cst_65 [1] : vector<32x32xf32> to vector<32xf32>
    %138 = vector.shape_cast %137 : vector<32xf32> to vector<32x1xf32>
    %cst_66 = arith.constant 3.200000e+01 : f32
    %139 = vector.broadcast %cst_66 : f32 to vector<32x1xf32>
    %140 = arith.divf %138, %139 : vector<32x1xf32>
    %141 = vector.broadcast %140 : vector<32x1xf32> to vector<32x32xf32>
    %142 = arith.subf %132, %141 : vector<32x32xf32>
    %143 = arith.mulf %142, %142 : vector<32x32xf32>
    %cst_67 = arith.constant dense<0.000000e+00> : vector<32xf32>
    %144 = vector.multi_reduction <add>, %143, %cst_67 [1] : vector<32x32xf32> to vector<32xf32>
    %145 = vector.shape_cast %144 : vector<32xf32> to vector<32x1xf32>
    %cst_68 = arith.constant 3.200000e+01 : f32
    %146 = vector.broadcast %cst_68 : f32 to vector<32x1xf32>
    %147 = arith.divf %145, %146 : vector<32x1xf32>
    %148 = vector.broadcast %140 : vector<32x1xf32> to vector<32x32xf32>
    %149 = arith.subf %132, %148 : vector<32x32xf32>
    %cst_69 = arith.constant 9.99999974E-6 : f32
    %150 = vector.broadcast %cst_69 : f32 to vector<32x1xf32>
    %151 = arith.addf %147, %150 : vector<32x1xf32>
    %152 = math.rsqrt %151 : vector<32x1xf32>
    %153 = vector.broadcast %152 : vector<32x1xf32> to vector<32x32xf32>
    %154 = arith.mulf %149, %153 : vector<32x32xf32>
    %155 = vector.broadcast %134 : vector<1x32xf32> to vector<32x32xf32>
    %156 = arith.mulf %154, %155 : vector<32x32xf32>
    %157 = vector.broadcast %136 : vector<1x32xf32> to vector<32x32xf32>
    %158 = arith.addf %156, %157 : vector<32x32xf32>
    %c1_70 = arith.constant 1 : index
    %c0_71 = arith.constant 0 : index
    %c0_72 = arith.constant 0 : index
    %159 = vector.load %arg4[%c1_70, %c0_71, %c0_72] : memref<2x32x96xf32, #tpu.memory_space<vmem>>, vector<1x32x96xf32>
    %160 = vector.shape_cast %159 : vector<1x32x96xf32> to vector<32x96xf32>
    %cst_73 = arith.constant dense<0.000000e+00> : vector<32x96xf32>
    %161 = tpu.matmul %158, %160, %cst_73 {dimension_numbers = #tpu.dot_dimension_numbers<[1], [0], [0], [1], [0, 0, 1, 1], [], []>} : vector<32x32xf32>, vector<32x96xf32>, vector<32x96xf32> -> vector<32x96xf32>
    %c1_74 = arith.constant 1 : index
    %c0_75 = arith.constant 0 : index
    %c0_76 = arith.constant 0 : index
    %162 = vector.load %arg5[%c1_74, %c0_75, %c0_76] : memref<2x32x32xf32, #tpu.memory_space<vmem>>, vector<1x32x32xf32>
    %163 = vector.shape_cast %162 : vector<1x32x32xf32> to vector<32x32xf32>
    %cst_77 = arith.constant 0.000000e+00 : f32
    %164 = vector.broadcast %cst_77 : f32 to vector<32x32xf32>
    %165 = vector.extract_strided_slice %161 {offsets = [0, 0], sizes = [32, 16], strides = [1, 1]} : vector<32x96xf32> to vector<32x16xf32>
    %166 = vector.shape_cast %165 : vector<32x16xf32> to vector<4x8x16xf32>
    %167 = vector.extract_strided_slice %161 {offsets = [0, 32], sizes = [32, 16], strides = [1, 1]} : vector<32x96xf32> to vector<32x16xf32>
    %168 = vector.shape_cast %167 : vector<32x16xf32> to vector<4x8x16xf32>
    %169 = vector.extract_strided_slice %161 {offsets = [0, 64], sizes = [32, 16], strides = [1, 1]} : vector<32x96xf32> to vector<32x16xf32>
    %170 = vector.shape_cast %169 : vector<32x16xf32> to vector<4x8x16xf32>
    "tpu.trace_start"() <{level = 10 : i32, message = "bnd,bmd->bnm"}> : () -> ()
    %cst_78 = arith.constant dense<0.000000e+00> : vector<4x8x8xf32>
    %171 = tpu.matmul %166, %168, %cst_78 {dimension_numbers = #tpu.dot_dimension_numbers<[2], [2], [1], [1], [0, 0, 0, 1, 1, 1], [0], [0]>} : vector<4x8x16xf32>, vector<4x8x16xf32>, vector<4x8x8xf32> -> vector<4x8x8xf32>
    "tpu.trace_stop"() : () -> ()
    %cst_79 = arith.constant 2.500000e-01 : f32
    %172 = vector.broadcast %cst_79 : f32 to vector<4x8x8xf32>
    %173 = arith.mulf %171, %172 : vector<4x8x8xf32>
    %cst_80 = arith.constant dense<0xFF800000> : vector<4x8xf32>
    %174 = vector.multi_reduction <maximumf>, %173, %cst_80 [2] : vector<4x8x8xf32> to vector<4x8xf32>
    %175 = vector.shape_cast %174 : vector<4x8xf32> to vector<4x8x1xf32>
    %176 = vector.broadcast %175 : vector<4x8x1xf32> to vector<4x8x8xf32>
    %177 = arith.subf %173, %176 : vector<4x8x8xf32>
    %178 = math.exp %177 : vector<4x8x8xf32>
    %cst_81 = arith.constant dense<0.000000e+00> : vector<4x8xf32>
    %179 = vector.multi_reduction <add>, %178, %cst_81 [2] : vector<4x8x8xf32> to vector<4x8xf32>
    %180 = vector.shape_cast %179 : vector<4x8xf32> to vector<4x8x1xf32>
    %181 = tpu.reciprocal %180 {approx = true} : vector<4x8x1xf32> -> vector<4x8x1xf32>
    %182 = vector.broadcast %181 : vector<4x8x1xf32> to vector<4x8x8xf32>
    %183 = arith.mulf %178, %182 : vector<4x8x8xf32>
    "tpu.trace_start"() <{level = 10 : i32, message = "bnm,bmd->bnd"}> : () -> ()
    %cst_82 = arith.constant dense<0.000000e+00> : vector<4x8x16xf32>
    %184 = tpu.matmul %183, %170, %cst_82 {dimension_numbers = #tpu.dot_dimension_numbers<[2], [1], [1], [2], [0, 0, 0, 1, 1, 2], [0], [0]>} : vector<4x8x8xf32>, vector<4x8x16xf32>, vector<4x8x16xf32> -> vector<4x8x16xf32>
    "tpu.trace_stop"() : () -> ()
    %185 = vector.shape_cast %184 : vector<4x8x16xf32> to vector<32x16xf32>
    %186 = vector.extract_strided_slice %163 {offsets = [0, 0], sizes = [16, 32], strides = [1, 1]} : vector<32x32xf32> to vector<16x32xf32>
    %cst_83 = arith.constant dense<0.000000e+00> : vector<32x32xf32>
    %187 = tpu.matmul %185, %186, %cst_83 {dimension_numbers = #tpu.dot_dimension_numbers<[1], [0], [0], [1], [0, 0, 1, 1], [], []>} : vector<32x16xf32>, vector<16x32xf32>, vector<32x32xf32> -> vector<32x32xf32>
    %188 = arith.addf %164, %187 : vector<32x32xf32>
    %189 = vector.extract_strided_slice %161 {offsets = [0, 16], sizes = [32, 16], strides = [1, 1]} : vector<32x96xf32> to vector<32x16xf32>
    %190 = vector.shape_cast %189 : vector<32x16xf32> to vector<4x8x16xf32>
    %191 = vector.extract_strided_slice %161 {offsets = [0, 48], sizes = [32, 16], strides = [1, 1]} : vector<32x96xf32> to vector<32x16xf32>
    %192 = vector.shape_cast %191 : vector<32x16xf32> to vector<4x8x16xf32>
    %193 = vector.extract_strided_slice %161 {offsets = [0, 80], sizes = [32, 16], strides = [1, 1]} : vector<32x96xf32> to vector<32x16xf32>
    %194 = vector.shape_cast %193 : vector<32x16xf32> to vector<4x8x16xf32>
    "tpu.trace_start"() <{level = 10 : i32, message = "bnd,bmd->bnm"}> : () -> ()
    %cst_84 = arith.constant dense<0.000000e+00> : vector<4x8x8xf32>
    %195 = tpu.matmul %190, %192, %cst_84 {dimension_numbers = #tpu.dot_dimension_numbers<[2], [2], [1], [1], [0, 0, 0, 1, 1, 1], [0], [0]>} : vector<4x8x16xf32>, vector<4x8x16xf32>, vector<4x8x8xf32> -> vector<4x8x8xf32>
    "tpu.trace_stop"() : () -> ()
    %cst_85 = arith.constant 2.500000e-01 : f32
    %196 = vector.broadcast %cst_85 : f32 to vector<4x8x8xf32>
    %197 = arith.mulf %195, %196 : vector<4x8x8xf32>
    %cst_86 = arith.constant dense<0xFF800000> : vector<4x8xf32>
    %198 = vector.multi_reduction <maximumf>, %197, %cst_86 [2] : vector<4x8x8xf32> to vector<4x8xf32>
    %199 = vector.shape_cast %198 : vector<4x8xf32> to vector<4x8x1xf32>
    %200 = vector.broadcast %199 : vector<4x8x1xf32> to vector<4x8x8xf32>
    %201 = arith.subf %197, %200 : vector<4x8x8xf32>
    %202 = math.exp %201 : vector<4x8x8xf32>
    %cst_87 = arith.constant dense<0.000000e+00> : vector<4x8xf32>
    %203 = vector.multi_reduction <add>, %202, %cst_87 [2] : vector<4x8x8xf32> to vector<4x8xf32>
    %204 = vector.shape_cast %203 : vector<4x8xf32> to vector<4x8x1xf32>
    %205 = tpu.reciprocal %204 {approx = true} : vector<4x8x1xf32> -> vector<4x8x1xf32>
    %206 = vector.broadcast %205 : vector<4x8x1xf32> to vector<4x8x8xf32>
    %207 = arith.mulf %202, %206 : vector<4x8x8xf32>
    "tpu.trace_start"() <{level = 10 : i32, message = "bnm,bmd->bnd"}> : () -> ()
    %cst_88 = arith.constant dense<0.000000e+00> : vector<4x8x16xf32>
    %208 = tpu.matmul %207, %194, %cst_88 {dimension_numbers = #tpu.dot_dimension_numbers<[2], [1], [1], [2], [0, 0, 0, 1, 1, 2], [0], [0]>} : vector<4x8x8xf32>, vector<4x8x16xf32>, vector<4x8x16xf32> -> vector<4x8x16xf32>
    "tpu.trace_stop"() : () -> ()
    %209 = vector.shape_cast %208 : vector<4x8x16xf32> to vector<32x16xf32>
    %210 = vector.extract_strided_slice %163 {offsets = [16, 0], sizes = [16, 32], strides = [1, 1]} : vector<32x32xf32> to vector<16x32xf32>
    %cst_89 = arith.constant dense<0.000000e+00> : vector<32x32xf32>
    %211 = tpu.matmul %209, %210, %cst_89 {dimension_numbers = #tpu.dot_dimension_numbers<[1], [0], [0], [1], [0, 0, 1, 1], [], []>} : vector<32x16xf32>, vector<16x32xf32>, vector<32x32xf32> -> vector<32x32xf32>
    %212 = arith.addf %188, %211 : vector<32x32xf32>
    %c1_90 = arith.constant 1 : index
    %c0_91 = arith.constant 0 : index
    %c0_92 = arith.constant 0 : index
    %213 = vector.load %arg6[%c1_90, %c0_91, %c0_92] : memref<2x1x32xf32, #tpu.memory_space<vmem>>, vector<1x1x32xf32>
    %214 = vector.shape_cast %213 : vector<1x1x32xf32> to vector<1x32xf32>
    %215 = vector.broadcast %214 : vector<1x32xf32> to vector<32x32xf32>
    %216 = arith.addf %212, %215 : vector<32x32xf32>
    %217 = arith.addf %216, %132 : vector<32x32xf32>
    %c1_93 = arith.constant 1 : index
    %c0_94 = arith.constant 0 : index
    %c0_95 = arith.constant 0 : index
    %218 = vector.load %arg7[%c1_93, %c0_94, %c0_95] : memref<2x1x32xf32, #tpu.memory_space<vmem>>, vector<1x1x32xf32>
    %219 = vector.shape_cast %218 : vector<1x1x32xf32> to vector<1x32xf32>
    %c1_96 = arith.constant 1 : index
    %c0_97 = arith.constant 0 : index
    %c0_98 = arith.constant 0 : index
    %220 = vector.load %arg8[%c1_96, %c0_97, %c0_98] : memref<2x1x32xf32, #tpu.memory_space<vmem>>, vector<1x1x32xf32>
    %221 = vector.shape_cast %220 : vector<1x1x32xf32> to vector<1x32xf32>
    %cst_99 = arith.constant dense<0.000000e+00> : vector<32xf32>
    %222 = vector.multi_reduction <add>, %217, %cst_99 [1] : vector<32x32xf32> to vector<32xf32>
    %223 = vector.shape_cast %222 : vector<32xf32> to vector<32x1xf32>
    %cst_100 = arith.constant 3.200000e+01 : f32
    %224 = vector.broadcast %cst_100 : f32 to vector<32x1xf32>
    %225 = arith.divf %223, %224 : vector<32x1xf32>
    %226 = vector.broadcast %225 : vector<32x1xf32> to vector<32x32xf32>
    %227 = arith.subf %217, %226 : vector<32x32xf32>
    %228 = arith.mulf %227, %227 : vector<32x32xf32>
    %cst_101 = arith.constant dense<0.000000e+00> : vector<32xf32>
    %229 = vector.multi_reduction <add>, %228, %cst_101 [1] : vector<32x32xf32> to vector<32xf32>
    %230 = vector.shape_cast %229 : vector<32xf32> to vector<32x1xf32>
    %cst_102 = arith.constant 3.200000e+01 : f32
    %231 = vector.broadcast %cst_102 : f32 to vector<32x1xf32>
    %232 = arith.divf %230, %231 : vector<32x1xf32>
    %233 = vector.broadcast %225 : vector<32x1xf32> to vector<32x32xf32>
    %234 = arith.subf %217, %233 : vector<32x32xf32>
    %cst_103 = arith.constant 9.99999974E-6 : f32
    %235 = vector.broadcast %cst_103 : f32 to vector<32x1xf32>
    %236 = arith.addf %232, %235 : vector<32x1xf32>
    %237 = math.rsqrt %236 : vector<32x1xf32>
    %238 = vector.broadcast %237 : vector<32x1xf32> to vector<32x32xf32>
    %239 = arith.mulf %234, %238 : vector<32x32xf32>
    %240 = vector.broadcast %219 : vector<1x32xf32> to vector<32x32xf32>
    %241 = arith.mulf %239, %240 : vector<32x32xf32>
    %242 = vector.broadcast %221 : vector<1x32xf32> to vector<32x32xf32>
    %243 = arith.addf %241, %242 : vector<32x32xf32>
    %c1_104 = arith.constant 1 : index
    %c0_105 = arith.constant 0 : index
    %c0_106 = arith.constant 0 : index
    %244 = vector.load %arg9[%c1_104, %c0_105, %c0_106] : memref<2x32x64xf32, #tpu.memory_space<vmem>>, vector<1x32x64xf32>
    %245 = vector.shape_cast %244 : vector<1x32x64xf32> to vector<32x64xf32>
    %cst_107 = arith.constant dense<0.000000e+00> : vector<32x64xf32>
    %246 = tpu.matmul %243, %245, %cst_107 {dimension_numbers = #tpu.dot_dimension_numbers<[1], [0], [0], [1], [0, 0, 1, 1], [], []>} : vector<32x32xf32>, vector<32x64xf32>, vector<32x64xf32> -> vector<32x64xf32>
    %c1_108 = arith.constant 1 : index
    %c0_109 = arith.constant 0 : index
    %c0_110 = arith.constant 0 : index
    %247 = vector.load %arg10[%c1_108, %c0_109, %c0_110] : memref<2x1x64xf32, #tpu.memory_space<vmem>>, vector<1x1x64xf32>
    %248 = vector.shape_cast %247 : vector<1x1x64xf32> to vector<1x64xf32>
    %249 = vector.broadcast %248 : vector<1x64xf32> to vector<32x64xf32>
    %250 = arith.addf %246, %249 : vector<32x64xf32>
    %251 = arith.negf %250 : vector<32x64xf32>
    %252 = math.exp %251 : vector<32x64xf32>
    %cst_111 = arith.constant 1.000000e+00 : f32
    %253 = vector.broadcast %cst_111 : f32 to vector<32x64xf32>
    %254 = arith.addf %253, %252 : vector<32x64xf32>
    %255 = arith.divf %253, %254 : vector<32x64xf32>
    %256 = arith.mulf %250, %255 : vector<32x64xf32>
    %c1_112 = arith.constant 1 : index
    %c0_113 = arith.constant 0 : index
    %c0_114 = arith.constant 0 : index
    %257 = vector.load %arg11[%c1_112, %c0_113, %c0_114] : memref<2x64x32xf32, #tpu.memory_space<vmem>>, vector<1x64x32xf32>
    %258 = vector.shape_cast %257 : vector<1x64x32xf32> to vector<64x32xf32>
    %cst_115 = arith.constant dense<0.000000e+00> : vector<32x32xf32>
    %259 = tpu.matmul %256, %258, %cst_115 {dimension_numbers = #tpu.dot_dimension_numbers<[1], [0], [0], [1], [0, 0, 1, 1], [], []>} : vector<32x64xf32>, vector<64x32xf32>, vector<32x32xf32> -> vector<32x32xf32>
    %c1_116 = arith.constant 1 : index
    %c0_117 = arith.constant 0 : index
    %c0_118 = arith.constant 0 : index
    %260 = vector.load %arg12[%c1_116, %c0_117, %c0_118] : memref<2x1x32xf32, #tpu.memory_space<vmem>>, vector<1x1x32xf32>
    %261 = vector.shape_cast %260 : vector<1x1x32xf32> to vector<1x32xf32>
    %262 = vector.broadcast %261 : vector<1x32xf32> to vector<32x32xf32>
    %263 = arith.addf %259, %262 : vector<32x32xf32>
    %264 = arith.addf %263, %217 : vector<32x32xf32>
    %c0_119 = arith.constant 0 : index
    %c0_120 = arith.constant 0 : index
    %265 = vector.load %arg13[%c0_119, %c0_120] : memref<32x32xf32, #tpu.memory_space<vmem>>, vector<32x32xf32>
    tpu.vector_store %arg13[%c0_119, %c0_120], %264 {strides = array<i32>} : memref<32x32xf32, #tpu.memory_space<vmem>>, vector<32x32xf32>,
    return
  }
  func.func @transform_0(%arg0: i32) -> (i32, i32) {
    %c0_i32 = arith.constant 0 : i32
    %c0_i32_0 = arith.constant 0 : i32
    return %arg0, %c0_i32 : i32, i32
  }
  func.func @transform_1(%arg0: i32) -> (i32, i32, i32) {
    %c0_i32 = arith.constant 0 : i32
    %c0_i32_0 = arith.constant 0 : i32
    %c0_i32_1 = arith.constant 0 : i32
    %c0_i32_2 = arith.constant 0 : i32
    return %c0_i32, %c0_i32_0, %c0_i32_1 : i32, i32, i32
  }
  func.func @transform_2(%arg0: i32) -> (i32, i32, i32) {
    %c0_i32 = arith.constant 0 : i32
    %c0_i32_0 = arith.constant 0 : i32
    %c0_i32_1 = arith.constant 0 : i32
    %c0_i32_2 = arith.constant 0 : i32
    return %c0_i32, %c0_i32_0, %c0_i32_1 : i32, i32, i32
  }
  func.func @transform_3(%arg0: i32) -> (i32, i32, i32) {
    %c0_i32 = arith.constant 0 : i32
    %c0_i32_0 = arith.constant 0 : i32
    %c0_i32_1 = arith.constant 0 : i32
    %c0_i32_2 = arith.constant 0 : i32
    return %c0_i32, %c0_i32_0, %c0_i32_1 : i32, i32, i32
  }
  func.func @transform_4(%arg0: i32) -> (i32, i32, i32) {
    %c0_i32 = arith.constant 0 : i32
    %c0_i32_0 = arith.constant 0 : i32
    %c0_i32_1 = arith.constant 0 : i32
    %c0_i32_2 = arith.constant 0 : i32
    return %c0_i32, %c0_i32_0, %c0_i32_1 : i32, i32, i32
  }
  func.func @transform_5(%arg0: i32) -> (i32, i32, i32) {
    %c0_i32 = arith.constant 0 : i32
    %c0_i32_0 = arith.constant 0 : i32
    %c0_i32_1 = arith.constant 0 : i32
    %c0_i32_2 = arith.constant 0 : i32
    return %c0_i32, %c0_i32_0, %c0_i32_1 : i32, i32, i32
  }
  func.func @transform_6(%arg0: i32) -> (i32, i32, i32) {
    %c0_i32 = arith.constant 0 : i32
    %c0_i32_0 = arith.constant 0 : i32
    %c0_i32_1 = arith.constant 0 : i32
    %c0_i32_2 = arith.constant 0 : i32
    return %c0_i32, %c0_i32_0, %c0_i32_1 : i32, i32, i32
  }
  func.func @transform_7(%arg0: i32) -> (i32, i32, i32) {
    %c0_i32 = arith.constant 0 : i32
    %c0_i32_0 = arith.constant 0 : i32
    %c0_i32_1 = arith.constant 0 : i32
    %c0_i32_2 = arith.constant 0 : i32
    return %c0_i32, %c0_i32_0, %c0_i32_1 : i32, i32, i32
  }
  func.func @transform_8(%arg0: i32) -> (i32, i32, i32) {
    %c0_i32 = arith.constant 0 : i32
    %c0_i32_0 = arith.constant 0 : i32
    %c0_i32_1 = arith.constant 0 : i32
    %c0_i32_2 = arith.constant 0 : i32
    return %c0_i32, %c0_i32_0, %c0_i32_1 : i32, i32, i32
  }
  func.func @transform_9(%arg0: i32) -> (i32, i32, i32) {
    %c0_i32 = arith.constant 0 : i32
    %c0_i32_0 = arith.constant 0 : i32
    %c0_i32_1 = arith.constant 0 : i32
    %c0_i32_2 = arith.constant 0 : i32
    return %c0_i32, %c0_i32_0, %c0_i32_1 : i32, i32, i32
  }
  func.func @transform_10(%arg0: i32) -> (i32, i32, i32) {
    %c0_i32 = arith.constant 0 : i32
    %c0_i32_0 = arith.constant 0 : i32
    %c0_i32_1 = arith.constant 0 : i32
    %c0_i32_2 = arith.constant 0 : i32
    return %c0_i32, %c0_i32_0, %c0_i32_1 : i32, i32, i32
  }
  func.func @transform_11(%arg0: i32) -> (i32, i32, i32) {
    %c0_i32 = arith.constant 0 : i32
    %c0_i32_0 = arith.constant 0 : i32
    %c0_i32_1 = arith.constant 0 : i32
    %c0_i32_2 = arith.constant 0 : i32
    return %c0_i32, %c0_i32_0, %c0_i32_1 : i32, i32, i32
  }
  func.func @transform_12(%arg0: i32) -> (i32, i32) {
    %c0_i32 = arith.constant 0 : i32
    %c0_i32_0 = arith.constant 0 : i32
    return %arg0, %c0_i32 : i32, i32
  }
}

</mosaic_0001>

<llo_original>
// kernel: tpu_custom_call.1
$region0: #{tpu_custom_call.1}
  #allocation0 [shape = 'u32[]', space=smem, size = 0x4, offset = 0x4, fixed_abs, tag = 'smem constant byte address 0x4 - core index']
  #allocation1 [shape = 'u32[144,128]{1,0:T(1,128)}', space=vmem, size = 0x12000, scoped, tag = 'internal scratch']
  %s0 = inlined_call_operand.vmem [shape: f32[64,32], index: 0, kind: input, shape index: {}]
  %s1 = inlined_call_operand.vmem [shape: f32[2,1,32], index: 1, kind: input, shape index: {}]
  %s2 = inlined_call_operand.vmem [shape: f32[2,1,32], index: 2, kind: input, shape index: {}]
  %s3 = inlined_call_operand.vmem [shape: f32[2,32,96], index: 3, kind: input, shape index: {}]
  %s4 = inlined_call_operand.vmem [shape: f32[2,32,32], index: 4, kind: input, shape index: {}]
  %s5 = inlined_call_operand.vmem [shape: f32[2,1,32], index: 5, kind: input, shape index: {}]
  %s6 = inlined_call_operand.vmem [shape: f32[2,1,32], index: 6, kind: input, shape index: {}]
  %s7 = inlined_call_operand.vmem [shape: f32[2,1,32], index: 7, kind: input, shape index: {}]
  %s8 = inlined_call_operand.vmem [shape: f32[2,32,64], index: 8, kind: input, shape index: {}]
  %s9 = inlined_call_operand.vmem [shape: f32[2,1,64], index: 9, kind: input, shape index: {}]
  %s10 = inlined_call_operand.vmem [shape: f32[2,64,32], index: 10, kind: input, shape index: {}]
  %s11 = inlined_call_operand.vmem [shape: f32[2,1,32], index: 11, kind: input, shape index: {}]
  %s12 = inlined_call_operand.vmem [shape: f32[64,32], index: 12, kind: output, shape index: {}]
  %s13 = sld [smem:[#allocation0]]
  $region81: #{tpu_custom_call.1} parent=0
    _
  %s15 = ssub.s32 1, %s13
  %s16 = scalar_select 0, %s15, %s13
  loop: start=0, step=1, limit=4
  $region2: #{tpu_custom_call.1} parent=0 // loop_pre_header
    _
  $region3: #{tpu_custom_call.1} parent=0 // loop_header
    %s18 = sphi 0, %s22
    %p19 = scmp.ge.s32.totalorder %s18, 4
    %s28 = sphi 0, %s30
    %s31 = sphi 0, %s28
    %s32 = sphi 0, %s31
    %s48 = sphi 0, %s32
    %s52 = sphi 0, %s52
    %s54 = sphi 0, %s52
    %s55 = sphi 0, %s54
    %s69 = sphi 0, %s55
    %s73 = sphi 0, %s73
    %s75 = sphi 0, %s73
    %s76 = sphi 0, %s75
    %s90 = sphi 0, %s76
    %s94 = sphi 0, %s94
    %s96 = sphi 0, %s94
    %s97 = sphi 0, %s96
    %s111 = sphi 0, %s97
    %s115 = sphi 0, %s115
    %s117 = sphi 0, %s115
    %s118 = sphi 0, %s117
    %s132 = sphi 0, %s118
    %s136 = sphi 0, %s136
    %s138 = sphi 0, %s136
    %s139 = sphi 0, %s138
    %s153 = sphi 0, %s139
    %s157 = sphi 0, %s157
    %s159 = sphi 0, %s157
    %s160 = sphi 0, %s159
    %s174 = sphi 0, %s160
    %s178 = sphi 0, %s178
    %s180 = sphi 0, %s178
    %s181 = sphi 0, %s180
    %s195 = sphi 0, %s181
    %s199 = sphi 0, %s199
    %s201 = sphi 0, %s199
    %s202 = sphi 0, %s201
    %s216 = sphi 0, %s202
    %s220 = sphi 0, %s220
    %s222 = sphi 0, %s220
    %s223 = sphi 0, %s222
    %s237 = sphi 0, %s223
    %s241 = sphi 0, %s241
    %s243 = sphi 0, %s241
    %s244 = sphi 0, %s243
    %s258 = sphi 0, %s244
    %s262 = sphi 0, %s262
    %s264 = sphi 0, %s262
    %s265 = sphi 0, %s264
    %s279 = sphi 0, %s265
    %s285 = sphi 0, %s287
    %s288 = sphi 0, %s285
    %s289 = sphi 0, %s288
    %s305 = sphi 0, %s289
  $region4: #{tpu_custom_call.1} parent=0 // loop_header_branch
    %21 = sbr.rel (%p19) target = $region8
  $region5: #{tpu_custom_call.1} parent=0 // loop_body
    %s23 = ssub.s32 %s18, 1
    %s24 = ssub.s32 %s18, 2
    %s25 = sadd.s32 %s18, 1
    %s26 = ssub.s32 %s18, %s25
    %p27 = scmp.eq.s32.totalorder %s26, 0
    %s29 = sadd.s32 %s28, 1
    %s30 = scalar_select %p27, %s28, %s29
    %p33 = pneg %p27
    %p34 = scmp.eq.s32.totalorder %s18, 1
    %p35 = por %p33, %p34
    %p36 = scmp.ne.s32.totalorder %s28, %s31
    %p37 = scmp.eq.s32.totalorder %s18, 0
    %p38 = por %p36, %p37
    %p39 = scmp.ne.s32.totalorder %s28, %s31
    %p40 = scmp.eq.s32.totalorder %s23, 1
    %p41 = por %p39, %p40
    %p42 = scmp.ne.s32.totalorder %s31, %s32
    %p43 = scmp.eq.s32.totalorder %s23, 0
    %p44 = por %p42, %p43
    %p45 = scmp.ne.s32.totalorder %s31, %s32
    %p46 = scmp.eq.s32.totalorder %s24, 1
    %p47 = por %p45, %p46
    %p49 = scmp.ne.s32.totalorder %s32, %s48
    %p50 = scmp.eq.s32.totalorder %s24, 0
    %p51 = por %p49, %p50
    %s53 = sadd.s32 %s52, 1
    %p56 = scmp.eq.s32.totalorder %s18, 1
    %p57 = scmp.ne.s32.totalorder %s52, %s54
    %p58 = scmp.eq.s32.totalorder %s18, 0
    %p59 = por %p57, %p58
    %p60 = scmp.ne.s32.totalorder %s52, %s54
    %p61 = scmp.eq.s32.totalorder %s23, 1
    %p62 = por %p60, %p61
    %p63 = scmp.ne.s32.totalorder %s54, %s55
    %p64 = scmp.eq.s32.totalorder %s23, 0
    %p65 = por %p63, %p64
    %p66 = scmp.ne.s32.totalorder %s54, %s55
    %p67 = scmp.eq.s32.totalorder %s24, 1
    %p68 = por %p66, %p67
    %p70 = scmp.ne.s32.totalorder %s55, %s69
    %p71 = scmp.eq.s32.totalorder %s24, 0
    %p72 = por %p70, %p71
    %s74 = sadd.s32 %s73, 1
    %p77 = scmp.eq.s32.totalorder %s18, 1
    %p78 = scmp.ne.s32.totalorder %s73, %s75
    %p79 = scmp.eq.s32.totalorder %s18, 0
    %p80 = por %p78, %p79
    %p81 = scmp.ne.s32.totalorder %s73, %s75
    %p82 = scmp.eq.s32.totalorder %s23, 1
    %p83 = por %p81, %p82
    %p84 = scmp.ne.s32.totalorder %s75, %s76
    %p85 = scmp.eq.s32.totalorder %s23, 0
    %p86 = por %p84, %p85
    %p87 = scmp.ne.s32.totalorder %s75, %s76
    %p88 = scmp.eq.s32.totalorder %s24, 1
    %p89 = por %p87, %p88
    %p91 = scmp.ne.s32.totalorder %s76, %s90
    %p92 = scmp.eq.s32.totalorder %s24, 0
    %p93 = por %p91, %p92
    %s95 = sadd.s32 %s94, 1
    %p98 = scmp.eq.s32.totalorder %s18, 1
    %p99 = scmp.ne.s32.totalorder %s94, %s96
    %p100 = scmp.eq.s32.totalorder %s18, 0
    %p101 = por %p99, %p100
    %p102 = scmp.ne.s32.totalorder %s94, %s96
    %p103 = scmp.eq.s32.totalorder %s23, 1
    %p104 = por %p102, %p103
    %p105 = scmp.ne.s32.totalorder %s96, %s97
    %p106 = scmp.eq.s32.totalorder %s23, 0
    %p107 = por %p105, %p106
    %p108 = scmp.ne.s32.totalorder %s96, %s97
    %p109 = scmp.eq.s32.totalorder %s24, 1
    %p110 = por %p108, %p109
    %p112 = scmp.ne.s32.totalorder %s97, %s111
    %p113 = scmp.eq.s32.totalorder %s24, 0
    %p114 = por %p112, %p113
    %s116 = sadd.s32 %s115, 1
    %p119 = scmp.eq.s32.totalorder %s18, 1
    %p120 = scmp.ne.s32.totalorder %s115, %s117
    %p121 = scmp.eq.s32.totalorder %s18, 0
    %p122 = por %p120, %p121
    %p123 = scmp.ne.s32.totalorder %s115, %s117
    %p124 = scmp.eq.s32.totalorder %s23, 1
    %p125 = por %p123, %p124
    %p126 = scmp.ne.s32.totalorder %s117, %s118
    %p127 = scmp.eq.s32.totalorder %s23, 0
    %p128 = por %p126, %p127
    %p129 = scmp.ne.s32.totalorder %s117, %s118
    %p130 = scmp.eq.s32.totalorder %s24, 1
    %p131 = por %p129, %p130
    %p133 = scmp.ne.s32.totalorder %s118, %s132
    %p134 = scmp.eq.s32.totalorder %s24, 0
    %p135 = por %p133, %p134
    %s137 = sadd.s32 %s136, 1
    %p140 = scmp.eq.s32.totalorder %s18, 1
    %p141 = scmp.ne.s32.totalorder %s136, %s138
    %p142 = scmp.eq.s32.totalorder %s18, 0
    %p143 = por %p141, %p142
    %p144 = scmp.ne.s32.totalorder %s136, %s138
    %p145 = scmp.eq.s32.totalorder %s23, 1
    %p146 = por %p144, %p145
    %p147 = scmp.ne.s32.totalorder %s138, %s139
    %p148 = scmp.eq.s32.totalorder %s23, 0
    %p149 = por %p147, %p148
    %p150 = scmp.ne.s32.totalorder %s138, %s139
    %p151 = scmp.eq.s32.totalorder %s24, 1
    %p152 = por %p150, %p151
    %p154 = scmp.ne.s32.totalorder %s139, %s153
    %p155 = scmp.eq.s32.totalorder %s24, 0
    %p156 = por %p154, %p155
    %s158 = sadd.s32 %s157, 1
    %p161 = scmp.eq.s32.totalorder %s18, 1
    %p162 = scmp.ne.s32.totalorder %s157, %s159
    %p163 = scmp.eq.s32.totalorder %s18, 0
    %p164 = por %p162, %p163
    %p165 = scmp.ne.s32.totalorder %s157, %s159
    %p166 = scmp.eq.s32.totalorder %s23, 1
    %p167 = por %p165, %p166
    %p168 = scmp.ne.s32.totalorder %s159, %s160
    %p169 = scmp.eq.s32.totalorder %s23, 0
    %p170 = por %p168, %p169
    %p171 = scmp.ne.s32.totalorder %s159, %s160
    %p172 = scmp.eq.s32.totalorder %s24, 1
    %p173 = por %p171, %p172
    %p175 = scmp.ne.s32.totalorder %s160, %s174
    %p176 = scmp.eq.s32.totalorder %s24, 0
    %p177 = por %p175, %p176
    %s179 = sadd.s32 %s178, 1
    %p182 = scmp.eq.s32.totalorder %s18, 1
    %p183 = scmp.ne.s32.totalorder %s178, %s180
    %p184 = scmp.eq.s32.totalorder %s18, 0
    %p185 = por %p183, %p184
    %p186 = scmp.ne.s32.totalorder %s178, %s180
    %p187 = scmp.eq.s32.totalorder %s23, 1
    %p188 = por %p186, %p187
    %p189 = scmp.ne.s32.totalorder %s180, %s181
    %p190 = scmp.eq.s32.totalorder %s23, 0
    %p191 = por %p189, %p190
    %p192 = scmp.ne.s32.totalorder %s180, %s181
    %p193 = scmp.eq.s32.totalorder %s24, 1
    %p194 = por %p192, %p193
    %p196 = scmp.ne.s32.totalorder %s181, %s195
    %p197 = scmp.eq.s32.totalorder %s24, 0
    %p198 = por %p196, %p197
    %s200 = sadd.s32 %s199, 1
    %p203 = scmp.eq.s32.totalorder %s18, 1
    %p204 = scmp.ne.s32.totalorder %s199, %s201
    %p205 = scmp.eq.s32.totalorder %s18, 0
    %p206 = por %p204, %p205
    %p207 = scmp.ne.s32.totalorder %s199, %s201
    %p208 = scmp.eq.s32.totalorder %s23, 1
    %p209 = por %p207, %p208
    %p210 = scmp.ne.s32.totalorder %s201, %s202
    %p211 = scmp.eq.s32.totalorder %s23, 0
    %p212 = por %p210, %p211
    %p213 = scmp.ne.s32.totalorder %s201, %s202
    %p214 = scmp.eq.s32.totalorder %s24, 1
    %p215 = por %p213, %p214
    %p217 = scmp.ne.s32.totalorder %s202, %s216
    %p218 = scmp.eq.s32.totalorder %s24, 0
    %p219 = por %p217, %p218
    %s221 = sadd.s32 %s220, 1
    %p224 = scmp.eq.s32.totalorder %s18, 1
    %p225 = scmp.ne.s32.totalorder %s220, %s222
    %p226 = scmp.eq.s32.totalorder %s18, 0
    %p227 = por %p225, %p226
    %p228 = scmp.ne.s32.totalorder %s220, %s222
    %p229 = scmp.eq.s32.totalorder %s23, 1
    %p230 = por %p228, %p229
    %p231 = scmp.ne.s32.totalorder %s222, %s223
    %p232 = scmp.eq.s32.totalorder %s23, 0
    %p233 = por %p231, %p232
    %p234 = scmp.ne.s32.totalorder %s222, %s223
    %p235 = scmp.eq.s32.totalorder %s24, 1
    %p236 = por %p234, %p235
    %p238 = scmp.ne.s32.totalorder %s223, %s237
    %p239 = scmp.eq.s32.totalorder %s24, 0
    %p240 = por %p238, %p239
    %s242 = sadd.s32 %s241, 1
    %p245 = scmp.eq.s32.totalorder %s18, 1
    %p246 = scmp.ne.s32.totalorder %s241, %s243
    %p247 = scmp.eq.s32.totalorder %s18, 0
    %p248 = por %p246, %p247
    %p249 = scmp.ne.s32.totalorder %s241, %s243
    %p250 = scmp.eq.s32.totalorder %s23, 1
    %p251 = por %p249, %p250
    %p252 = scmp.ne.s32.totalorder %s243, %s244
    %p253 = scmp.eq.s32.totalorder %s23, 0
    %p254 = por %p252, %p253
    %p255 = scmp.ne.s32.totalorder %s243, %s244
    %p256 = scmp.eq.s32.totalorder %s24, 1
    %p257 = por %p255, %p256
    %p259 = scmp.ne.s32.totalorder %s244, %s258
    %p260 = scmp.eq.s32.totalorder %s24, 0
    %p261 = por %p259, %p260
    %s263 = sadd.s32 %s262, 1
    %p266 = scmp.eq.s32.totalorder %s18, 1
    %p267 = scmp.ne.s32.totalorder %s262, %s264
    %p268 = scmp.eq.s32.totalorder %s18, 0
    %p269 = por %p267, %p268
    %p270 = scmp.ne.s32.totalorder %s262, %s264
    %p271 = scmp.eq.s32.totalorder %s23, 1
    %p272 = por %p270, %p271
    %p273 = scmp.ne.s32.totalorder %s264, %s265
    %p274 = scmp.eq.s32.totalorder %s23, 0
    %p275 = por %p273, %p274
    %p276 = scmp.ne.s32.totalorder %s264, %s265
    %p277 = scmp.eq.s32.totalorder %s24, 1
    %p278 = por %p276, %p277
    %p280 = scmp.ne.s32.totalorder %s265, %s279
    %p281 = scmp.eq.s32.totalorder %s24, 0
    %p282 = por %p280, %p281
    %s283 = ssub.s32 %s18, %s25
    %p284 = scmp.eq.s32.totalorder %s283, 0
    %s286 = sadd.s32 %s285, 1
    %s287 = scalar_select %p284, %s285, %s286
    %p290 = pneg %p284
    %p291 = scmp.eq.s32.totalorder %s18, 1
    %p292 = por %p290, %p291
    %p293 = scmp.ne.s32.totalorder %s285, %s288
    %p294 = scmp.eq.s32.totalorder %s18, 0
    %p295 = por %p293, %p294
    %p296 = scmp.ne.s32.totalorder %s285, %s288
    %p297 = scmp.eq.s32.totalorder %s23, 1
    %p298 = por %p296, %p297
    %p299 = scmp.ne.s32.totalorder %s288, %s289
    %p300 = scmp.eq.s32.totalorder %s23, 0
    %p301 = por %p299, %p300
    %p302 = scmp.ne.s32.totalorder %s288, %s289
    %p303 = scmp.eq.s32.totalorder %s24, 1
    %p304 = por %p302, %p303
    %p306 = scmp.ne.s32.totalorder %s289, %s305
    %p307 = scmp.eq.s32.totalorder %s24, 0
    %p308 = por %p306, %p307
    %p309 = scmp.le.s32.totalorder 1, %s18
    %p310 = scmp.lt.s32.totalorder %s18, 3
    %p311 = pnand %p309, %p310
    %p312 = pneg %p311
    // Predicated region
    $region9: #{tpu_custom_call.1} parent=5 // pred_check
      _
    $region10: #{tpu_custom_call.1} parent=5 // pred_check_branch
      %314 = sbr.rel (%p311) target = $region12
    $region11: #{tpu_custom_call.1} parent=5 // pred_region
      %s315 = ssub.s32 %s18, 1
      // Predicated region
      $region13: #{tpu_custom_call.1} parent=11 // pred_check
        %p316 = pneg %p65
      $region14: #{tpu_custom_call.1} parent=11 // pred_check_branch
        %318 = sbr.rel (%p316) target = $region16
      $region15: #{tpu_custom_call.1} parent=11 // pred_region
        _
      $region16: #{tpu_custom_call.1} parent=11 // pred_fallthru
        _
      // Predicated region
      $region17: #{tpu_custom_call.1} parent=11 // pred_check
        %p319 = pneg %p86
      $region18: #{tpu_custom_call.1} parent=11 // pred_check_branch
        %321 = sbr.rel (%p319) target = $region20
      $region19: #{tpu_custom_call.1} parent=11 // pred_region
        _
      $region20: #{tpu_custom_call.1} parent=11 // pred_fallthru
        _
      // Predicated region
      $region21: #{tpu_custom_call.1} parent=11 // pred_check
        %p322 = pneg %p107
      $region22: #{tpu_custom_call.1} parent=11 // pred_check_branch
        %324 = sbr.rel (%p322) target = $region24
      $region23: #{tpu_custom_call.1} parent=11 // pred_region
        _
      $region24: #{tpu_custom_call.1} parent=11 // pred_fallthru
        _
      // Predicated region
      $region25: #{tpu_custom_call.1} parent=11 // pred_check
        %p325 = pneg %p128
      $region26: #{tpu_custom_call.1} parent=11 // pred_check_branch
        %327 = sbr.rel (%p325) target = $region28
      $region27: #{tpu_custom_call.1} parent=11 // pred_region
        _
      $region28: #{tpu_custom_call.1} parent=11 // pred_fallthru
        _
      // Predicated region
      $region29: #{tpu_custom_call.1} parent=11 // pred_check
        %p328 = pneg %p149
      $region30: #{tpu_custom_call.1} parent=11 // pred_check_branch
        %330 = sbr.rel (%p328) target = $region32
      $region31: #{tpu_custom_call.1} parent=11 // pred_region
        _
      $region32: #{tpu_custom_call.1} parent=11 // pred_fallthru
        _
      // Predicated region
      $region33: #{tpu_custom_call.1} parent=11 // pred_check
        %p331 = pneg %p170
      $region34: #{tpu_custom_call.1} parent=11 // pred_check_branch
        %333 = sbr.rel (%p331) target = $region36
      $region35: #{tpu_custom_call.1} parent=11 // pred_region
        _
      $region36: #{tpu_custom_call.1} parent=11 // pred_fallthru
        _
      // Predicated region
      $region37: #{tpu_custom_call.1} parent=11 // pred_check
        %p334 = pneg %p191
      $region38: #{tpu_custom_call.1} parent=11 // pred_check_branch
        %336 = sbr.rel (%p334) target = $region40
      $region39: #{tpu_custom_call.1} parent=11 // pred_region
        _
      $region40: #{tpu_custom_call.1} parent=11 // pred_fallthru
        _
      // Predicated region
      $region41: #{tpu_custom_call.1} parent=11 // pred_check
        %p337 = pneg %p212
      $region42: #{tpu_custom_call.1} parent=11 // pred_check_branch
        %339 = sbr.rel (%p337) target = $region44
      $region43: #{tpu_custom_call.1} parent=11 // pred_region
        _
      $region44: #{tpu_custom_call.1} parent=11 // pred_fallthru
        _
      // Predicated region
      $region45: #{tpu_custom_call.1} parent=11 // pred_check
        %p340 = pneg %p233
      $region46: #{tpu_custom_call.1} parent=11 // pred_check_branch
        %342 = sbr.rel (%p340) target = $region48
      $region47: #{tpu_custom_call.1} parent=11 // pred_region
        _
      $region48: #{tpu_custom_call.1} parent=11 // pred_fallthru
        _
      // Predicated region
      $region49: #{tpu_custom_call.1} parent=11 // pred_check
        %p343 = pneg %p254
      $region50: #{tpu_custom_call.1} parent=11 // pred_check_branch
        %345 = sbr.rel (%p343) target = $region52
      $region51: #{tpu_custom_call.1} parent=11 // pred_region
        _
      $region52: #{tpu_custom_call.1} parent=11 // pred_fallthru
        _
      // Predicated region
      $region53: #{tpu_custom_call.1} parent=11 // pred_check
        %p346 = pneg %p275
      $region54: #{tpu_custom_call.1} parent=11 // pred_check_branch
        %348 = sbr.rel (%p346) target = $region56
      $region55: #{tpu_custom_call.1} parent=11 // pred_region
        _
      $region56: #{tpu_custom_call.1} parent=11 // pred_fallthru
        _
    $region12: #{tpu_custom_call.1} parent=5 // pred_fallthru
      _
    %p349 = scmp.lt.s32.totalorder %s18, 2
    // Predicated region
    $region57: #{tpu_custom_call.1} parent=5 // pred_check
      %p350 = pneg %p349
    $region58: #{tpu_custom_call.1} parent=5 // pred_check_branch
      %352 = sbr.rel (%p350) target = $region60
    $region59: #{tpu_custom_call.1} parent=5 // pred_region
      // Predicated region
      $region61: #{tpu_custom_call.1} parent=59 // pred_check
        %p353 = pneg %p38
      $region62: #{tpu_custom_call.1} parent=59 // pred_check_branch
        %355 = sbr.rel (%p353) target = $region64
      $region63: #{tpu_custom_call.1} parent=59 // pred_region
        %s356 = smul.u32 4, %s18
        %p357 = scmp.lt.s32.totalorder %s356, 7
        %s358 = scalar_select %p357, %s356, 7
        %s359 = smul.addr %s358, 8
        %s360 = scalar_lea.vmem %s0, %s359
        %s361 = smul.u32 4, %s18
      $region64: #{tpu_custom_call.1} parent=59 // pred_fallthru
        _
    $region60: #{tpu_custom_call.1} parent=5 // pred_fallthru
      _
    %p362 = scmp.le.s32.totalorder 1, %s18
    %p363 = scmp.lt.s32.totalorder %s18, 3
    %p364 = pnand %p362, %p363
    %p365 = pneg %p364
    // Predicated region
    $region65: #{tpu_custom_call.1} parent=5 // pred_check
      _
    $region66: #{tpu_custom_call.1} parent=5 // pred_check_branch
      %367 = sbr.rel (%p364) target = $region68
    $region67: #{tpu_custom_call.1} parent=5 // pred_region
      %s368 = ssub.s32 %s18, 1
      %s369 = smul.u32 4, %s23
      %p370 = scmp.lt.s32.totalorder %s369, 7
      %s371 = scalar_select %p370, %s369, 7
      %s372 = smul.addr %s371, 8
      %s373 = scalar_lea.vmem %s0, %s372
      %p374 = pneg %p44
      %p375 = pneg %p41
      %p376 = pneg %p65
      %p377 = pneg %p62
      %p378 = pneg %p86
      %p379 = pneg %p83
      %p380 = pneg %p107
      %p381 = pneg %p104
      %p382 = pneg %p128
      %p383 = pneg %p125
      %p384 = pneg %p149
      %p385 = pneg %p146
      %p386 = pneg %p170
      %p387 = pneg %p167
      %p388 = pneg %p191
      %p389 = pneg %p188
      %p390 = pneg %p212
      %p391 = pneg %p209
      %p392 = pneg %p233
      %p393 = pneg %p230
      %p394 = pneg %p254
      %p395 = pneg %p251
      %p396 = pneg %p275
      %p397 = pneg %p272
      %p398 = pneg %p301
      %p399 = pneg %p298
      %s400 = smul.u32 4, %s23
      %p401 = scmp.lt.s32.totalorder %s400, 7
      %s402 = scalar_select %p401, %s400, 7
      %s403 = smul.addr %s402, 8
      %s404 = scalar_lea.vmem %s12, %s403
      %s405 = smul.u32 4, %s23
      %p406 = scmp.lt.s32.totalorder %s405, 7
      %s407 = scalar_select %p406, %s405, 7
      %s408 = smul.addr %s407, 8
      %s409 = scalar_lea.vmem %s0, %s408
      %s410 = smul.u32 4, %s23
      %s411 = smul.u32 4, %s23
      %p412 = scmp.lt.s32.totalorder %s411, 7
      %s413 = scalar_select %p412, %s411, 7
      %s414 = smul.addr %s413, 8
      %s415 = scalar_lea.vmem %s12, %s414
      %s416 = smul.u32 4, %s23
      %v417 = vld [vmem:[%s409] sm:$0xff]
      %v418 = vld [vmem:[%s409 + $0x8] sm:$0xff]
      %v419 = vld [vmem:[%s409 + $0x10] sm:$0xff]
      %v420 = vld [vmem:[%s409 + $0x18] sm:$0xff]
      %v421 = vld [vmem:[%s1] sm:$0x1]
      %v422 = vld [vmem:[%s2] sm:$0x1]
      %vm423 = vcmask 261120
      %v424 = vsel %vm423, %v417, 0.0
      %425 = vadd.xlane.f32.xlu0 %v424
      %v426 = vpop.xlane.xlu0 %425
      %v427 = vsel %vm423, %v418, 0.0
      %428 = vadd.xlane.f32.xlu0 %v427
      %v429 = vpop.xlane.xlu0 %428
      %v430 = vsel %vm423, %v419, 0.0
      %431 = vadd.xlane.f32.xlu0 %v430
      %v432 = vpop.xlane.xlu0 %431
      %v433 = vsel %vm423, %v420, 0.0
      %434 = vadd.xlane.f32.xlu0 %v433
      %v435 = vpop.xlane.xlu0 %434
      %v436 = vrcp.pop 32.0
      %v437 = vmul.f32 %v426, %v436
      %v438 = vmul.f32 %v429, %v436
      %v439 = vmul.f32 %v432, %v436
      %v440 = vmul.f32 %v435, %v436
      %v441 = vsub.f32 %v417, %v437
      %v442 = vsub.f32 %v418, %v438
      %v443 = vsub.f32 %v419, %v439
      %v444 = vsub.f32 %v420, %v440
      %v445 = vmul.f32 %v441, %v441
      %v446 = vmul.f32 %v442, %v442
      %v447 = vmul.f32 %v443, %v443
      %v448 = vmul.f32 %v444, %v444
      %v449 = vsel %vm423, %v445, 0.0
      %450 = vadd.xlane.f32.xlu0 %v449
      %v451 = vpop.xlane.xlu0 %450
      %v452 = vsel %vm423, %v446, 0.0
      %453 = vadd.xlane.f32.xlu0 %v452
      %v454 = vpop.xlane.xlu0 %453
      %v455 = vsel %vm423, %v447, 0.0
      %456 = vadd.xlane.f32.xlu0 %v455
      %v457 = vpop.xlane.xlu0 %456
      %v458 = vsel %vm423, %v448, 0.0
      %459 = vadd.xlane.f32.xlu0 %v458
      %v460 = vpop.xlane.xlu0 %459
      %v461 = vmul.f32 %v451, %v436
      %v462 = vmul.f32 %v454, %v436
      %v463 = vmul.f32 %v457, %v436
      %v464 = vmul.f32 %v460, %v436
      %v465 = vadd.f32 %v461, 1e-05
      %v466 = vadd.f32 %v462, 1e-05
      %v467 = vadd.f32 %v463, 1e-05
      %v468 = vadd.f32 %v464, 1e-05
      %v469 = vrsqrt.pop %v465
      %v470 = vrsqrt.pop %v466
      %v471 = vrsqrt.pop %v467
      %v472 = vrsqrt.pop %v468
      %v473 = vmul.f32 %v441, %v469
      %v474 = vmul.f32 %v442, %v470
      %v475 = vmul.f32 %v443, %v471
      %v476 = vmul.f32 %v444, %v472
      %v478 = vlaneseq
      %v479 = vshrl.u32 %v478, 7
      %v480 = vsub.s32 0, %v479
      %v481 = vrot.slane %v421, %v480
      %v483 = vmul.f32 %v473, %v481
      %v484 = vmul.f32 %v474, %v481
      %v485 = vmul.f32 %v475, %v481
      %v486 = vmul.f32 %v476, %v481
      %v488 = vlaneseq
      %v489 = vshrl.u32 %v488, 7
      %v490 = vsub.s32 0, %v489
      %v491 = vrot.slane %v422, %v490
      %v493 = vadd.f32 %v483, %v491
      %v494 = vadd.f32 %v484, %v491
      %v495 = vadd.f32 %v485, %v491
      %v496 = vadd.f32 %v486, %v491
      %v497 = vld [vmem:[%s3] sm:$0xff]
      %v498 = vld [vmem:[%s3 + $0x8] sm:$0xff]
      %v499 = vld [vmem:[%s3 + $0x10] sm:$0xff]
      %v500 = vld [vmem:[%s3 + $0x18] sm:$0xff]
      %v502 = vsel %vm423, %v493, 0
      %v505 = vsel %vm423, %v494, 0
      %v508 = vsel %vm423, %v495, 0
      %v511 = vsel %vm423, %v496, 0
      %513 = vmatprep.subr.mxu0 0.0
      %514 = vmatpush1.msra.mxu0 0.0
      %515 = vmatprep.subr.mxu0 0.0
      %516 = vmatpush1.msra.mxu0 0.0
      %517 = vmatprep.subr.mxu0 0.0
      %518 = vmatpush1.msra.mxu0 0.0
      %519 = vmatprep.subr.mxu0 0.0
      %520 = vmatpush1.msra.mxu0 0.0
      %521 = vmatprep.subr.mxu0 0.0
      %522 = vmatpush1.msra.mxu0 0.0
      %523 = vmatprep.subr.mxu0 0.0
      %524 = vmatpush1.msra.mxu0 0.0
      %525 = vmatprep.subr.mxu0 0.0
      %526 = vmatpush1.msra.mxu0 0.0
      %527 = vmatprep.subr.mxu0 0.0
      %528 = vmatpush1.msra.mxu0 0.0
      %529 = vmatprep.subr.mxu0 0.0
      %530 = vmatpush1.msra.mxu0 0.0
      %531 = vmatprep.subr.mxu0 0.0
      %532 = vmatpush1.msra.mxu0 0.0
      %533 = vmatprep.subr.mxu0 0.0
      %534 = vmatpush1.msra.mxu0 0.0
      %535 = vmatprep.subr.mxu0 0.0
      %536 = vmatpush1.msra.mxu0 0.0
      %537 = vmatprep.subr.mxu0 0.0
      %538 = vmatpush1.msra.mxu0 %v500
      %539 = vmatprep.subr.mxu0 0.0
      %540 = vmatpush1.msra.mxu0 %v499
      %541 = vmatprep.subr.mxu0 0.0
      %542 = vmatpush1.msra.mxu0 %v498
      %543 = vmatprep.subr.mxu0 0.0
      %544 = vmatpush1.msra.mxu0 %v497
      %545 = vmatprep.subr.mxu0 0.0
      %546 = vmatpush2.msra.mxu0 0.0
      %547 = vmatprep.subr.mxu0 0.0
      %548 = vmatpush2.msra.mxu0 0.0
      %549 = vmatprep.subr.mxu0 0.0
      %550 = vmatpush2.msra.mxu0 0.0
      %551 = vmatprep.subr.mxu0 0.0
      %552 = vmatpush2.msra.mxu0 0.0
      %553 = vmatprep.subr.mxu0 0.0
      %554 = vmatpush2.msra.mxu0 0.0
      %555 = vmatprep.subr.mxu0 0.0
      %556 = vmatpush2.msra.mxu0 0.0
      %557 = vmatprep.subr.mxu0 0.0
      %558 = vmatpush2.msra.mxu0 0.0
      %559 = vmatprep.subr.mxu0 0.0
      %560 = vmatpush2.msra.mxu0 0.0
      %561 = vmatprep.subr.mxu0 0.0
      %562 = vmatpush2.msra.mxu0 0.0
      %563 = vmatprep.subr.mxu0 0.0
      %564 = vmatpush2.msra.mxu0 0.0
      %565 = vmatprep.subr.mxu0 0.0
      %566 = vmatpush2.msra.mxu0 0.0
      %567 = vmatprep.subr.mxu0 0.0
      %568 = vmatpush2.msra.mxu0 0.0
      %569 = vmatprep.subr.mxu0 0.0
      %570 = vmatpush2.msra.mxu0 0.0
      %571 = vmatprep.subr.mxu0 0.0
      %572 = vmatpush2.msra.mxu0 0.0
      %573 = vmatprep.subr.mxu0 0.0
      %574 = vmatpush2.msra.mxu0 0.0
      %575 = vmatprep.subr.mxu0 0.0
      %576 = vmatpush2.msra.mxu0 0.0
      %577 = vmatprep.mubr.f32.mxu0 0.0
      %578 = vmatmul.mubr.f32.gmra.mxu0 %v502
      %v579 = vpop.f32.mrf.mxu0
      %v580 = vadd.f32 0.0, %v579
      %v581 = vpop.f32.mrf.mxu0
      %582 = vmatprep.mubr.f32.mxu0 0.0
      %583 = vmatmul.mubr.f32.gmra.mxu0 %v505
      %v584 = vpop.f32.mrf.mxu0
      %v585 = vadd.f32 0.0, %v584
      %v586 = vpop.f32.mrf.mxu0
      %587 = vmatprep.mubr.f32.mxu0 0.0
      %588 = vmatmul.mubr.f32.gmra.mxu0 %v508
      %v589 = vpop.f32.mrf.mxu0
      %v590 = vadd.f32 0.0, %v589
      %v591 = vpop.f32.mrf.mxu0
      %592 = vmatprep.mubr.f32.mxu0 0.0
      %593 = vmatmul.mubr.f32.gmra.mxu0 %v511
      %v594 = vpop.f32.mrf.mxu0
      %v595 = vadd.f32 0.0, %v594
      %v596 = vpop.f32.mrf.mxu0
      %597 = vdwg.mxu0
      %v598 = vld [vmem:[%s4] sm:$0xff]
      %v599 = vld [vmem:[%s4 + $0x8] sm:$0xff]
      %v600 = vld [vmem:[%s4 + $0x10] sm:$0xff]
      %v601 = vld [vmem:[%s4 + $0x18] sm:$0xff]
      %603 = vrot.lane.b32.xlu0 %v580, 96
      %v604 = vpop.permute.xlu0 %603
      %vm605 = vcmask 130048
      %v606 = vsel %vm605, %v580, 0
      %v608 = vsel %vm605, %v604, 0
      %610 = vmatprep.subr.mxu0 0.0
      %611 = vmatpush1.xpose.msra.mxu0 0.0
      %612 = vmatprep.subr.mxu0 0.0
      %613 = vmatpush1.xpose.msra.mxu0 0.0
      %614 = vmatprep.subr.mxu0 0.0
      %615 = vmatpush1.xpose.msra.mxu0 0.0
      %616 = vmatprep.subr.mxu0 0.0
      %617 = vmatpush1.xpose.msra.mxu0 0.0
      %618 = vmatprep.subr.mxu0 0.0
      %619 = vmatpush1.xpose.msra.mxu0 0.0
      %620 = vmatprep.subr.mxu0 0.0
      %621 = vmatpush1.xpose.msra.mxu0 0.0
      %622 = vmatprep.subr.mxu0 0.0
      %623 = vmatpush1.xpose.msra.mxu0 0.0
      %624 = vmatprep.subr.mxu0 0.0
      %625 = vmatpush1.xpose.msra.mxu0 0.0
      %626 = vmatprep.subr.mxu0 0.0
      %627 = vmatpush1.xpose.msra.mxu0 0.0
      %628 = vmatprep.subr.mxu0 0.0
      %629 = vmatpush1.xpose.msra.mxu0 0.0
      %630 = vmatprep.subr.mxu0 0.0
      %631 = vmatpush1.xpose.msra.mxu0 0.0
      %632 = vmatprep.subr.mxu0 0.0
      %633 = vmatpush1.xpose.msra.mxu0 0.0
      %634 = vmatprep.subr.mxu0 0.0
      %635 = vmatpush1.xpose.msra.mxu0 0.0
      %636 = vmatprep.subr.mxu0 0.0
      %637 = vmatpush1.xpose.msra.mxu0 0.0
      %638 = vmatprep.subr.mxu0 0.0
      %639 = vmatpush1.xpose.msra.mxu0 0.0
      %640 = vmatprep.subr.mxu0 0.0
      %641 = vmatpush1.xpose.msra.mxu0 %v608
      %642 = vmatprep.subr.mxu0 0.0
      %643 = vmatpush2.xpose.msra.mxu0 0.0
      %644 = vmatprep.subr.mxu0 0.0
      %645 = vmatpush2.xpose.msra.mxu0 0.0
      %646 = vmatprep.subr.mxu0 0.0
      %647 = vmatpush2.xpose.msra.mxu0 0.0
      %648 = vmatprep.subr.mxu0 0.0
      %649 = vmatpush2.xpose.msra.mxu0 0.0
      %650 = vmatprep.subr.mxu0 0.0
      %651 = vmatpush2.xpose.msra.mxu0 0.0
      %652 = vmatprep.subr.mxu0 0.0
      %653 = vmatpush2.xpose.msra.mxu0 0.0
      %654 = vmatprep.subr.mxu0 0.0
      %655 = vmatpush2.xpose.msra.mxu0 0.0
      %656 = vmatprep.subr.mxu0 0.0
      %657 = vmatpush2.xpose.msra.mxu0 0.0
      %658 = vmatprep.subr.mxu0 0.0
      %659 = vmatpush2.xpose.msra.mxu0 0.0
      %660 = vmatprep.subr.mxu0 0.0
      %661 = vmatpush2.xpose.msra.mxu0 0.0
      %662 = vmatprep.subr.mxu0 0.0
      %663 = vmatpush2.xpose.msra.mxu0 0.0
      %664 = vmatprep.subr.mxu0 0.0
      %665 = vmatpush2.xpose.msra.mxu0 0.0
      %666 = vmatprep.subr.mxu0 0.0
      %667 = vmatpush2.xpose.msra.mxu0 0.0
      %668 = vmatprep.subr.mxu0 0.0
      %669 = vmatpush2.xpose.msra.mxu0 0.0
      %670 = vmatprep.subr.mxu0 0.0
      %671 = vmatpush2.xpose.msra.mxu0 0.0
      %672 = vmatprep.subr.mxu0 0.0
      %673 = vmatpush2.xpose.msra.mxu0 0.0
      %674 = vmatprep.mubr.f32.mxu0 0.0
      %675 = vmatmul.mubr.f32.gmra.mxu0 %v606
      %v676 = vpop.f32.mrf.mxu0
      %v677 = vadd.f32 0.0, %v676
      %v678 = vpop.f32.mrf.mxu0
      %679 = vdwg.mxu0
      %681 = vrot.lane.b32.xlu0 %v585, 96
      %v682 = vpop.permute.xlu0 %681
      %v683 = vsel %vm605, %v585, 0
      %v685 = vsel %vm605, %v682, 0
      %687 = vmatprep.subr.mxu0 0.0
      %688 = vmatpush1.xpose.msra.mxu0 0.0
      %689 = vmatprep.subr.mxu0 0.0
      %690 = vmatpush1.xpose.msra.mxu0 0.0
      %691 = vmatprep.subr.mxu0 0.0
      %692 = vmatpush1.xpose.msra.mxu0 0.0
      %693 = vmatprep.subr.mxu0 0.0
      %694 = vmatpush1.xpose.msra.mxu0 0.0
      %695 = vmatprep.subr.mxu0 0.0
      %696 = vmatpush1.xpose.msra.mxu0 0.0
      %697 = vmatprep.subr.mxu0 0.0
      %698 = vmatpush1.xpose.msra.mxu0 0.0
      %699 = vmatprep.subr.mxu0 0.0
      %700 = vmatpush1.xpose.msra.mxu0 0.0
      %701 = vmatprep.subr.mxu0 0.0
      %702 = vmatpush1.xpose.msra.mxu0 0.0
      %703 = vmatprep.subr.mxu0 0.0
      %704 = vmatpush1.xpose.msra.mxu0 0.0
      %705 = vmatprep.subr.mxu0 0.0
      %706 = vmatpush1.xpose.msra.mxu0 0.0
      %707 = vmatprep.subr.mxu0 0.0
      %708 = vmatpush1.xpose.msra.mxu0 0.0
      %709 = vmatprep.subr.mxu0 0.0
      %710 = vmatpush1.xpose.msra.mxu0 0.0
      %711 = vmatprep.subr.mxu0 0.0
      %712 = vmatpush1.xpose.msra.mxu0 0.0
      %713 = vmatprep.subr.mxu0 0.0
      %714 = vmatpush1.xpose.msra.mxu0 0.0
      %715 = vmatprep.subr.mxu0 0.0
      %716 = vmatpush1.xpose.msra.mxu0 0.0
      %717 = vmatprep.subr.mxu0 0.0
      %718 = vmatpush1.xpose.msra.mxu0 %v685
      %719 = vmatprep.subr.mxu0 0.0
      %720 = vmatpush2.xpose.msra.mxu0 0.0
      %721 = vmatprep.subr.mxu0 0.0
      %722 = vmatpush2.xpose.msra.mxu0 0.0
      %723 = vmatprep.subr.mxu0 0.0
      %724 = vmatpush2.xpose.msra.mxu0 0.0
      %725 = vmatprep.subr.mxu0 0.0
      %726 = vmatpush2.xpose.msra.mxu0 0.0
      %727 = vmatprep.subr.mxu0 0.0
      %728 = vmatpush2.xpose.msra.mxu0 0.0
      %729 = vmatprep.subr.mxu0 0.0
      %730 = vmatpush2.xpose.msra.mxu0 0.0
      %731 = vmatprep.subr.mxu0 0.0
      %732 = vmatpush2.xpose.msra.mxu0 0.0
      %733 = vmatprep.subr.mxu0 0.0
      %734 = vmatpush2.xpose.msra.mxu0 0.0
      %735 = vmatprep.subr.mxu0 0.0
      %736 = vmatpush2.xpose.msra.mxu0 0.0
      %737 = vmatprep.subr.mxu0 0.0
      %738 = vmatpush2.xpose.msra.mxu0 0.0
      %739 = vmatprep.subr.mxu0 0.0
      %740 = vmatpush2.xpose.msra.mxu0 0.0
      %741 = vmatprep.subr.mxu0 0.0
      %742 = vmatpush2.xpose.msra.mxu0 0.0
      %743 = vmatprep.subr.mxu0 0.0
      %744 = vmatpush2.xpose.msra.mxu0 0.0
      %745 = vmatprep.subr.mxu0 0.0
      %746 = vmatpush2.xpose.msra.mxu0 0.0
      %747 = vmatprep.subr.mxu0 0.0
      %748 = vmatpush2.xpose.msra.mxu0 0.0
      %749 = vmatprep.subr.mxu0 0.0
      %750 = vmatpush2.xpose.msra.mxu0 0.0
      %751 = vmatprep.mubr.f32.mxu0 0.0
      %752 = vmatmul.mubr.f32.gmra.mxu0 %v683
      %v753 = vpop.f32.mrf.mxu0
      %v754 = vadd.f32 0.0, %v753
      %v755 = vpop.f32.mrf.mxu0
      %756 = vdwg.mxu0
      %758 = vrot.lane.b32.xlu0 %v590, 96
      %v759 = vpop.permute.xlu0 %758
      %v760 = vsel %vm605, %v590, 0
      %v762 = vsel %vm605, %v759, 0
      %764 = vmatprep.subr.mxu0 0.0
      %765 = vmatpush1.xpose.msra.mxu0 0.0
      %766 = vmatprep.subr.mxu0 0.0
      %767 = vmatpush1.xpose.msra.mxu0 0.0
      %768 = vmatprep.subr.mxu0 0.0
      %769 = vmatpush1.xpose.msra.mxu0 0.0
      %770 = vmatprep.subr.mxu0 0.0
      %771 = vmatpush1.xpose.msra.mxu0 0.0
      %772 = vmatprep.subr.mxu0 0.0
      %773 = vmatpush1.xpose.msra.mxu0 0.0
      %774 = vmatprep.subr.mxu0 0.0
      %775 = vmatpush1.xpose.msra.mxu0 0.0
      %776 = vmatprep.subr.mxu0 0.0
      %777 = vmatpush1.xpose.msra.mxu0 0.0
      %778 = vmatprep.subr.mxu0 0.0
      %779 = vmatpush1.xpose.msra.mxu0 0.0
      %780 = vmatprep.subr.mxu0 0.0
      %781 = vmatpush1.xpose.msra.mxu0 0.0
      %782 = vmatprep.subr.mxu0 0.0
      %783 = vmatpush1.xpose.msra.mxu0 0.0
      %784 = vmatprep.subr.mxu0 0.0
      %785 = vmatpush1.xpose.msra.mxu0 0.0
      %786 = vmatprep.subr.mxu0 0.0
      %787 = vmatpush1.xpose.msra.mxu0 0.0
      %788 = vmatprep.subr.mxu0 0.0
      %789 = vmatpush1.xpose.msra.mxu0 0.0
      %790 = vmatprep.subr.mxu0 0.0
      %791 = vmatpush1.xpose.msra.mxu0 0.0
      %792 = vmatprep.subr.mxu0 0.0
      %793 = vmatpush1.xpose.msra.mxu0 0.0
      %794 = vmatprep.subr.mxu0 0.0
      %795 = vmatpush1.xpose.msra.mxu0 %v762
      %796 = vmatprep.subr.mxu0 0.0
      %797 = vmatpush2.xpose.msra.mxu0 0.0
      %798 = vmatprep.subr.mxu0 0.0
      %799 = vmatpush2.xpose.msra.mxu0 0.0
      %800 = vmatprep.subr.mxu0 0.0
      %801 = vmatpush2.xpose.msra.mxu0 0.0
      %802 = vmatprep.subr.mxu0 0.0
      %803 = vmatpush2.xpose.msra.mxu0 0.0
      %804 = vmatprep.subr.mxu0 0.0
      %805 = vmatpush2.xpose.msra.mxu0 0.0
      %806 = vmatprep.subr.mxu0 0.0
      %807 = vmatpush2.xpose.msra.mxu0 0.0
      %808 = vmatprep.subr.mxu0 0.0
      %809 = vmatpush2.xpose.msra.mxu0 0.0
      %810 = vmatprep.subr.mxu0 0.0
      %811 = vmatpush2.xpose.msra.mxu0 0.0
      %812 = vmatprep.subr.mxu0 0.0
      %813 = vmatpush2.xpose.msra.mxu0 0.0
      %814 = vmatprep.subr.mxu0 0.0
      %815 = vmatpush2.xpose.msra.mxu0 0.0
      %816 = vmatprep.subr.mxu0 0.0
      %817 = vmatpush2.xpose.msra.mxu0 0.0
      %818 = vmatprep.subr.mxu0 0.0
      %819 = vmatpush2.xpose.msra.mxu0 0.0
      %820 = vmatprep.subr.mxu0 0.0
      %821 = vmatpush2.xpose.msra.mxu0 0.0
      %822 = vmatprep.subr.mxu0 0.0
      %823 = vmatpush2.xpose.msra.mxu0 0.0
      %824 = vmatprep.subr.mxu0 0.0
      %825 = vmatpush2.xpose.msra.mxu0 0.0
      %826 = vmatprep.subr.mxu0 0.0
      %827 = vmatpush2.xpose.msra.mxu0 0.0
      %828 = vmatprep.mubr.f32.mxu0 0.0
      %829 = vmatmul.mubr.f32.gmra.mxu0 %v760
      %v830 = vpop.f32.mrf.mxu0
      %v831 = vadd.f32 0.0, %v830
      %v832 = vpop.f32.mrf.mxu0
      %833 = vdwg.mxu0
      %835 = vrot.lane.b32.xlu0 %v595, 96
      %v836 = vpop.permute.xlu0 %835
      %v837 = vsel %vm605, %v595, 0
      %v839 = vsel %vm605, %v836, 0
      %841 = vmatprep.subr.mxu0 0.0
      %842 = vmatpush1.xpose.msra.mxu0 0.0
      %843 = vmatprep.subr.mxu0 0.0
      %844 = vmatpush1.xpose.msra.mxu0 0.0
      %845 = vmatprep.subr.mxu0 0.0
      %846 = vmatpush1.xpose.msra.mxu0 0.0
      %847 = vmatprep.subr.mxu0 0.0
      %848 = vmatpush1.xpose.msra.mxu0 0.0
      %849 = vmatprep.subr.mxu0 0.0
      %850 = vmatpush1.xpose.msra.mxu0 0.0
      %851 = vmatprep.subr.mxu0 0.0
      %852 = vmatpush1.xpose.msra.mxu0 0.0
      %853 = vmatprep.subr.mxu0 0.0
      %854 = vmatpush1.xpose.msra.mxu0 0.0
      %855 = vmatprep.subr.mxu0 0.0
      %856 = vmatpush1.xpose.msra.mxu0 0.0
      %857 = vmatprep.subr.mxu0 0.0
      %858 = vmatpush1.xpose.msra.mxu0 0.0
      %859 = vmatprep.subr.mxu0 0.0
      %860 = vmatpush1.xpose.msra.mxu0 0.0
      %861 = vmatprep.subr.mxu0 0.0
      %862 = vmatpush1.xpose.msra.mxu0 0.0
      %863 = vmatprep.subr.mxu0 0.0
      %864 = vmatpush1.xpose.msra.mxu0 0.0
      %865 = vmatprep.subr.mxu0 0.0
      %866 = vmatpush1.xpose.msra.mxu0 0.0
      %867 = vmatprep.subr.mxu0 0.0
      %868 = vmatpush1.xpose.msra.mxu0 0.0
      %869 = vmatprep.subr.mxu0 0.0
      %870 = vmatpush1.xpose.msra.mxu0 0.0
      %871 = vmatprep.subr.mxu0 0.0
      %872 = vmatpush1.xpose.msra.mxu0 %v839
      %873 = vmatprep.subr.mxu0 0.0
      %874 = vmatpush2.xpose.msra.mxu0 0.0
      %875 = vmatprep.subr.mxu0 0.0
      %876 = vmatpush2.xpose.msra.mxu0 0.0
      %877 = vmatprep.subr.mxu0 0.0
      %878 = vmatpush2.xpose.msra.mxu0 0.0
      %879 = vmatprep.subr.mxu0 0.0
      %880 = vmatpush2.xpose.msra.mxu0 0.0
      %881 = vmatprep.subr.mxu0 0.0
      %882 = vmatpush2.xpose.msra.mxu0 0.0
      %883 = vmatprep.subr.mxu0 0.0
      %884 = vmatpush2.xpose.msra.mxu0 0.0
      %885 = vmatprep.subr.mxu0 0.0
      %886 = vmatpush2.xpose.msra.mxu0 0.0
      %887 = vmatprep.subr.mxu0 0.0
      %888 = vmatpush2.xpose.msra.mxu0 0.0
      %889 = vmatprep.subr.mxu0 0.0
      %890 = vmatpush2.xpose.msra.mxu0 0.0
      %891 = vmatprep.subr.mxu0 0.0
      %892 = vmatpush2.xpose.msra.mxu0 0.0
      %893 = vmatprep.subr.mxu0 0.0
      %894 = vmatpush2.xpose.msra.mxu0 0.0
      %895 = vmatprep.subr.mxu0 0.0
      %896 = vmatpush2.xpose.msra.mxu0 0.0
      %897 = vmatprep.subr.mxu0 0.0
      %898 = vmatpush2.xpose.msra.mxu0 0.0
      %899 = vmatprep.subr.mxu0 0.0
      %900 = vmatpush2.xpose.msra.mxu0 0.0
      %901 = vmatprep.subr.mxu0 0.0
      %902 = vmatpush2.xpose.msra.mxu0 0.0
      %903 = vmatprep.subr.mxu0 0.0
      %904 = vmatpush2.xpose.msra.mxu0 0.0
      %905 = vmatprep.mubr.f32.mxu0 0.0
      %906 = vmatmul.mubr.f32.gmra.mxu0 %v837
      %v907 = vpop.f32.mrf.mxu0
      %v908 = vadd.f32 0.0, %v907
      %v909 = vpop.f32.mrf.mxu0
      %910 = vdwg.mxu0
      %v911 = vmul.f32 %v677, 0.25
      %v912 = vmul.f32 %v754, 0.25
      %v913 = vmul.f32 %v831, 0.25
      %v914 = vmul.f32 %v908, 0.25
      %vm915 = vcmask 64512
      %v916 = vsel %vm915, %v911, -inf
      %917 = vmax.xlane.f32.xlu0 %v916
      %v918 = vpop.xlane.xlu0 %917
      %v919 = vsel %vm915, %v912, -inf
      %920 = vmax.xlane.f32.xlu0 %v919
      %v921 = vpop.xlane.xlu0 %920
      %v922 = vsel %vm915, %v913, -inf
      %923 = vmax.xlane.f32.xlu0 %v922
      %v924 = vpop.xlane.xlu0 %923
      %v925 = vsel %vm915, %v914, -inf
      %926 = vmax.xlane.f32.xlu0 %v925
      %v927 = vpop.xlane.xlu0 %926
      %v928 = vsub.f32 %v911, %v918
      %v929 = vsub.f32 %v912, %v921
      %v930 = vsub.f32 %v913, %v924
      %v931 = vsub.f32 %v914, %v927
      %v932 = vmul.f32 %v928, 1.442695
      %v933 = vpow.pop %v932
      %v934 = vmul.f32 %v929, 1.442695
      %v935 = vpow.pop %v934
      %v936 = vmul.f32 %v930, 1.442695
      %v937 = vpow.pop %v936
      %v938 = vmul.f32 %v931, 1.442695
      %v939 = vpow.pop %v938
      %v940 = vsel %vm915, %v933, 0.0
      %941 = vadd.xlane.f32.xlu0 %v940
      %v942 = vpop.xlane.xlu0 %941
      %v943 = vsel %vm915, %v935, 0.0
      %944 = vadd.xlane.f32.xlu0 %v943
      %v945 = vpop.xlane.xlu0 %944
      %v946 = vsel %vm915, %v937, 0.0
      %947 = vadd.xlane.f32.xlu0 %v946
      %v948 = vpop.xlane.xlu0 %947
      %v949 = vsel %vm915, %v939, 0.0
      %950 = vadd.xlane.f32.xlu0 %v949
      %v951 = vpop.xlane.xlu0 %950
      %v952 = vrcp.pop %v942
      %v953 = vrcp.pop %v945
      %v954 = vrcp.pop %v948
      %v955 = vrcp.pop %v951
      %v956 = vmul.f32 %v933, %v952
      %v957 = vmul.f32 %v935, %v953
      %v958 = vmul.f32 %v937, %v954
      %v959 = vmul.f32 %v939, %v955
      %960 = vrot.lane.b32.xlu0 %v580, 64
      %v961 = vpop.permute.xlu0 %960
      %v964 = vsel %vm915, %v956, 0
      %966 = vmatprep.subr.mxu0 0.0
      %967 = vmatpush1.msra.mxu0 0.0
      %968 = vmatprep.subr.mxu0 0.0
      %969 = vmatpush1.msra.mxu0 0.0
      %970 = vmatprep.subr.mxu0 0.0
      %971 = vmatpush1.msra.mxu0 0.0
      %972 = vmatprep.subr.mxu0 0.0
      %973 = vmatpush1.msra.mxu0 0.0
      %974 = vmatprep.subr.mxu0 0.0
      %975 = vmatpush1.msra.mxu0 0.0
      %976 = vmatprep.subr.mxu0 0.0
      %977 = vmatpush1.msra.mxu0 0.0
      %978 = vmatprep.subr.mxu0 0.0
      %979 = vmatpush1.msra.mxu0 0.0
      %980 = vmatprep.subr.mxu0 0.0
      %981 = vmatpush1.msra.mxu0 0.0
      %982 = vmatprep.subr.mxu0 0.0
      %983 = vmatpush1.msra.mxu0 0.0
      %984 = vmatprep.subr.mxu0 0.0
      %985 = vmatpush1.msra.mxu0 0.0
      %986 = vmatprep.subr.mxu0 0.0
      %987 = vmatpush1.msra.mxu0 0.0
      %988 = vmatprep.subr.mxu0 0.0
      %989 = vmatpush1.msra.mxu0 0.0
      %990 = vmatprep.subr.mxu0 0.0
      %991 = vmatpush1.msra.mxu0 0.0
      %992 = vmatprep.subr.mxu0 0.0
      %993 = vmatpush1.msra.mxu0 0.0
      %994 = vmatprep.subr.mxu0 0.0
      %995 = vmatpush1.msra.mxu0 0.0
      %996 = vmatprep.subr.mxu0 0.0
      %997 = vmatpush1.msra.mxu0 %v961
      %998 = vmatprep.subr.mxu0 0.0
      %999 = vmatpush2.msra.mxu0 0.0
      %1000 = vmatprep.subr.mxu0 0.0
      %1001 = vmatpush2.msra.mxu0 0.0
      %1002 = vmatprep.subr.mxu0 0.0
      %1003 = vmatpush2.msra.mxu0 0.0
      %1004 = vmatprep.subr.mxu0 0.0
      %1005 = vmatpush2.msra.mxu0 0.0
      %1006 = vmatprep.subr.mxu0 0.0
      %1007 = vmatpush2.msra.mxu0 0.0
      %1008 = vmatprep.subr.mxu0 0.0
      %1009 = vmatpush2.msra.mxu0 0.0
      %1010 = vmatprep.subr.mxu0 0.0
      %1011 = vmatpush2.msra.mxu0 0.0
      %1012 = vmatprep.subr.mxu0 0.0
      %1013 = vmatpush2.msra.mxu0 0.0
      %1014 = vmatprep.subr.mxu0 0.0
      %1015 = vmatpush2.msra.mxu0 0.0
      %1016 = vmatprep.subr.mxu0 0.0
      %1017 = vmatpush2.msra.mxu0 0.0
      %1018 = vmatprep.subr.mxu0 0.0
      %1019 = vmatpush2.msra.mxu0 0.0
      %1020 = vmatprep.subr.mxu0 0.0
      %1021 = vmatpush2.msra.mxu0 0.0
      %1022 = vmatprep.subr.mxu0 0.0
      %1023 = vmatpush2.msra.mxu0 0.0
      %1024 = vmatprep.subr.mxu0 0.0
      %1025 = vmatpush2.msra.mxu0 0.0
      %1026 = vmatprep.subr.mxu0 0.0
      %1027 = vmatpush2.msra.mxu0 0.0
      %1028 = vmatprep.subr.mxu0 0.0
      %1029 = vmatpush2.msra.mxu0 0.0
      %1030 = vmatprep.mubr.f32.mxu0 0.0
      %1031 = vmatmul.mubr.f32.gmra.mxu0 %v964
      %v1032 = vpop.f32.mrf.mxu0
      %v1033 = vadd.f32 0.0, %v1032
      %v1034 = vpop.f32.mrf.mxu0
      %1035 = vdwg.mxu0
      %1036 = vrot.lane.b32.xlu0 %v585, 64
      %v1037 = vpop.permute.xlu0 %1036
      %v1040 = vsel %vm915, %v957, 0
      %1042 = vmatprep.subr.mxu0 0.0
      %1043 = vmatpush1.msra.mxu0 0.0
      %1044 = vmatprep.subr.mxu0 0.0
      %1045 = vmatpush1.msra.mxu0 0.0
      %1046 = vmatprep.subr.mxu0 0.0
      %1047 = vmatpush1.msra.mxu0 0.0
      %1048 = vmatprep.subr.mxu0 0.0
      %1049 = vmatpush1.msra.mxu0 0.0
      %1050 = vmatprep.subr.mxu0 0.0
      %1051 = vmatpush1.msra.mxu0 0.0
      %1052 = vmatprep.subr.mxu0 0.0
      %1053 = vmatpush1.msra.mxu0 0.0
      %1054 = vmatprep.subr.mxu0 0.0
      %1055 = vmatpush1.msra.mxu0 0.0
      %1056 = vmatprep.subr.mxu0 0.0
      %1057 = vmatpush1.msra.mxu0 0.0
      %1058 = vmatprep.subr.mxu0 0.0
      %1059 = vmatpush1.msra.mxu0 0.0
      %1060 = vmatprep.subr.mxu0 0.0
      %1061 = vmatpush1.msra.mxu0 0.0
      %1062 = vmatprep.subr.mxu0 0.0
      %1063 = vmatpush1.msra.mxu0 0.0
      %1064 = vmatprep.subr.mxu0 0.0
      %1065 = vmatpush1.msra.mxu0 0.0
      %1066 = vmatprep.subr.mxu0 0.0
      %1067 = vmatpush1.msra.mxu0 0.0
      %1068 = vmatprep.subr.mxu0 0.0
      %1069 = vmatpush1.msra.mxu0 0.0
      %1070 = vmatprep.subr.mxu0 0.0
      %1071 = vmatpush1.msra.mxu0 0.0
      %1072 = vmatprep.subr.mxu0 0.0
      %1073 = vmatpush1.msra.mxu0 %v1037
      %1074 = vmatprep.subr.mxu0 0.0
      %1075 = vmatpush2.msra.mxu0 0.0
      %1076 = vmatprep.subr.mxu0 0.0
      %1077 = vmatpush2.msra.mxu0 0.0
      %1078 = vmatprep.subr.mxu0 0.0
      %1079 = vmatpush2.msra.mxu0 0.0
      %1080 = vmatprep.subr.mxu0 0.0
      %1081 = vmatpush2.msra.mxu0 0.0
      %1082 = vmatprep.subr.mxu0 0.0
      %1083 = vmatpush2.msra.mxu0 0.0
      %1084 = vmatprep.subr.mxu0 0.0
      %1085 = vmatpush2.msra.mxu0 0.0
      %1086 = vmatprep.subr.mxu0 0.0
      %1087 = vmatpush2.msra.mxu0 0.0
      %1088 = vmatprep.subr.mxu0 0.0
      %1089 = vmatpush2.msra.mxu0 0.0
      %1090 = vmatprep.subr.mxu0 0.0
      %1091 = vmatpush2.msra.mxu0 0.0
      %1092 = vmatprep.subr.mxu0 0.0
      %1093 = vmatpush2.msra.mxu0 0.0
      %1094 = vmatprep.subr.mxu0 0.0
      %1095 = vmatpush2.msra.mxu0 0.0
      %1096 = vmatprep.subr.mxu0 0.0
      %1097 = vmatpush2.msra.mxu0 0.0
      %1098 = vmatprep.subr.mxu0 0.0
      %1099 = vmatpush2.msra.mxu0 0.0
      %1100 = vmatprep.subr.mxu0 0.0
      %1101 = vmatpush2.msra.mxu0 0.0
      %1102 = vmatprep.subr.mxu0 0.0
      %1103 = vmatpush2.msra.mxu0 0.0
      %1104 = vmatprep.subr.mxu0 0.0
      %1105 = vmatpush2.msra.mxu0 0.0
      %1106 = vmatprep.mubr.f32.mxu0 0.0
      %1107 = vmatmul.mubr.f32.gmra.mxu0 %v1040
      %v1108 = vpop.f32.mrf.mxu0
      %v1109 = vadd.f32 0.0, %v1108
      %v1110 = vpop.f32.mrf.mxu0
      %1111 = vdwg.mxu0
      %1112 = vrot.lane.b32.xlu0 %v590, 64
      %v1113 = vpop.permute.xlu0 %1112
      %v1116 = vsel %vm915, %v958, 0
      %1118 = vmatprep.subr.mxu0 0.0
      %1119 = vmatpush1.msra.mxu0 0.0
      %1120 = vmatprep.subr.mxu0 0.0
      %1121 = vmatpush1.msra.mxu0 0.0
      %1122 = vmatprep.subr.mxu0 0.0
      %1123 = vmatpush1.msra.mxu0 0.0
      %1124 = vmatprep.subr.mxu0 0.0
      %1125 = vmatpush1.msra.mxu0 0.0
      %1126 = vmatprep.subr.mxu0 0.0
      %1127 = vmatpush1.msra.mxu0 0.0
      %1128 = vmatprep.subr.mxu0 0.0
      %1129 = vmatpush1.msra.mxu0 0.0
      %1130 = vmatprep.subr.mxu0 0.0
      %1131 = vmatpush1.msra.mxu0 0.0
      %1132 = vmatprep.subr.mxu0 0.0
      %1133 = vmatpush1.msra.mxu0 0.0
      %1134 = vmatprep.subr.mxu0 0.0
      %1135 = vmatpush1.msra.mxu0 0.0
      %1136 = vmatprep.subr.mxu0 0.0
      %1137 = vmatpush1.msra.mxu0 0.0
      %1138 = vmatprep.subr.mxu0 0.0
      %1139 = vmatpush1.msra.mxu0 0.0
      %1140 = vmatprep.subr.mxu0 0.0
      %1141 = vmatpush1.msra.mxu0 0.0
      %1142 = vmatprep.subr.mxu0 0.0
      %1143 = vmatpush1.msra.mxu0 0.0
      %1144 = vmatprep.subr.mxu0 0.0
      %1145 = vmatpush1.msra.mxu0 0.0
      %1146 = vmatprep.subr.mxu0 0.0
      %1147 = vmatpush1.msra.mxu0 0.0
      %1148 = vmatprep.subr.mxu0 0.0
      %1149 = vmatpush1.msra.mxu0 %v1113
      %1150 = vmatprep.subr.mxu0 0.0
      %1151 = vmatpush2.msra.mxu0 0.0
      %1152 = vmatprep.subr.mxu0 0.0
      %1153 = vmatpush2.msra.mxu0 0.0
      %1154 = vmatprep.subr.mxu0 0.0
      %1155 = vmatpush2.msra.mxu0 0.0
      %1156 = vmatprep.subr.mxu0 0.0
      %1157 = vmatpush2.msra.mxu0 0.0
      %1158 = vmatprep.subr.mxu0 0.0
      %1159 = vmatpush2.msra.mxu0 0.0
      %1160 = vmatprep.subr.mxu0 0.0
      %1161 = vmatpush2.msra.mxu0 0.0
      %1162 = vmatprep.subr.mxu0 0.0
      %1163 = vmatpush2.msra.mxu0 0.0
      %1164 = vmatprep.subr.mxu0 0.0
      %1165 = vmatpush2.msra.mxu0 0.0
      %1166 = vmatprep.subr.mxu0 0.0
      %1167 = vmatpush2.msra.mxu0 0.0
      %1168 = vmatprep.subr.mxu0 0.0
      %1169 = vmatpush2.msra.mxu0 0.0
      %1170 = vmatprep.subr.mxu0 0.0
      %1171 = vmatpush2.msra.mxu0 0.0
      %1172 = vmatprep.subr.mxu0 0.0
      %1173 = vmatpush2.msra.mxu0 0.0
      %1174 = vmatprep.subr.mxu0 0.0
      %1175 = vmatpush2.msra.mxu0 0.0
      %1176 = vmatprep.subr.mxu0 0.0
      %1177 = vmatpush2.msra.mxu0 0.0
      %1178 = vmatprep.subr.mxu0 0.0
      %1179 = vmatpush2.msra.mxu0 0.0
      %1180 = vmatprep.subr.mxu0 0.0
      %1181 = vmatpush2.msra.mxu0 0.0
      %1182 = vmatprep.mubr.f32.mxu0 0.0
      %1183 = vmatmul.mubr.f32.gmra.mxu0 %v1116
      %v1184 = vpop.f32.mrf.mxu0
      %v1185 = vadd.f32 0.0, %v1184
      %v1186 = vpop.f32.mrf.mxu0
      %1187 = vdwg.mxu0
      %1188 = vrot.lane.b32.xlu0 %v595, 64
      %v1189 = vpop.permute.xlu0 %1188
      %v1192 = vsel %vm915, %v959, 0
      %1194 = vmatprep.subr.mxu0 0.0
      %1195 = vmatpush1.msra.mxu0 0.0
      %1196 = vmatprep.subr.mxu0 0.0
      %1197 = vmatpush1.msra.mxu0 0.0
      %1198 = vmatprep.subr.mxu0 0.0
      %1199 = vmatpush1.msra.mxu0 0.0
      %1200 = vmatprep.subr.mxu0 0.0
      %1201 = vmatpush1.msra.mxu0 0.0
      %1202 = vmatprep.subr.mxu0 0.0
      %1203 = vmatpush1.msra.mxu0 0.0
      %1204 = vmatprep.subr.mxu0 0.0
      %1205 = vmatpush1.msra.mxu0 0.0
      %1206 = vmatprep.subr.mxu0 0.0
      %1207 = vmatpush1.msra.mxu0 0.0
      %1208 = vmatprep.subr.mxu0 0.0
      %1209 = vmatpush1.msra.mxu0 0.0
      %1210 = vmatprep.subr.mxu0 0.0
      %1211 = vmatpush1.msra.mxu0 0.0
      %1212 = vmatprep.subr.mxu0 0.0
      %1213 = vmatpush1.msra.mxu0 0.0
      %1214 = vmatprep.subr.mxu0 0.0
      %1215 = vmatpush1.msra.mxu0 0.0
      %1216 = vmatprep.subr.mxu0 0.0
      %1217 = vmatpush1.msra.mxu0 0.0
      %1218 = vmatprep.subr.mxu0 0.0
      %1219 = vmatpush1.msra.mxu0 0.0
      %1220 = vmatprep.subr.mxu0 0.0
      %1221 = vmatpush1.msra.mxu0 0.0
      %1222 = vmatprep.subr.mxu0 0.0
      %1223 = vmatpush1.msra.mxu0 0.0
      %1224 = vmatprep.subr.mxu0 0.0
      %1225 = vmatpush1.msra.mxu0 %v1189
      %1226 = vmatprep.subr.mxu0 0.0
      %1227 = vmatpush2.msra.mxu0 0.0
      %1228 = vmatprep.subr.mxu0 0.0
      %1229 = vmatpush2.msra.mxu0 0.0
      %1230 = vmatprep.subr.mxu0 0.0
      %1231 = vmatpush2.msra.mxu0 0.0
      %1232 = vmatprep.subr.mxu0 0.0
      %1233 = vmatpush2.msra.mxu0 0.0
      %1234 = vmatprep.subr.mxu0 0.0
      %1235 = vmatpush2.msra.mxu0 0.0
      %1236 = vmatprep.subr.mxu0 0.0
      %1237 = vmatpush2.msra.mxu0 0.0
      %1238 = vmatprep.subr.mxu0 0.0
      %1239 = vmatpush2.msra.mxu0 0.0
      %1240 = vmatprep.subr.mxu0 0.0
      %1241 = vmatpush2.msra.mxu0 0.0
      %1242 = vmatprep.subr.mxu0 0.0
      %1243 = vmatpush2.msra.mxu0 0.0
      %1244 = vmatprep.subr.mxu0 0.0
      %1245 = vmatpush2.msra.mxu0 0.0
      %1246 = vmatprep.subr.mxu0 0.0
      %1247 = vmatpush2.msra.mxu0 0.0
      %1248 = vmatprep.subr.mxu0 0.0
      %1249 = vmatpush2.msra.mxu0 0.0
      %1250 = vmatprep.subr.mxu0 0.0
      %1251 = vmatpush2.msra.mxu0 0.0
      %1252 = vmatprep.subr.mxu0 0.0
      %1253 = vmatpush2.msra.mxu0 0.0
      %1254 = vmatprep.subr.mxu0 0.0
      %1255 = vmatpush2.msra.mxu0 0.0
      %1256 = vmatprep.subr.mxu0 0.0
      %1257 = vmatpush2.msra.mxu0 0.0
      %1258 = vmatprep.mubr.f32.mxu0 0.0
      %1259 = vmatmul.mubr.f32.gmra.mxu0 %v1192
      %v1260 = vpop.f32.mrf.mxu0
      %v1261 = vadd.f32 0.0, %v1260
      %v1262 = vpop.f32.mrf.mxu0
      %1263 = vdwg.mxu0
      %1264 = vrot.lane.b32.xlu0 %v580, 112
      %v1265 = vpop.permute.xlu0 %1264
      %1266 = vrot.lane.b32.xlu0 %v580, 80
      %v1267 = vpop.permute.xlu0 %1266
      %v1268 = vsel %vm605, %v1265, 0
      %v1270 = vsel %vm605, %v1267, 0
      %1272 = vmatprep.subr.mxu0 0.0
      %1273 = vmatpush1.xpose.msra.mxu0 0.0
      %1274 = vmatprep.subr.mxu0 0.0
      %1275 = vmatpush1.xpose.msra.mxu0 0.0
      %1276 = vmatprep.subr.mxu0 0.0
      %1277 = vmatpush1.xpose.msra.mxu0 0.0
      %1278 = vmatprep.subr.mxu0 0.0
      %1279 = vmatpush1.xpose.msra.mxu0 0.0
      %1280 = vmatprep.subr.mxu0 0.0
      %1281 = vmatpush1.xpose.msra.mxu0 0.0
      %1282 = vmatprep.subr.mxu0 0.0
      %1283 = vmatpush1.xpose.msra.mxu0 0.0
      %1284 = vmatprep.subr.mxu0 0.0
      %1285 = vmatpush1.xpose.msra.mxu0 0.0
      %1286 = vmatprep.subr.mxu0 0.0
      %1287 = vmatpush1.xpose.msra.mxu0 0.0
      %1288 = vmatprep.subr.mxu0 0.0
      %1289 = vmatpush1.xpose.msra.mxu0 0.0
      %1290 = vmatprep.subr.mxu0 0.0
      %1291 = vmatpush1.xpose.msra.mxu0 0.0
      %1292 = vmatprep.subr.mxu0 0.0
      %1293 = vmatpush1.xpose.msra.mxu0 0.0
      %1294 = vmatprep.subr.mxu0 0.0
      %1295 = vmatpush1.xpose.msra.mxu0 0.0
      %1296 = vmatprep.subr.mxu0 0.0
      %1297 = vmatpush1.xpose.msra.mxu0 0.0
      %1298 = vmatprep.subr.mxu0 0.0
      %1299 = vmatpush1.xpose.msra.mxu0 0.0
      %1300 = vmatprep.subr.mxu0 0.0
      %1301 = vmatpush1.xpose.msra.mxu0 0.0
      %1302 = vmatprep.subr.mxu0 0.0
      %1303 = vmatpush1.xpose.msra.mxu0 %v1270
      %1304 = vmatprep.subr.mxu0 0.0
      %1305 = vmatpush2.xpose.msra.mxu0 0.0
      %1306 = vmatprep.subr.mxu0 0.0
      %1307 = vmatpush2.xpose.msra.mxu0 0.0
      %1308 = vmatprep.subr.mxu0 0.0
      %1309 = vmatpush2.xpose.msra.mxu0 0.0
      %1310 = vmatprep.subr.mxu0 0.0
      %1311 = vmatpush2.xpose.msra.mxu0 0.0
      %1312 = vmatprep.subr.mxu0 0.0
      %1313 = vmatpush2.xpose.msra.mxu0 0.0
      %1314 = vmatprep.subr.mxu0 0.0
      %1315 = vmatpush2.xpose.msra.mxu0 0.0
      %1316 = vmatprep.subr.mxu0 0.0
      %1317 = vmatpush2.xpose.msra.mxu0 0.0
      %1318 = vmatprep.subr.mxu0 0.0
      %1319 = vmatpush2.xpose.msra.mxu0 0.0
      %1320 = vmatprep.subr.mxu0 0.0
      %1321 = vmatpush2.xpose.msra.mxu0 0.0
      %1322 = vmatprep.subr.mxu0 0.0
      %1323 = vmatpush2.xpose.msra.mxu0 0.0
      %1324 = vmatprep.subr.mxu0 0.0
      %1325 = vmatpush2.xpose.msra.mxu0 0.0
      %1326 = vmatprep.subr.mxu0 0.0
      %1327 = vmatpush2.xpose.msra.mxu0 0.0
      %1328 = vmatprep.subr.mxu0 0.0
      %1329 = vmatpush2.xpose.msra.mxu0 0.0
      %1330 = vmatprep.subr.mxu0 0.0
      %1331 = vmatpush2.xpose.msra.mxu0 0.0
      %1332 = vmatprep.subr.mxu0 0.0
      %1333 = vmatpush2.xpose.msra.mxu0 0.0
      %1334 = vmatprep.subr.mxu0 0.0
      %1335 = vmatpush2.xpose.msra.mxu0 0.0
      %1336 = vmatprep.mubr.f32.mxu0 0.0
      %1337 = vmatmul.mubr.f32.gmra.mxu0 %v1268
      %v1338 = vpop.f32.mrf.mxu0
      %v1339 = vadd.f32 0.0, %v1338
      %v1340 = vpop.f32.mrf.mxu0
      %1341 = vdwg.mxu0
      %1342 = vrot.lane.b32.xlu0 %v585, 112
      %v1343 = vpop.permute.xlu0 %1342
      %1344 = vrot.lane.b32.xlu0 %v585, 80
      %v1345 = vpop.permute.xlu0 %1344
      %v1346 = vsel %vm605, %v1343, 0
      %v1348 = vsel %vm605, %v1345, 0
      %1350 = vmatprep.subr.mxu0 0.0
      %1351 = vmatpush1.xpose.msra.mxu0 0.0
      %1352 = vmatprep.subr.mxu0 0.0
      %1353 = vmatpush1.xpose.msra.mxu0 0.0
      %1354 = vmatprep.subr.mxu0 0.0
      %1355 = vmatpush1.xpose.msra.mxu0 0.0
      %1356 = vmatprep.subr.mxu0 0.0
      %1357 = vmatpush1.xpose.msra.mxu0 0.0
      %1358 = vmatprep.subr.mxu0 0.0
      %1359 = vmatpush1.xpose.msra.mxu0 0.0
      %1360 = vmatprep.subr.mxu0 0.0
      %1361 = vmatpush1.xpose.msra.mxu0 0.0
      %1362 = vmatprep.subr.mxu0 0.0
      %1363 = vmatpush1.xpose.msra.mxu0 0.0
      %1364 = vmatprep.subr.mxu0 0.0
      %1365 = vmatpush1.xpose.msra.mxu0 0.0
      %1366 = vmatprep.subr.mxu0 0.0
      %1367 = vmatpush1.xpose.msra.mxu0 0.0
      %1368 = vmatprep.subr.mxu0 0.0
      %1369 = vmatpush1.xpose.msra.mxu0 0.0
      %1370 = vmatprep.subr.mxu0 0.0
      %1371 = vmatpush1.xpose.msra.mxu0 0.0
      %1372 = vmatprep.subr.mxu0 0.0
      %1373 = vmatpush1.xpose.msra.mxu0 0.0
      %1374 = vmatprep.subr.mxu0 0.0
      %1375 = vmatpush1.xpose.msra.mxu0 0.0
      %1376 = vmatprep.subr.mxu0 0.0
      %1377 = vmatpush1.xpose.msra.mxu0 0.0
      %1378 = vmatprep.subr.mxu0 0.0
      %1379 = vmatpush1.xpose.msra.mxu0 0.0
      %1380 = vmatprep.subr.mxu0 0.0
      %1381 = vmatpush1.xpose.msra.mxu0 %v1348
      %1382 = vmatprep.subr.mxu0 0.0
      %1383 = vmatpush2.xpose.msra.mxu0 0.0
      %1384 = vmatprep.subr.mxu0 0.0
      %1385 = vmatpush2.xpose.msra.mxu0 0.0
      %1386 = vmatprep.subr.mxu0 0.0
      %1387 = vmatpush2.xpose.msra.mxu0 0.0
      %1388 = vmatprep.subr.mxu0 0.0
      %1389 = vmatpush2.xpose.msra.mxu0 0.0
      %1390 = vmatprep.subr.mxu0 0.0
      %1391 = vmatpush2.xpose.msra.mxu0 0.0
      %1392 = vmatprep.subr.mxu0 0.0
      %1393 = vmatpush2.xpose.msra.mxu0 0.0
      %1394 = vmatprep.subr.mxu0 0.0
      %1395 = vmatpush2.xpose.msra.mxu0 0.0
      %1396 = vmatprep.subr.mxu0 0.0
      %1397 = vmatpush2.xpose.msra.mxu0 0.0
      %1398 = vmatprep.subr.mxu0 0.0
      %1399 = vmatpush2.xpose.msra.mxu0 0.0
      %1400 = vmatprep.subr.mxu0 0.0
      %1401 = vmatpush2.xpose.msra.mxu0 0.0
      %1402 = vmatprep.subr.mxu0 0.0
      %1403 = vmatpush2.xpose.msra.mxu0 0.0
      %1404 = vmatprep.subr.mxu0 0.0
      %1405 = vmatpush2.xpose.msra.mxu0 0.0
      %1406 = vmatprep.subr.mxu0 0.0
      %1407 = vmatpush2.xpose.msra.mxu0 0.0
      %1408 = vmatprep.subr.mxu0 0.0
      %1409 = vmatpush2.xpose.msra.mxu0 0.0
      %1410 = vmatprep.subr.mxu0 0.0
      %1411 = vmatpush2.xpose.msra.mxu0 0.0
      %1412 = vmatprep.subr.mxu0 0.0
      %1413 = vmatpush2.xpose.msra.mxu0 0.0
      %1414 = vmatprep.mubr.f32.mxu0 0.0
      %1415 = vmatmul.mubr.f32.gmra.mxu0 %v1346
      %v1416 = vpop.f32.mrf.mxu0
      %v1417 = vadd.f32 0.0, %v1416
      %v1418 = vpop.f32.mrf.mxu0
      %1419 = vdwg.mxu0
      %1420 = vrot.lane.b32.xlu0 %v590, 112
      %v1421 = vpop.permute.xlu0 %1420
      %1422 = vrot.lane.b32.xlu0 %v590, 80
      %v1423 = vpop.permute.xlu0 %1422
      %v1424 = vsel %vm605, %v1421, 0
      %v1426 = vsel %vm605, %v1423, 0
      %1428 = vmatprep.subr.mxu0 0.0
      %1429 = vmatpush1.xpose.msra.mxu0 0.0
      %1430 = vmatprep.subr.mxu0 0.0
      %1431 = vmatpush1.xpose.msra.mxu0 0.0
      %1432 = vmatprep.subr.mxu0 0.0
      %1433 = vmatpush1.xpose.msra.mxu0 0.0
      %1434 = vmatprep.subr.mxu0 0.0
      %1435 = vmatpush1.xpose.msra.mxu0 0.0
      %1436 = vmatprep.subr.mxu0 0.0
      %1437 = vmatpush1.xpose.msra.mxu0 0.0
      %1438 = vmatprep.subr.mxu0 0.0
      %1439 = vmatpush1.xpose.msra.mxu0 0.0
      %1440 = vmatprep.subr.mxu0 0.0
      %1441 = vmatpush1.xpose.msra.mxu0 0.0
      %1442 = vmatprep.subr.mxu0 0.0
      %1443 = vmatpush1.xpose.msra.mxu0 0.0
      %1444 = vmatprep.subr.mxu0 0.0
      %1445 = vmatpush1.xpose.msra.mxu0 0.0
      %1446 = vmatprep.subr.mxu0 0.0
      %1447 = vmatpush1.xpose.msra.mxu0 0.0
      %1448 = vmatprep.subr.mxu0 0.0
      %1449 = vmatpush1.xpose.msra.mxu0 0.0
      %1450 = vmatprep.subr.mxu0 0.0
      %1451 = vmatpush1.xpose.msra.mxu0 0.0
      %1452 = vmatprep.subr.mxu0 0.0
      %1453 = vmatpush1.xpose.msra.mxu0 0.0
      %1454 = vmatprep.subr.mxu0 0.0
      %1455 = vmatpush1.xpose.msra.mxu0 0.0
      %1456 = vmatprep.subr.mxu0 0.0
      %1457 = vmatpush1.xpose.msra.mxu0 0.0
      %1458 = vmatprep.subr.mxu0 0.0
      %1459 = vmatpush1.xpose.msra.mxu0 %v1426
      %1460 = vmatprep.subr.mxu0 0.0
      %1461 = vmatpush2.xpose.msra.mxu0 0.0
      %1462 = vmatprep.subr.mxu0 0.0
      %1463 = vmatpush2.xpose.msra.mxu0 0.0
      %1464 = vmatprep.subr.mxu0 0.0
      %1465 = vmatpush2.xpose.msra.mxu0 0.0
      %1466 = vmatprep.subr.mxu0 0.0
      %1467 = vmatpush2.xpose.msra.mxu0 0.0
      %1468 = vmatprep.subr.mxu0 0.0
      %1469 = vmatpush2.xpose.msra.mxu0 0.0
      %1470 = vmatprep.subr.mxu0 0.0
      %1471 = vmatpush2.xpose.msra.mxu0 0.0
      %1472 = vmatprep.subr.mxu0 0.0
      %1473 = vmatpush2.xpose.msra.mxu0 0.0
      %1474 = vmatprep.subr.mxu0 0.0
      %1475 = vmatpush2.xpose.msra.mxu0 0.0
      %1476 = vmatprep.subr.mxu0 0.0
      %1477 = vmatpush2.xpose.msra.mxu0 0.0
      %1478 = vmatprep.subr.mxu0 0.0
      %1479 = vmatpush2.xpose.msra.mxu0 0.0
      %1480 = vmatprep.subr.mxu0 0.0
      %1481 = vmatpush2.xpose.msra.mxu0 0.0
      %1482 = vmatprep.subr.mxu0 0.0
      %1483 = vmatpush2.xpose.msra.mxu0 0.0
      %1484 = vmatprep.subr.mxu0 0.0
      %1485 = vmatpush2.xpose.msra.mxu0 0.0
      %1486 = vmatprep.subr.mxu0 0.0
      %1487 = vmatpush2.xpose.msra.mxu0 0.0
      %1488 = vmatprep.subr.mxu0 0.0
      %1489 = vmatpush2.xpose.msra.mxu0 0.0
      %1490 = vmatprep.subr.mxu0 0.0
      %1491 = vmatpush2.xpose.msra.mxu0 0.0
      %1492 = vmatprep.mubr.f32.mxu0 0.0
      %1493 = vmatmul.mubr.f32.gmra.mxu0 %v1424
      %v1494 = vpop.f32.mrf.mxu0
      %v1495 = vadd.f32 0.0, %v1494
      %v1496 = vpop.f32.mrf.mxu0
      %1497 = vdwg.mxu0
      %1498 = vrot.lane.b32.xlu0 %v595, 112
      %v1499 = vpop.permute.xlu0 %1498
      %1500 = vrot.lane.b32.xlu0 %v595, 80
      %v1501 = vpop.permute.xlu0 %1500
      %v1502 = vsel %vm605, %v1499, 0
      %v1504 = vsel %vm605, %v1501, 0
      %1506 = vmatprep.subr.mxu0 0.0
      %1507 = vmatpush1.xpose.msra.mxu0 0.0
      %1508 = vmatprep.subr.mxu0 0.0
      %1509 = vmatpush1.xpose.msra.mxu0 0.0
      %1510 = vmatprep.subr.mxu0 0.0
      %1511 = vmatpush1.xpose.msra.mxu0 0.0
      %1512 = vmatprep.subr.mxu0 0.0
      %1513 = vmatpush1.xpose.msra.mxu0 0.0
      %1514 = vmatprep.subr.mxu0 0.0
      %1515 = vmatpush1.xpose.msra.mxu0 0.0
      %1516 = vmatprep.subr.mxu0 0.0
      %1517 = vmatpush1.xpose.msra.mxu0 0.0
      %1518 = vmatprep.subr.mxu0 0.0
      %1519 = vmatpush1.xpose.msra.mxu0 0.0
      %1520 = vmatprep.subr.mxu0 0.0
      %1521 = vmatpush1.xpose.msra.mxu0 0.0
      %1522 = vmatprep.subr.mxu0 0.0
      %1523 = vmatpush1.xpose.msra.mxu0 0.0
      %1524 = vmatprep.subr.mxu0 0.0
      %1525 = vmatpush1.xpose.msra.mxu0 0.0
      %1526 = vmatprep.subr.mxu0 0.0
      %1527 = vmatpush1.xpose.msra.mxu0 0.0
      %1528 = vmatprep.subr.mxu0 0.0
      %1529 = vmatpush1.xpose.msra.mxu0 0.0
      %1530 = vmatprep.subr.mxu0 0.0
      %1531 = vmatpush1.xpose.msra.mxu0 0.0
      %1532 = vmatprep.subr.mxu0 0.0
      %1533 = vmatpush1.xpose.msra.mxu0 0.0
      %1534 = vmatprep.subr.mxu0 0.0
      %1535 = vmatpush1.xpose.msra.mxu0 0.0
      %1536 = vmatprep.subr.mxu0 0.0
      %1537 = vmatpush1.xpose.msra.mxu0 %v1504
      %1538 = vmatprep.subr.mxu0 0.0
      %1539 = vmatpush2.xpose.msra.mxu0 0.0
      %1540 = vmatprep.subr.mxu0 0.0
      %1541 = vmatpush2.xpose.msra.mxu0 0.0
      %1542 = vmatprep.subr.mxu0 0.0
      %1543 = vmatpush2.xpose.msra.mxu0 0.0
      %1544 = vmatprep.subr.mxu0 0.0
      %1545 = vmatpush2.xpose.msra.mxu0 0.0
      %1546 = vmatprep.subr.mxu0 0.0
      %1547 = vmatpush2.xpose.msra.mxu0 0.0
      %1548 = vmatprep.subr.mxu0 0.0
      %1549 = vmatpush2.xpose.msra.mxu0 0.0
      %1550 = vmatprep.subr.mxu0 0.0
      %1551 = vmatpush2.xpose.msra.mxu0 0.0
      %1552 = vmatprep.subr.mxu0 0.0
      %1553 = vmatpush2.xpose.msra.mxu0 0.0
      %1554 = vmatprep.subr.mxu0 0.0
      %1555 = vmatpush2.xpose.msra.mxu0 0.0
      %1556 = vmatprep.subr.mxu0 0.0
      %1557 = vmatpush2.xpose.msra.mxu0 0.0
      %1558 = vmatprep.subr.mxu0 0.0
      %1559 = vmatpush2.xpose.msra.mxu0 0.0
      %1560 = vmatprep.subr.mxu0 0.0
      %1561 = vmatpush2.xpose.msra.mxu0 0.0
      %1562 = vmatprep.subr.mxu0 0.0
      %1563 = vmatpush2.xpose.msra.mxu0 0.0
      %1564 = vmatprep.subr.mxu0 0.0
      %1565 = vmatpush2.xpose.msra.mxu0 0.0
      %1566 = vmatprep.subr.mxu0 0.0
      %1567 = vmatpush2.xpose.msra.mxu0 0.0
      %1568 = vmatprep.subr.mxu0 0.0
      %1569 = vmatpush2.xpose.msra.mxu0 0.0
      %1570 = vmatprep.mubr.f32.mxu0 0.0
      %1571 = vmatmul.mubr.f32.gmra.mxu0 %v1502
      %v1572 = vpop.f32.mrf.mxu0
      %v1573 = vadd.f32 0.0, %v1572
      %v1574 = vpop.f32.mrf.mxu0
      %1575 = vdwg.mxu0
      %v1576 = vmul.f32 %v1339, 0.25
      %v1577 = vmul.f32 %v1417, 0.25
      %v1578 = vmul.f32 %v1495, 0.25
      %v1579 = vmul.f32 %v1573, 0.25
      %v1580 = vsel %vm915, %v1576, -inf
      %1581 = vmax.xlane.f32.xlu0 %v1580
      %v1582 = vpop.xlane.xlu0 %1581
      %v1583 = vsel %vm915, %v1577, -inf
      %1584 = vmax.xlane.f32.xlu0 %v1583
      %v1585 = vpop.xlane.xlu0 %1584
      %v1586 = vsel %vm915, %v1578, -inf
      %1587 = vmax.xlane.f32.xlu0 %v1586
      %v1588 = vpop.xlane.xlu0 %1587
      %v1589 = vsel %vm915, %v1579, -inf
      %1590 = vmax.xlane.f32.xlu0 %v1589
      %v1591 = vpop.xlane.xlu0 %1590
      %v1592 = vsub.f32 %v1576, %v1582
      %v1593 = vsub.f32 %v1577, %v1585
      %v1594 = vsub.f32 %v1578, %v1588
      %v1595 = vsub.f32 %v1579, %v1591
      %v1596 = vmul.f32 %v1592, 1.442695
      %v1597 = vpow.pop %v1596
      %v1598 = vmul.f32 %v1593, 1.442695
      %v1599 = vpow.pop %v1598
      %v1600 = vmul.f32 %v1594, 1.442695
      %v1601 = vpow.pop %v1600
      %v1602 = vmul.f32 %v1595, 1.442695
      %v1603 = vpow.pop %v1602
      %v1604 = vsel %vm915, %v1597, 0.0
      %1605 = vadd.xlane.f32.xlu0 %v1604
      %v1606 = vpop.xlane.xlu0 %1605
      %v1607 = vsel %vm915, %v1599, 0.0
      %1608 = vadd.xlane.f32.xlu0 %v1607
      %v1609 = vpop.xlane.xlu0 %1608
      %v1610 = vsel %vm915, %v1601, 0.0
      %1611 = vadd.xlane.f32.xlu0 %v1610
      %v1612 = vpop.xlane.xlu0 %1611
      %v1613 = vsel %vm915, %v1603, 0.0
      %1614 = vadd.xlane.f32.xlu0 %v1613
      %v1615 = vpop.xlane.xlu0 %1614
      %v1616 = vrcp.pop %v1606
      %v1617 = vrcp.pop %v1609
      %v1618 = vrcp.pop %v1612
      %v1619 = vrcp.pop %v1615
      %v1620 = vmul.f32 %v1597, %v1616
      %v1621 = vmul.f32 %v1599, %v1617
      %v1622 = vmul.f32 %v1601, %v1618
      %v1623 = vmul.f32 %v1603, %v1619
      %1624 = vrot.lane.b32.xlu0 %v580, 48
      %v1625 = vpop.permute.xlu0 %1624
      %v1628 = vsel %vm915, %v1620, 0
      %1630 = vmatprep.subr.mxu0 0.0
      %1631 = vmatpush1.msra.mxu0 0.0
      %1632 = vmatprep.subr.mxu0 0.0
      %1633 = vmatpush1.msra.mxu0 0.0
      %1634 = vmatprep.subr.mxu0 0.0
      %1635 = vmatpush1.msra.mxu0 0.0
      %1636 = vmatprep.subr.mxu0 0.0
      %1637 = vmatpush1.msra.mxu0 0.0
      %1638 = vmatprep.subr.mxu0 0.0
      %1639 = vmatpush1.msra.mxu0 0.0
      %1640 = vmatprep.subr.mxu0 0.0
      %1641 = vmatpush1.msra.mxu0 0.0
      %1642 = vmatprep.subr.mxu0 0.0
      %1643 = vmatpush1.msra.mxu0 0.0
      %1644 = vmatprep.subr.mxu0 0.0
      %1645 = vmatpush1.msra.mxu0 0.0
      %1646 = vmatprep.subr.mxu0 0.0
      %1647 = vmatpush1.msra.mxu0 0.0
      %1648 = vmatprep.subr.mxu0 0.0
      %1649 = vmatpush1.msra.mxu0 0.0
      %1650 = vmatprep.subr.mxu0 0.0
      %1651 = vmatpush1.msra.mxu0 0.0
      %1652 = vmatprep.subr.mxu0 0.0
      %1653 = vmatpush1.msra.mxu0 0.0
      %1654 = vmatprep.subr.mxu0 0.0
      %1655 = vmatpush1.msra.mxu0 0.0
      %1656 = vmatprep.subr.mxu0 0.0
      %1657 = vmatpush1.msra.mxu0 0.0
      %1658 = vmatprep.subr.mxu0 0.0
      %1659 = vmatpush1.msra.mxu0 0.0
      %1660 = vmatprep.subr.mxu0 0.0
      %1661 = vmatpush1.msra.mxu0 %v1625
      %1662 = vmatprep.subr.mxu0 0.0
      %1663 = vmatpush2.msra.mxu0 0.0
      %1664 = vmatprep.subr.mxu0 0.0
      %1665 = vmatpush2.msra.mxu0 0.0
      %1666 = vmatprep.subr.mxu0 0.0
      %1667 = vmatpush2.msra.mxu0 0.0
      %1668 = vmatprep.subr.mxu0 0.0
      %1669 = vmatpush2.msra.mxu0 0.0
      %1670 = vmatprep.subr.mxu0 0.0
      %1671 = vmatpush2.msra.mxu0 0.0
      %1672 = vmatprep.subr.mxu0 0.0
      %1673 = vmatpush2.msra.mxu0 0.0
      %1674 = vmatprep.subr.mxu0 0.0
      %1675 = vmatpush2.msra.mxu0 0.0
      %1676 = vmatprep.subr.mxu0 0.0
      %1677 = vmatpush2.msra.mxu0 0.0
      %1678 = vmatprep.subr.mxu0 0.0
      %1679 = vmatpush2.msra.mxu0 0.0
      %1680 = vmatprep.subr.mxu0 0.0
      %1681 = vmatpush2.msra.mxu0 0.0
      %1682 = vmatprep.subr.mxu0 0.0
      %1683 = vmatpush2.msra.mxu0 0.0
      %1684 = vmatprep.subr.mxu0 0.0
      %1685 = vmatpush2.msra.mxu0 0.0
      %1686 = vmatprep.subr.mxu0 0.0
      %1687 = vmatpush2.msra.mxu0 0.0
      %1688 = vmatprep.subr.mxu0 0.0
      %1689 = vmatpush2.msra.mxu0 0.0
      %1690 = vmatprep.subr.mxu0 0.0
      %1691 = vmatpush2.msra.mxu0 0.0
      %1692 = vmatprep.subr.mxu0 0.0
      %1693 = vmatpush2.msra.mxu0 0.0
      %1694 = vmatprep.mubr.f32.mxu0 0.0
      %1695 = vmatmul.mubr.f32.gmra.mxu0 %v1628
      %v1696 = vpop.f32.mrf.mxu0
      %v1697 = vadd.f32 0.0, %v1696
      %v1698 = vpop.f32.mrf.mxu0
      %1699 = vdwg.mxu0
      %1700 = vrot.lane.b32.xlu0 %v585, 48
      %v1701 = vpop.permute.xlu0 %1700
      %v1704 = vsel %vm915, %v1621, 0
      %1706 = vmatprep.subr.mxu0 0.0
      %1707 = vmatpush1.msra.mxu0 0.0
      %1708 = vmatprep.subr.mxu0 0.0
      %1709 = vmatpush1.msra.mxu0 0.0
      %1710 = vmatprep.subr.mxu0 0.0
      %1711 = vmatpush1.msra.mxu0 0.0
      %1712 = vmatprep.subr.mxu0 0.0
      %1713 = vmatpush1.msra.mxu0 0.0
      %1714 = vmatprep.subr.mxu0 0.0
      %1715 = vmatpush1.msra.mxu0 0.0
      %1716 = vmatprep.subr.mxu0 0.0
      %1717 = vmatpush1.msra.mxu0 0.0
      %1718 = vmatprep.subr.mxu0 0.0
      %1719 = vmatpush1.msra.mxu0 0.0
      %1720 = vmatprep.subr.mxu0 0.0
      %1721 = vmatpush1.msra.mxu0 0.0
      %1722 = vmatprep.subr.mxu0 0.0
      %1723 = vmatpush1.msra.mxu0 0.0
      %1724 = vmatprep.subr.mxu0 0.0
      %1725 = vmatpush1.msra.mxu0 0.0
      %1726 = vmatprep.subr.mxu0 0.0
      %1727 = vmatpush1.msra.mxu0 0.0
      %1728 = vmatprep.subr.mxu0 0.0
      %1729 = vmatpush1.msra.mxu0 0.0
      %1730 = vmatprep.subr.mxu0 0.0
      %1731 = vmatpush1.msra.mxu0 0.0
      %1732 = vmatprep.subr.mxu0 0.0
      %1733 = vmatpush1.msra.mxu0 0.0
      %1734 = vmatprep.subr.mxu0 0.0
      %1735 = vmatpush1.msra.mxu0 0.0
      %1736 = vmatprep.subr.mxu0 0.0
      %1737 = vmatpush1.msra.mxu0 %v1701
      %1738 = vmatprep.subr.mxu0 0.0
      %1739 = vmatpush2.msra.mxu0 0.0
      %1740 = vmatprep.subr.mxu0 0.0
      %1741 = vmatpush2.msra.mxu0 0.0
      %1742 = vmatprep.subr.mxu0 0.0
      %1743 = vmatpush2.msra.mxu0 0.0
      %1744 = vmatprep.subr.mxu0 0.0
      %1745 = vmatpush2.msra.mxu0 0.0
      %1746 = vmatprep.subr.mxu0 0.0
      %1747 = vmatpush2.msra.mxu0 0.0
      %1748 = vmatprep.subr.mxu0 0.0
      %1749 = vmatpush2.msra.mxu0 0.0
      %1750 = vmatprep.subr.mxu0 0.0
      %1751 = vmatpush2.msra.mxu0 0.0
      %1752 = vmatprep.subr.mxu0 0.0
      %1753 = vmatpush2.msra.mxu0 0.0
      %1754 = vmatprep.subr.mxu0 0.0
      %1755 = vmatpush2.msra.mxu0 0.0
      %1756 = vmatprep.subr.mxu0 0.0
      %1757 = vmatpush2.msra.mxu0 0.0
      %1758 = vmatprep.subr.mxu0 0.0
      %1759 = vmatpush2.msra.mxu0 0.0
      %1760 = vmatprep.subr.mxu0 0.0
      %1761 = vmatpush2.msra.mxu0 0.0
      %1762 = vmatprep.subr.mxu0 0.0
      %1763 = vmatpush2.msra.mxu0 0.0
      %1764 = vmatprep.subr.mxu0 0.0
      %1765 = vmatpush2.msra.mxu0 0.0
      %1766 = vmatprep.subr.mxu0 0.0
      %1767 = vmatpush2.msra.mxu0 0.0
      %1768 = vmatprep.subr.mxu0 0.0
      %1769 = vmatpush2.msra.mxu0 0.0
      %1770 = vmatprep.mubr.f32.mxu0 0.0
      %1771 = vmatmul.mubr.f32.gmra.mxu0 %v1704
      %v1772 = vpop.f32.mrf.mxu0
      %v1773 = vadd.f32 0.0, %v1772
      %v1774 = vpop.f32.mrf.mxu0
      %1775 = vdwg.mxu0
      %1776 = vrot.lane.b32.xlu0 %v590, 48
      %v1777 = vpop.permute.xlu0 %1776
      %v1780 = vsel %vm915, %v1622, 0
      %1782 = vmatprep.subr.mxu0 0.0
      %1783 = vmatpush1.msra.mxu0 0.0
      %1784 = vmatprep.subr.mxu0 0.0
      %1785 = vmatpush1.msra.mxu0 0.0
      %1786 = vmatprep.subr.mxu0 0.0
      %1787 = vmatpush1.msra.mxu0 0.0
      %1788 = vmatprep.subr.mxu0 0.0
      %1789 = vmatpush1.msra.mxu0 0.0
      %1790 = vmatprep.subr.mxu0 0.0
      %1791 = vmatpush1.msra.mxu0 0.0
      %1792 = vmatprep.subr.mxu0 0.0
      %1793 = vmatpush1.msra.mxu0 0.0
      %1794 = vmatprep.subr.mxu0 0.0
      %1795 = vmatpush1.msra.mxu0 0.0
      %1796 = vmatprep.subr.mxu0 0.0
      %1797 = vmatpush1.msra.mxu0 0.0
      %1798 = vmatprep.subr.mxu0 0.0
      %1799 = vmatpush1.msra.mxu0 0.0
      %1800 = vmatprep.subr.mxu0 0.0
      %1801 = vmatpush1.msra.mxu0 0.0
      %1802 = vmatprep.subr.mxu0 0.0
      %1803 = vmatpush1.msra.mxu0 0.0
      %1804 = vmatprep.subr.mxu0 0.0
      %1805 = vmatpush1.msra.mxu0 0.0
      %1806 = vmatprep.subr.mxu0 0.0
      %1807 = vmatpush1.msra.mxu0 0.0
      %1808 = vmatprep.subr.mxu0 0.0
      %1809 = vmatpush1.msra.mxu0 0.0
      %1810 = vmatprep.subr.mxu0 0.0
      %1811 = vmatpush1.msra.mxu0 0.0
      %1812 = vmatprep.subr.mxu0 0.0
      %1813 = vmatpush1.msra.mxu0 %v1777
      %1814 = vmatprep.subr.mxu0 0.0
      %1815 = vmatpush2.msra.mxu0 0.0
      %1816 = vmatprep.subr.mxu0 0.0
      %1817 = vmatpush2.msra.mxu0 0.0
      %1818 = vmatprep.subr.mxu0 0.0
      %1819 = vmatpush2.msra.mxu0 0.0
      %1820 = vmatprep.subr.mxu0 0.0
      %1821 = vmatpush2.msra.mxu0 0.0
      %1822 = vmatprep.subr.mxu0 0.0
      %1823 = vmatpush2.msra.mxu0 0.0
      %1824 = vmatprep.subr.mxu0 0.0
      %1825 = vmatpush2.msra.mxu0 0.0
      %1826 = vmatprep.subr.mxu0 0.0
      %1827 = vmatpush2.msra.mxu0 0.0
      %1828 = vmatprep.subr.mxu0 0.0
      %1829 = vmatpush2.msra.mxu0 0.0
      %1830 = vmatprep.subr.mxu0 0.0
      %1831 = vmatpush2.msra.mxu0 0.0
      %1832 = vmatprep.subr.mxu0 0.0
      %1833 = vmatpush2.msra.mxu0 0.0
      %1834 = vmatprep.subr.mxu0 0.0
      %1835 = vmatpush2.msra.mxu0 0.0
      %1836 = vmatprep.subr.mxu0 0.0
      %1837 = vmatpush2.msra.mxu0 0.0
      %1838 = vmatprep.subr.mxu0 0.0
      %1839 = vmatpush2.msra.mxu0 0.0
      %1840 = vmatprep.subr.mxu0 0.0
      %1841 = vmatpush2.msra.mxu0 0.0
      %1842 = vmatprep.subr.mxu0 0.0
      %1843 = vmatpush2.msra.mxu0 0.0
      %1844 = vmatprep.subr.mxu0 0.0
      %1845 = vmatpush2.msra.mxu0 0.0
      %1846 = vmatprep.mubr.f32.mxu0 0.0
      %1847 = vmatmul.mubr.f32.gmra.mxu0 %v1780
      %v1848 = vpop.f32.mrf.mxu0
      %v1849 = vadd.f32 0.0, %v1848
      %v1850 = vpop.f32.mrf.mxu0
      %1851 = vdwg.mxu0
      %1852 = vrot.lane.b32.xlu0 %v595, 48
      %v1853 = vpop.permute.xlu0 %1852
      %v1856 = vsel %vm915, %v1623, 0
      %1858 = vmatprep.subr.mxu0 0.0
      %1859 = vmatpush1.msra.mxu0 0.0
      %1860 = vmatprep.subr.mxu0 0.0
      %1861 = vmatpush1.msra.mxu0 0.0
      %1862 = vmatprep.subr.mxu0 0.0
      %1863 = vmatpush1.msra.mxu0 0.0
      %1864 = vmatprep.subr.mxu0 0.0
      %1865 = vmatpush1.msra.mxu0 0.0
      %1866 = vmatprep.subr.mxu0 0.0
      %1867 = vmatpush1.msra.mxu0 0.0
      %1868 = vmatprep.subr.mxu0 0.0
      %1869 = vmatpush1.msra.mxu0 0.0
      %1870 = vmatprep.subr.mxu0 0.0
      %1871 = vmatpush1.msra.mxu0 0.0
      %1872 = vmatprep.subr.mxu0 0.0
      %1873 = vmatpush1.msra.mxu0 0.0
      %1874 = vmatprep.subr.mxu0 0.0
      %1875 = vmatpush1.msra.mxu0 0.0
      %1876 = vmatprep.subr.mxu0 0.0
      %1877 = vmatpush1.msra.mxu0 0.0
      %1878 = vmatprep.subr.mxu0 0.0
      %1879 = vmatpush1.msra.mxu0 0.0
      %1880 = vmatprep.subr.mxu0 0.0
      %1881 = vmatpush1.msra.mxu0 0.0
      %1882 = vmatprep.subr.mxu0 0.0
      %1883 = vmatpush1.msra.mxu0 0.0
      %1884 = vmatprep.subr.mxu0 0.0
      %1885 = vmatpush1.msra.mxu0 0.0
      %1886 = vmatprep.subr.mxu0 0.0
      %1887 = vmatpush1.msra.mxu0 0.0
      %1888 = vmatprep.subr.mxu0 0.0
      %1889 = vmatpush1.msra.mxu0 %v1853
      %1890 = vmatprep.subr.mxu0 0.0
      %1891 = vmatpush2.msra.mxu0 0.0
      %1892 = vmatprep.subr.mxu0 0.0
      %1893 = vmatpush2.msra.mxu0 0.0
      %1894 = vmatprep.subr.mxu0 0.0
      %1895 = vmatpush2.msra.mxu0 0.0
      %1896 = vmatprep.subr.mxu0 0.0
      %1897 = vmatpush2.msra.mxu0 0.0
      %1898 = vmatprep.subr.mxu0 0.0
      %1899 = vmatpush2.msra.mxu0 0.0
      %1900 = vmatprep.subr.mxu0 0.0
      %1901 = vmatpush2.msra.mxu0 0.0
      %1902 = vmatprep.subr.mxu0 0.0
      %1903 = vmatpush2.msra.mxu0 0.0
      %1904 = vmatprep.subr.mxu0 0.0
      %1905 = vmatpush2.msra.mxu0 0.0
      %1906 = vmatprep.subr.mxu0 0.0
      %1907 = vmatpush2.msra.mxu0 0.0
      %1908 = vmatprep.subr.mxu0 0.0
      %1909 = vmatpush2.msra.mxu0 0.0
      %1910 = vmatprep.subr.mxu0 0.0
      %1911 = vmatpush2.msra.mxu0 0.0
      %1912 = vmatprep.subr.mxu0 0.0
      %1913 = vmatpush2.msra.mxu0 0.0
      %1914 = vmatprep.subr.mxu0 0.0
      %1915 = vmatpush2.msra.mxu0 0.0
      %1916 = vmatprep.subr.mxu0 0.0
      %1917 = vmatpush2.msra.mxu0 0.0
      %1918 = vmatprep.subr.mxu0 0.0
      %1919 = vmatpush2.msra.mxu0 0.0
      %1920 = vmatprep.subr.mxu0 0.0
      %1921 = vmatpush2.msra.mxu0 0.0
      %1922 = vmatprep.mubr.f32.mxu0 0.0
      %1923 = vmatmul.mubr.f32.gmra.mxu0 %v1856
      %v1924 = vpop.f32.mrf.mxu0
      %v1925 = vadd.f32 0.0, %v1924
      %v1926 = vpop.f32.mrf.mxu0
      %1927 = vdwg.mxu0
      %v1929 = vsel %vm605, %v1697, 0
      %v1932 = vsel %vm605, %v1773, 0
      %v1935 = vsel %vm605, %v1849, 0
      %v1938 = vsel %vm605, %v1925, 0
      %1940 = vmatprep.subr.mxu0 0.0
      %1941 = vmatpush1.msra.mxu0 0.0
      %1942 = vmatprep.subr.mxu0 0.0
      %1943 = vmatpush1.msra.mxu0 0.0
      %1944 = vmatprep.subr.mxu0 0.0
      %1945 = vmatpush1.msra.mxu0 0.0
      %1946 = vmatprep.subr.mxu0 0.0
      %1947 = vmatpush1.msra.mxu0 0.0
      %1948 = vmatprep.subr.mxu0 0.0
      %1949 = vmatpush1.msra.mxu0 0.0
      %1950 = vmatprep.subr.mxu0 0.0
      %1951 = vmatpush1.msra.mxu0 0.0
      %1952 = vmatprep.subr.mxu0 0.0
      %1953 = vmatpush1.msra.mxu0 0.0
      %1954 = vmatprep.subr.mxu0 0.0
      %1955 = vmatpush1.msra.mxu0 0.0
      %1956 = vmatprep.subr.mxu0 0.0
      %1957 = vmatpush1.msra.mxu0 0.0
      %1958 = vmatprep.subr.mxu0 0.0
      %1959 = vmatpush1.msra.mxu0 0.0
      %1960 = vmatprep.subr.mxu0 0.0
      %1961 = vmatpush1.msra.mxu0 0.0
      %1962 = vmatprep.subr.mxu0 0.0
      %1963 = vmatpush1.msra.mxu0 0.0
      %1964 = vmatprep.subr.mxu0 0.0
      %1965 = vmatpush1.msra.mxu0 0.0
      %1966 = vmatprep.subr.mxu0 0.0
      %1967 = vmatpush1.msra.mxu0 0.0
      %1968 = vmatprep.subr.mxu0 0.0
      %1969 = vmatpush1.msra.mxu0 %v601
      %1970 = vmatprep.subr.mxu0 0.0
      %1971 = vmatpush1.msra.mxu0 %v600
      %1972 = vmatprep.subr.mxu0 0.0
      %1973 = vmatpush2.msra.mxu0 0.0
      %1974 = vmatprep.subr.mxu0 0.0
      %1975 = vmatpush2.msra.mxu0 0.0
      %1976 = vmatprep.subr.mxu0 0.0
      %1977 = vmatpush2.msra.mxu0 0.0
      %1978 = vmatprep.subr.mxu0 0.0
      %1979 = vmatpush2.msra.mxu0 0.0
      %1980 = vmatprep.subr.mxu0 0.0
      %1981 = vmatpush2.msra.mxu0 0.0
      %1982 = vmatprep.subr.mxu0 0.0
      %1983 = vmatpush2.msra.mxu0 0.0
      %1984 = vmatprep.subr.mxu0 0.0
      %1985 = vmatpush2.msra.mxu0 0.0
      %1986 = vmatprep.subr.mxu0 0.0
      %1987 = vmatpush2.msra.mxu0 0.0
      %1988 = vmatprep.subr.mxu0 0.0
      %1989 = vmatpush2.msra.mxu0 0.0
      %1990 = vmatprep.subr.mxu0 0.0
      %1991 = vmatpush2.msra.mxu0 0.0
      %1992 = vmatprep.subr.mxu0 0.0
      %1993 = vmatpush2.msra.mxu0 0.0
      %1994 = vmatprep.subr.mxu0 0.0
      %1995 = vmatpush2.msra.mxu0 0.0
      %1996 = vmatprep.subr.mxu0 0.0
      %1997 = vmatpush2.msra.mxu0 0.0
      %1998 = vmatprep.subr.mxu0 0.0
      %1999 = vmatpush2.msra.mxu0 0.0
      %2000 = vmatprep.subr.mxu0 0.0
      %2001 = vmatpush2.msra.mxu0 0.0
      %2002 = vmatprep.subr.mxu0 0.0
      %2003 = vmatpush2.msra.mxu0 0.0
      %2004 = vmatprep.mubr.f32.mxu0 0.0
      %2005 = vmatmul.mubr.f32.gmra.mxu0 %v1929
      %v2006 = vpop.f32.mrf.mxu0
      %v2007 = vadd.f32 0.0, %v2006
      %v2008 = vpop.f32.mrf.mxu0
      %2009 = vmatprep.mubr.f32.mxu0 0.0
      %2010 = vmatmul.mubr.f32.gmra.mxu0 %v1932
      %v2011 = vpop.f32.mrf.mxu0
      %v2012 = vadd.f32 0.0, %v2011
      %v2013 = vpop.f32.mrf.mxu0
      %2014 = vmatprep.mubr.f32.mxu0 0.0
      %2015 = vmatmul.mubr.f32.gmra.mxu0 %v1935
      %v2016 = vpop.f32.mrf.mxu0
      %v2017 = vadd.f32 0.0, %v2016
      %v2018 = vpop.f32.mrf.mxu0
      %2019 = vmatprep.mubr.f32.mxu0 0.0
      %2020 = vmatmul.mubr.f32.gmra.mxu0 %v1938
      %v2021 = vpop.f32.mrf.mxu0
      %v2022 = vadd.f32 0.0, %v2021
      %v2023 = vpop.f32.mrf.mxu0
      %2024 = vdwg.mxu0
      %v2026 = vsel %vm605, %v1033, 0
      %v2029 = vsel %vm605, %v1109, 0
      %v2032 = vsel %vm605, %v1185, 0
      %v2035 = vsel %vm605, %v1261, 0
      %2037 = vmatprep.subr.mxu0 0.0
      %2038 = vmatpush1.msra.mxu0 0.0
      %2039 = vmatprep.subr.mxu0 0.0
      %2040 = vmatpush1.msra.mxu0 0.0
      %2041 = vmatprep.subr.mxu0 0.0
      %2042 = vmatpush1.msra.mxu0 0.0
      %2043 = vmatprep.subr.mxu0 0.0
      %2044 = vmatpush1.msra.mxu0 0.0
      %2045 = vmatprep.subr.mxu0 0.0
      %2046 = vmatpush1.msra.mxu0 0.0
      %2047 = vmatprep.subr.mxu0 0.0
      %2048 = vmatpush1.msra.mxu0 0.0
      %2049 = vmatprep.subr.mxu0 0.0
      %2050 = vmatpush1.msra.mxu0 0.0
      %2051 = vmatprep.subr.mxu0 0.0
      %2052 = vmatpush1.msra.mxu0 0.0
      %2053 = vmatprep.subr.mxu0 0.0
      %2054 = vmatpush1.msra.mxu0 0.0
      %2055 = vmatprep.subr.mxu0 0.0
      %2056 = vmatpush1.msra.mxu0 0.0
      %2057 = vmatprep.subr.mxu0 0.0
      %2058 = vmatpush1.msra.mxu0 0.0
      %2059 = vmatprep.subr.mxu0 0.0
      %2060 = vmatpush1.msra.mxu0 0.0
      %2061 = vmatprep.subr.mxu0 0.0
      %2062 = vmatpush1.msra.mxu0 0.0
      %2063 = vmatprep.subr.mxu0 0.0
      %2064 = vmatpush1.msra.mxu0 0.0
      %2065 = vmatprep.subr.mxu0 0.0
      %2066 = vmatpush1.msra.mxu0 %v599
      %2067 = vmatprep.subr.mxu0 0.0
      %2068 = vmatpush1.msra.mxu0 %v598
      %2069 = vmatprep.subr.mxu0 0.0
      %2070 = vmatpush2.msra.mxu0 0.0
      %2071 = vmatprep.subr.mxu0 0.0
      %2072 = vmatpush2.msra.mxu0 0.0
      %2073 = vmatprep.subr.mxu0 0.0
      %2074 = vmatpush2.msra.mxu0 0.0
      %2075 = vmatprep.subr.mxu0 0.0
      %2076 = vmatpush2.msra.mxu0 0.0
      %2077 = vmatprep.subr.mxu0 0.0
      %2078 = vmatpush2.msra.mxu0 0.0
      %2079 = vmatprep.subr.mxu0 0.0
      %2080 = vmatpush2.msra.mxu0 0.0
      %2081 = vmatprep.subr.mxu0 0.0
      %2082 = vmatpush2.msra.mxu0 0.0
      %2083 = vmatprep.subr.mxu0 0.0
      %2084 = vmatpush2.msra.mxu0 0.0
      %2085 = vmatprep.subr.mxu0 0.0
      %2086 = vmatpush2.msra.mxu0 0.0
      %2087 = vmatprep.subr.mxu0 0.0
      %2088 = vmatpush2.msra.mxu0 0.0
      %2089 = vmatprep.subr.mxu0 0.0
      %2090 = vmatpush2.msra.mxu0 0.0
      %2091 = vmatprep.subr.mxu0 0.0
      %2092 = vmatpush2.msra.mxu0 0.0
      %2093 = vmatprep.subr.mxu0 0.0
      %2094 = vmatpush2.msra.mxu0 0.0
      %2095 = vmatprep.subr.mxu0 0.0
      %2096 = vmatpush2.msra.mxu0 0.0
      %2097 = vmatprep.subr.mxu0 0.0
      %2098 = vmatpush2.msra.mxu0 0.0
      %2099 = vmatprep.subr.mxu0 0.0
      %2100 = vmatpush2.msra.mxu0 0.0
      %2101 = vmatprep.mubr.f32.mxu0 0.0
      %2102 = vmatmul.mubr.f32.gmra.mxu0 %v2026
      %v2103 = vpop.f32.mrf.mxu0
      %v2104 = vadd.f32 %v2007, %v2103
      %v2105 = vpop.f32.mrf.mxu0
      %2106 = vmatprep.mubr.f32.mxu0 0.0
      %2107 = vmatmul.mubr.f32.gmra.mxu0 %v2029
      %v2108 = vpop.f32.mrf.mxu0
      %v2109 = vadd.f32 %v2012, %v2108
      %v2110 = vpop.f32.mrf.mxu0
      %2111 = vmatprep.mubr.f32.mxu0 0.0
      %2112 = vmatmul.mubr.f32.gmra.mxu0 %v2032
      %v2113 = vpop.f32.mrf.mxu0
      %v2114 = vadd.f32 %v2017, %v2113
      %v2115 = vpop.f32.mrf.mxu0
      %2116 = vmatprep.mubr.f32.mxu0 0.0
      %2117 = vmatmul.mubr.f32.gmra.mxu0 %v2035
      %v2118 = vpop.f32.mrf.mxu0
      %v2119 = vadd.f32 %v2022, %v2118
      %v2120 = vpop.f32.mrf.mxu0
      %2121 = vdwg.mxu0
      %v2122 = vld [vmem:[%s5] sm:$0x1]
      %v2124 = vlaneseq
      %v2125 = vshrl.u32 %v2124, 7
      %v2126 = vsub.s32 0, %v2125
      %v2127 = vrot.slane %v2122, %v2126
      %v2129 = vadd.f32 %v2104, %v2127
      %v2130 = vadd.f32 %v2109, %v2127
      %v2131 = vadd.f32 %v2114, %v2127
      %v2132 = vadd.f32 %v2119, %v2127
      %v2133 = vadd.f32 %v2129, %v417
      %v2134 = vadd.f32 %v2130, %v418
      %v2135 = vadd.f32 %v2131, %v419
      %v2136 = vadd.f32 %v2132, %v420
      %v2137 = vld [vmem:[%s6] sm:$0x1]
      %v2138 = vld [vmem:[%s7] sm:$0x1]
      %v2139 = vsel %vm423, %v2133, 0.0
      %2140 = vadd.xlane.f32.xlu0 %v2139
      %v2141 = vpop.xlane.xlu0 %2140
      %v2142 = vsel %vm423, %v2134, 0.0
      %2143 = vadd.xlane.f32.xlu0 %v2142
      %v2144 = vpop.xlane.xlu0 %2143
      %v2145 = vsel %vm423, %v2135, 0.0
      %2146 = vadd.xlane.f32.xlu0 %v2145
      %v2147 = vpop.xlane.xlu0 %2146
      %v2148 = vsel %vm423, %v2136, 0.0
      %2149 = vadd.xlane.f32.xlu0 %v2148
      %v2150 = vpop.xlane.xlu0 %2149
      %v2151 = vmul.f32 %v2141, %v436
      %v2152 = vmul.f32 %v2144, %v436
      %v2153 = vmul.f32 %v2147, %v436
      %v2154 = vmul.f32 %v2150, %v436
      %v2155 = vsub.f32 %v2133, %v2151
      %v2156 = vsub.f32 %v2134, %v2152
      %v2157 = vsub.f32 %v2135, %v2153
      %v2158 = vsub.f32 %v2136, %v2154
      %v2159 = vmul.f32 %v2155, %v2155
      %v2160 = vmul.f32 %v2156, %v2156
      %v2161 = vmul.f32 %v2157, %v2157
      %v2162 = vmul.f32 %v2158, %v2158
      %v2163 = vsel %vm423, %v2159, 0.0
      %2164 = vadd.xlane.f32.xlu0 %v2163
      %v2165 = vpop.xlane.xlu0 %2164
      %v2166 = vsel %vm423, %v2160, 0.0
      %2167 = vadd.xlane.f32.xlu0 %v2166
      %v2168 = vpop.xlane.xlu0 %2167
      %v2169 = vsel %vm423, %v2161, 0.0
      %2170 = vadd.xlane.f32.xlu0 %v2169
      %v2171 = vpop.xlane.xlu0 %2170
      %v2172 = vsel %vm423, %v2162, 0.0
      %2173 = vadd.xlane.f32.xlu0 %v2172
      %v2174 = vpop.xlane.xlu0 %2173
      %v2175 = vmul.f32 %v2165, %v436
      %v2176 = vmul.f32 %v2168, %v436
      %v2177 = vmul.f32 %v2171, %v436
      %v2178 = vmul.f32 %v2174, %v436
      %v2179 = vadd.f32 %v2175, 1e-05
      %v2180 = vadd.f32 %v2176, 1e-05
      %v2181 = vadd.f32 %v2177, 1e-05
      %v2182 = vadd.f32 %v2178, 1e-05
      %v2183 = vrsqrt.pop %v2179
      %v2184 = vrsqrt.pop %v2180
      %v2185 = vrsqrt.pop %v2181
      %v2186 = vrsqrt.pop %v2182
      %v2187 = vmul.f32 %v2155, %v2183
      %v2188 = vmul.f32 %v2156, %v2184
      %v2189 = vmul.f32 %v2157, %v2185
      %v2190 = vmul.f32 %v2158, %v2186
      %v2192 = vlaneseq
      %v2193 = vshrl.u32 %v2192, 7
      %v2194 = vsub.s32 0, %v2193
      %v2195 = vrot.slane %v2137, %v2194
      %v2197 = vmul.f32 %v2187, %v2195
      %v2198 = vmul.f32 %v2188, %v2195
      %v2199 = vmul.f32 %v2189, %v2195
      %v2200 = vmul.f32 %v2190, %v2195
      %v2202 = vlaneseq
      %v2203 = vshrl.u32 %v2202, 7
      %v2204 = vsub.s32 0, %v2203
      %v2205 = vrot.slane %v2138, %v2204
      %v2207 = vadd.f32 %v2197, %v2205
      %v2208 = vadd.f32 %v2198, %v2205
      %v2209 = vadd.f32 %v2199, %v2205
      %v2210 = vadd.f32 %v2200, %v2205
      %v2211 = vld [vmem:[%s8] sm:$0xff]
      %v2212 = vld [vmem:[%s8 + $0x8] sm:$0xff]
      %v2213 = vld [vmem:[%s8 + $0x10] sm:$0xff]
      %v2214 = vld [vmem:[%s8 + $0x18] sm:$0xff]
      %v2215 = vld [vmem:[%s9] sm:$0x1]
      %v2217 = vlaneseq
      %v2218 = vshrl.u32 %v2217, 7
      %v2219 = vsub.s32 0, %v2218
      %v2220 = vrot.slane %v2215, %v2219
      %v2223 = vsel %vm423, %v2207, 0
      %v2226 = vsel %vm423, %v2208, 0
      %v2229 = vsel %vm423, %v2209, 0
      %v2232 = vsel %vm423, %v2210, 0
      %2234 = vmatprep.subr.mxu0 0.0
      %2235 = vmatpush1.msra.mxu0 0.0
      %2236 = vmatprep.subr.mxu0 0.0
      %2237 = vmatpush1.msra.mxu0 0.0
      %2238 = vmatprep.subr.mxu0 0.0
      %2239 = vmatpush1.msra.mxu0 0.0
      %2240 = vmatprep.subr.mxu0 0.0
      %2241 = vmatpush1.msra.mxu0 0.0
      %2242 = vmatprep.subr.mxu0 0.0
      %2243 = vmatpush1.msra.mxu0 0.0
      %2244 = vmatprep.subr.mxu0 0.0
      %2245 = vmatpush1.msra.mxu0 0.0
      %2246 = vmatprep.subr.mxu0 0.0
      %2247 = vmatpush1.msra.mxu0 0.0
      %2248 = vmatprep.subr.mxu0 0.0
      %2249 = vmatpush1.msra.mxu0 0.0
      %2250 = vmatprep.subr.mxu0 0.0
      %2251 = vmatpush1.msra.mxu0 0.0
      %2252 = vmatprep.subr.mxu0 0.0
      %2253 = vmatpush1.msra.mxu0 0.0
      %2254 = vmatprep.subr.mxu0 0.0
      %2255 = vmatpush1.msra.mxu0 0.0
      %2256 = vmatprep.subr.mxu0 0.0
      %2257 = vmatpush1.msra.mxu0 0.0
      %2258 = vmatprep.subr.mxu0 0.0
      %2259 = vmatpush1.msra.mxu0 %v2214
      %2260 = vmatprep.subr.mxu0 0.0
      %2261 = vmatpush1.msra.mxu0 %v2213
      %2262 = vmatprep.subr.mxu0 0.0
      %2263 = vmatpush1.msra.mxu0 %v2212
      %2264 = vmatprep.subr.mxu0 0.0
      %2265 = vmatpush1.msra.mxu0 %v2211
      %2266 = vmatprep.subr.mxu0 0.0
      %2267 = vmatpush2.msra.mxu0 0.0
      %2268 = vmatprep.subr.mxu0 0.0
      %2269 = vmatpush2.msra.mxu0 0.0
      %2270 = vmatprep.subr.mxu0 0.0
      %2271 = vmatpush2.msra.mxu0 0.0
      %2272 = vmatprep.subr.mxu0 0.0
      %2273 = vmatpush2.msra.mxu0 0.0
      %2274 = vmatprep.subr.mxu0 0.0
      %2275 = vmatpush2.msra.mxu0 0.0
      %2276 = vmatprep.subr.mxu0 0.0
      %2277 = vmatpush2.msra.mxu0 0.0
      %2278 = vmatprep.subr.mxu0 0.0
      %2279 = vmatpush2.msra.mxu0 0.0
      %2280 = vmatprep.subr.mxu0 0.0
      %2281 = vmatpush2.msra.mxu0 0.0
      %2282 = vmatprep.subr.mxu0 0.0
      %2283 = vmatpush2.msra.mxu0 0.0
      %2284 = vmatprep.subr.mxu0 0.0
      %2285 = vmatpush2.msra.mxu0 0.0
      %2286 = vmatprep.subr.mxu0 0.0
      %2287 = vmatpush2.msra.mxu0 0.0
      %2288 = vmatprep.subr.mxu0 0.0
      %2289 = vmatpush2.msra.mxu0 0.0
      %2290 = vmatprep.subr.mxu0 0.0
      %2291 = vmatpush2.msra.mxu0 0.0
      %2292 = vmatprep.subr.mxu0 0.0
      %2293 = vmatpush2.msra.mxu0 0.0
      %2294 = vmatprep.subr.mxu0 0.0
      %2295 = vmatpush2.msra.mxu0 0.0
      %2296 = vmatprep.subr.mxu0 0.0
      %2297 = vmatpush2.msra.mxu0 0.0
      %2298 = vmatprep.mubr.f32.mxu0 0.0
      %2299 = vmatmul.mubr.f32.gmra.mxu0 %v2223
      %v2300 = vpop.f32.mrf.mxu0
      %v2301 = vadd.f32 %v2220, %v2300
      %v2302 = vpop.f32.mrf.mxu0
      %2303 = vmatprep.mubr.f32.mxu0 0.0
      %2304 = vmatmul.mubr.f32.gmra.mxu0 %v2226
      %v2305 = vpop.f32.mrf.mxu0
      %v2306 = vadd.f32 %v2220, %v2305
      %v2307 = vpop.f32.mrf.mxu0
      %2308 = vmatprep.mubr.f32.mxu0 0.0
      %2309 = vmatmul.mubr.f32.gmra.mxu0 %v2229
      %v2310 = vpop.f32.mrf.mxu0
      %v2311 = vadd.f32 %v2220, %v2310
      %v2312 = vpop.f32.mrf.mxu0
      %2313 = vmatprep.mubr.f32.mxu0 0.0
      %2314 = vmatmul.mubr.f32.gmra.mxu0 %v2232
      %v2315 = vpop.f32.mrf.mxu0
      %v2316 = vadd.f32 %v2220, %v2315
      %v2317 = vpop.f32.mrf.mxu0
      %2318 = vdwg.mxu0
      %v2319 = vxor.u32 %v2301, 2147483648
      %v2320 = vxor.u32 %v2306, 2147483648
      %v2321 = vxor.u32 %v2311, 2147483648
      %v2322 = vxor.u32 %v2316, 2147483648
      %v2323 = vmul.f32 %v2319, 1.442695
      %v2324 = vpow.pop %v2323
      %v2325 = vmul.f32 %v2320, 1.442695
      %v2326 = vpow.pop %v2325
      %v2327 = vmul.f32 %v2321, 1.442695
      %v2328 = vpow.pop %v2327
      %v2329 = vmul.f32 %v2322, 1.442695
      %v2330 = vpow.pop %v2329
      %v2331 = vadd.f32 %v2324, 1.0
      %v2332 = vadd.f32 %v2326, 1.0
      %v2333 = vadd.f32 %v2328, 1.0
      %v2334 = vadd.f32 %v2330, 1.0
      %v2335 = vrcp.pop %v2331
      %v2336 = vmul.f32 1.0, %v2335
      %v2337 = vrcp.pop %v2332
      %v2338 = vmul.f32 1.0, %v2337
      %v2339 = vrcp.pop %v2333
      %v2340 = vmul.f32 1.0, %v2339
      %v2341 = vrcp.pop %v2334
      %v2342 = vmul.f32 1.0, %v2341
      %v2343 = vmul.f32 %v2301, %v2336
      %v2344 = vmul.f32 %v2306, %v2338
      %v2345 = vmul.f32 %v2311, %v2340
      %v2346 = vmul.f32 %v2316, %v2342
      %v2347 = vld [vmem:[%s10] sm:$0xff]
      %v2348 = vld [vmem:[%s10 + $0x8] sm:$0xff]
      %v2349 = vld [vmem:[%s10 + $0x10] sm:$0xff]
      %v2350 = vld [vmem:[%s10 + $0x18] sm:$0xff]
      %v2351 = vld [vmem:[%s10 + $0x20] sm:$0xff]
      %v2352 = vld [vmem:[%s10 + $0x28] sm:$0xff]
      %v2353 = vld [vmem:[%s10 + $0x30] sm:$0xff]
      %v2354 = vld [vmem:[%s10 + $0x38] sm:$0xff]
      %v2355 = vld [vmem:[%s11] sm:$0x1]
      %v2357 = vlaneseq
      %v2358 = vshrl.u32 %v2357, 7
      %v2359 = vsub.s32 0, %v2358
      %v2360 = vrot.slane %v2355, %v2359
      %vm2362 = vcmask 523264
      %v2364 = vsel %vm2362, %v2343, 0
      %v2367 = vsel %vm2362, %v2344, 0
      %v2370 = vsel %vm2362, %v2345, 0
      %v2373 = vsel %vm2362, %v2346, 0
      %2375 = vmatprep.subr.mxu0 0.0
      %2376 = vmatpush1.msra.mxu0 0.0
      %2377 = vmatprep.subr.mxu0 0.0
      %2378 = vmatpush1.msra.mxu0 0.0
      %2379 = vmatprep.subr.mxu0 0.0
      %2380 = vmatpush1.msra.mxu0 0.0
      %2381 = vmatprep.subr.mxu0 0.0
      %2382 = vmatpush1.msra.mxu0 0.0
      %2383 = vmatprep.subr.mxu0 0.0
      %2384 = vmatpush1.msra.mxu0 0.0
      %2385 = vmatprep.subr.mxu0 0.0
      %2386 = vmatpush1.msra.mxu0 0.0
      %2387 = vmatprep.subr.mxu0 0.0
      %2388 = vmatpush1.msra.mxu0 0.0
      %2389 = vmatprep.subr.mxu0 0.0
      %2390 = vmatpush1.msra.mxu0 0.0
      %2391 = vmatprep.subr.mxu0 0.0
      %2392 = vmatpush1.msra.mxu0 %v2354
      %2393 = vmatprep.subr.mxu0 0.0
      %2394 = vmatpush1.msra.mxu0 %v2353
      %2395 = vmatprep.subr.mxu0 0.0
      %2396 = vmatpush1.msra.mxu0 %v2352
      %2397 = vmatprep.subr.mxu0 0.0
      %2398 = vmatpush1.msra.mxu0 %v2351
      %2399 = vmatprep.subr.mxu0 0.0
      %2400 = vmatpush1.msra.mxu0 %v2350
      %2401 = vmatprep.subr.mxu0 0.0
      %2402 = vmatpush1.msra.mxu0 %v2349
      %2403 = vmatprep.subr.mxu0 0.0
      %2404 = vmatpush1.msra.mxu0 %v2348
      %2405 = vmatprep.subr.mxu0 0.0
      %2406 = vmatpush1.msra.mxu0 %v2347
      %2407 = vmatprep.subr.mxu0 0.0
      %2408 = vmatpush2.msra.mxu0 0.0
      %2409 = vmatprep.subr.mxu0 0.0
      %2410 = vmatpush2.msra.mxu0 0.0
      %2411 = vmatprep.subr.mxu0 0.0
      %2412 = vmatpush2.msra.mxu0 0.0
      %2413 = vmatprep.subr.mxu0 0.0
      %2414 = vmatpush2.msra.mxu0 0.0
      %2415 = vmatprep.subr.mxu0 0.0
      %2416 = vmatpush2.msra.mxu0 0.0
      %2417 = vmatprep.subr.mxu0 0.0
      %2418 = vmatpush2.msra.mxu0 0.0
      %2419 = vmatprep.subr.mxu0 0.0
      %2420 = vmatpush2.msra.mxu0 0.0
      %2421 = vmatprep.subr.mxu0 0.0
      %2422 = vmatpush2.msra.mxu0 0.0
      %2423 = vmatprep.subr.mxu0 0.0
      %2424 = vmatpush2.msra.mxu0 0.0
      %2425 = vmatprep.subr.mxu0 0.0
      %2426 = vmatpush2.msra.mxu0 0.0
      %2427 = vmatprep.subr.mxu0 0.0
      %2428 = vmatpush2.msra.mxu0 0.0
      %2429 = vmatprep.subr.mxu0 0.0
      %2430 = vmatpush2.msra.mxu0 0.0
      %2431 = vmatprep.subr.mxu0 0.0
      %2432 = vmatpush2.msra.mxu0 0.0
      %2433 = vmatprep.subr.mxu0 0.0
      %2434 = vmatpush2.msra.mxu0 0.0
      %2435 = vmatprep.subr.mxu0 0.0
      %2436 = vmatpush2.msra.mxu0 0.0
      %2437 = vmatprep.subr.mxu0 0.0
      %2438 = vmatpush2.msra.mxu0 0.0
      %2439 = vmatprep.mubr.f32.mxu0 0.0
      %2440 = vmatmul.mubr.f32.gmra.mxu0 %v2364
      %v2441 = vpop.f32.mrf.mxu0
      %v2442 = vadd.f32 %v2360, %v2441
      %v2443 = vpop.f32.mrf.mxu0
      %2444 = vmatprep.mubr.f32.mxu0 0.0
      %2445 = vmatmul.mubr.f32.gmra.mxu0 %v2367
      %v2446 = vpop.f32.mrf.mxu0
      %v2447 = vadd.f32 %v2360, %v2446
      %v2448 = vpop.f32.mrf.mxu0
      %2449 = vmatprep.mubr.f32.mxu0 0.0
      %2450 = vmatmul.mubr.f32.gmra.mxu0 %v2370
      %v2451 = vpop.f32.mrf.mxu0
      %v2452 = vadd.f32 %v2360, %v2451
      %v2453 = vpop.f32.mrf.mxu0
      %2454 = vmatprep.mubr.f32.mxu0 0.0
      %2455 = vmatmul.mubr.f32.gmra.mxu0 %v2373
      %v2456 = vpop.f32.mrf.mxu0
      %v2457 = vadd.f32 %v2360, %v2456
      %v2458 = vpop.f32.mrf.mxu0
      %2459 = vdwg.mxu0
      %v2460 = vadd.f32 %v2442, %v2133
      %v2461 = vadd.f32 %v2447, %v2134
      %v2462 = vadd.f32 %v2452, %v2135
      %v2463 = vadd.f32 %v2457, %v2136
      %s2464 = scalar_lea.vmem %s1, 1
      %v2465 = vld [vmem:[%s2464] sm:$0x1]
      %s2466 = scalar_lea.vmem %s2, 1
      %v2467 = vld [vmem:[%s2466] sm:$0x1]
      %v2468 = vsel %vm423, %v2460, 0.0
      %2469 = vadd.xlane.f32.xlu0 %v2468
      %v2470 = vpop.xlane.xlu0 %2469
      %v2471 = vsel %vm423, %v2461, 0.0
      %2472 = vadd.xlane.f32.xlu0 %v2471
      %v2473 = vpop.xlane.xlu0 %2472
      %v2474 = vsel %vm423, %v2462, 0.0
      %2475 = vadd.xlane.f32.xlu0 %v2474
      %v2476 = vpop.xlane.xlu0 %2475
      %v2477 = vsel %vm423, %v2463, 0.0
      %2478 = vadd.xlane.f32.xlu0 %v2477
      %v2479 = vpop.xlane.xlu0 %2478
      %v2480 = vmul.f32 %v2470, %v436
      %v2481 = vmul.f32 %v2473, %v436
      %v2482 = vmul.f32 %v2476, %v436
      %v2483 = vmul.f32 %v2479, %v436
      %v2484 = vsub.f32 %v2460, %v2480
      %v2485 = vsub.f32 %v2461, %v2481
      %v2486 = vsub.f32 %v2462, %v2482
      %v2487 = vsub.f32 %v2463, %v2483
      %v2488 = vmul.f32 %v2484, %v2484
      %v2489 = vmul.f32 %v2485, %v2485
      %v2490 = vmul.f32 %v2486, %v2486
      %v2491 = vmul.f32 %v2487, %v2487
      %v2492 = vsel %vm423, %v2488, 0.0
      %2493 = vadd.xlane.f32.xlu0 %v2492
      %v2494 = vpop.xlane.xlu0 %2493
      %v2495 = vsel %vm423, %v2489, 0.0
      %2496 = vadd.xlane.f32.xlu0 %v2495
      %v2497 = vpop.xlane.xlu0 %2496
      %v2498 = vsel %vm423, %v2490, 0.0
      %2499 = vadd.xlane.f32.xlu0 %v2498
      %v2500 = vpop.xlane.xlu0 %2499
      %v2501 = vsel %vm423, %v2491, 0.0
      %2502 = vadd.xlane.f32.xlu0 %v2501
      %v2503 = vpop.xlane.xlu0 %2502
      %v2504 = vmul.f32 %v2494, %v436
      %v2505 = vmul.f32 %v2497, %v436
      %v2506 = vmul.f32 %v2500, %v436
      %v2507 = vmul.f32 %v2503, %v436
      %v2508 = vadd.f32 %v2504, 1e-05
      %v2509 = vadd.f32 %v2505, 1e-05
      %v2510 = vadd.f32 %v2506, 1e-05
      %v2511 = vadd.f32 %v2507, 1e-05
      %v2512 = vrsqrt.pop %v2508
      %v2513 = vrsqrt.pop %v2509
      %v2514 = vrsqrt.pop %v2510
      %v2515 = vrsqrt.pop %v2511
      %v2516 = vmul.f32 %v2484, %v2512
      %v2517 = vmul.f32 %v2485, %v2513
      %v2518 = vmul.f32 %v2486, %v2514
      %v2519 = vmul.f32 %v2487, %v2515
      %v2521 = vlaneseq
      %v2522 = vshrl.u32 %v2521, 7
      %v2523 = vsub.s32 0, %v2522
      %v2524 = vrot.slane %v2465, %v2523
      %v2526 = vmul.f32 %v2516, %v2524
      %v2527 = vmul.f32 %v2517, %v2524
      %v2528 = vmul.f32 %v2518, %v2524
      %v2529 = vmul.f32 %v2519, %v2524
      %v2531 = vlaneseq
      %v2532 = vshrl.u32 %v2531, 7
      %v2533 = vsub.s32 0, %v2532
      %v2534 = vrot.slane %v2467, %v2533
      %v2536 = vadd.f32 %v2526, %v2534
      %v2537 = vadd.f32 %v2527, %v2534
      %v2538 = vadd.f32 %v2528, %v2534
      %v2539 = vadd.f32 %v2529, %v2534
      %s2540 = scalar_lea.vmem %s3, 32
      %v2541 = vld [vmem:[%s2540] sm:$0xff]
      %v2542 = vld [vmem:[%s2540 + $0x8] sm:$0xff]
      %v2543 = vld [vmem:[%s2540 + $0x10] sm:$0xff]
      %v2544 = vld [vmem:[%s2540 + $0x18] sm:$0xff]
      %v2546 = vsel %vm423, %v2536, 0
      %v2549 = vsel %vm423, %v2537, 0
      %v2552 = vsel %vm423, %v2538, 0
      %v2555 = vsel %vm423, %v2539, 0
      %2557 = vmatprep.subr.mxu0 0.0
      %2558 = vmatpush1.msra.mxu0 0.0
      %2559 = vmatprep.subr.mxu0 0.0
      %2560 = vmatpush1.msra.mxu0 0.0
      %2561 = vmatprep.subr.mxu0 0.0
      %2562 = vmatpush1.msra.mxu0 0.0
      %2563 = vmatprep.subr.mxu0 0.0
      %2564 = vmatpush1.msra.mxu0 0.0
      %2565 = vmatprep.subr.mxu0 0.0
      %2566 = vmatpush1.msra.mxu0 0.0
      %2567 = vmatprep.subr.mxu0 0.0
      %2568 = vmatpush1.msra.mxu0 0.0
      %2569 = vmatprep.subr.mxu0 0.0
      %2570 = vmatpush1.msra.mxu0 0.0
      %2571 = vmatprep.subr.mxu0 0.0
      %2572 = vmatpush1.msra.mxu0 0.0
      %2573 = vmatprep.subr.mxu0 0.0
      %2574 = vmatpush1.msra.mxu0 0.0
      %2575 = vmatprep.subr.mxu0 0.0
      %2576 = vmatpush1.msra.mxu0 0.0
      %2577 = vmatprep.subr.mxu0 0.0
      %2578 = vmatpush1.msra.mxu0 0.0
      %2579 = vmatprep.subr.mxu0 0.0
      %2580 = vmatpush1.msra.mxu0 0.0
      %2581 = vmatprep.subr.mxu0 0.0
      %2582 = vmatpush1.msra.mxu0 %v2544
      %2583 = vmatprep.subr.mxu0 0.0
      %2584 = vmatpush1.msra.mxu0 %v2543
      %2585 = vmatprep.subr.mxu0 0.0
      %2586 = vmatpush1.msra.mxu0 %v2542
      %2587 = vmatprep.subr.mxu0 0.0
      %2588 = vmatpush1.msra.mxu0 %v2541
      %2589 = vmatprep.subr.mxu0 0.0
      %2590 = vmatpush2.msra.mxu0 0.0
      %2591 = vmatprep.subr.mxu0 0.0
      %2592 = vmatpush2.msra.mxu0 0.0
      %2593 = vmatprep.subr.mxu0 0.0
      %2594 = vmatpush2.msra.mxu0 0.0
      %2595 = vmatprep.subr.mxu0 0.0
      %2596 = vmatpush2.msra.mxu0 0.0
      %2597 = vmatprep.subr.mxu0 0.0
      %2598 = vmatpush2.msra.mxu0 0.0
      %2599 = vmatprep.subr.mxu0 0.0
      %2600 = vmatpush2.msra.mxu0 0.0
      %2601 = vmatprep.subr.mxu0 0.0
      %2602 = vmatpush2.msra.mxu0 0.0
      %2603 = vmatprep.subr.mxu0 0.0
      %2604 = vmatpush2.msra.mxu0 0.0
      %2605 = vmatprep.subr.mxu0 0.0
      %2606 = vmatpush2.msra.mxu0 0.0
      %2607 = vmatprep.subr.mxu0 0.0
      %2608 = vmatpush2.msra.mxu0 0.0
      %2609 = vmatprep.subr.mxu0 0.0
      %2610 = vmatpush2.msra.mxu0 0.0
      %2611 = vmatprep.subr.mxu0 0.0
      %2612 = vmatpush2.msra.mxu0 0.0
      %2613 = vmatprep.subr.mxu0 0.0
      %2614 = vmatpush2.msra.mxu0 0.0
      %2615 = vmatprep.subr.mxu0 0.0
      %2616 = vmatpush2.msra.mxu0 0.0
      %2617 = vmatprep.subr.mxu0 0.0
      %2618 = vmatpush2.msra.mxu0 0.0
      %2619 = vmatprep.subr.mxu0 0.0
      %2620 = vmatpush2.msra.mxu0 0.0
      %2621 = vmatprep.mubr.f32.mxu0 0.0
      %2622 = vmatmul.mubr.f32.gmra.mxu0 %v2546
      %v2623 = vpop.f32.mrf.mxu0
      %v2624 = vadd.f32 0.0, %v2623
      %v2625 = vpop.f32.mrf.mxu0
      %2626 = vmatprep.mubr.f32.mxu0 0.0
      %2627 = vmatmul.mubr.f32.gmra.mxu0 %v2549
      %v2628 = vpop.f32.mrf.mxu0
      %v2629 = vadd.f32 0.0, %v2628
      %v2630 = vpop.f32.mrf.mxu0
      %2631 = vmatprep.mubr.f32.mxu0 0.0
      %2632 = vmatmul.mubr.f32.gmra.mxu0 %v2552
      %v2633 = vpop.f32.mrf.mxu0
      %v2634 = vadd.f32 0.0, %v2633
      %v2635 = vpop.f32.mrf.mxu0
      %2636 = vmatprep.mubr.f32.mxu0 0.0
      %2637 = vmatmul.mubr.f32.gmra.mxu0 %v2555
      %v2638 = vpop.f32.mrf.mxu0
      %v2639 = vadd.f32 0.0, %v2638
      %v2640 = vpop.f32.mrf.mxu0
      %2641 = vdwg.mxu0
      %s2642 = scalar_lea.vmem %s4, 32
      %v2643 = vld [vmem:[%s2642] sm:$0xff]
      %v2644 = vld [vmem:[%s2642 + $0x8] sm:$0xff]
      %v2645 = vld [vmem:[%s2642 + $0x10] sm:$0xff]
      %v2646 = vld [vmem:[%s2642 + $0x18] sm:$0xff]
      %2648 = vrot.lane.b32.xlu0 %v2624, 96
      %v2649 = vpop.permute.xlu0 %2648
      %v2650 = vsel %vm605, %v2624, 0
      %v2652 = vsel %vm605, %v2649, 0
      %2654 = vmatprep.subr.mxu0 0.0
      %2655 = vmatpush1.xpose.msra.mxu0 0.0
      %2656 = vmatprep.subr.mxu0 0.0
      %2657 = vmatpush1.xpose.msra.mxu0 0.0
      %2658 = vmatprep.subr.mxu0 0.0
      %2659 = vmatpush1.xpose.msra.mxu0 0.0
      %2660 = vmatprep.subr.mxu0 0.0
      %2661 = vmatpush1.xpose.msra.mxu0 0.0
      %2662 = vmatprep.subr.mxu0 0.0
      %2663 = vmatpush1.xpose.msra.mxu0 0.0
      %2664 = vmatprep.subr.mxu0 0.0
      %2665 = vmatpush1.xpose.msra.mxu0 0.0
      %2666 = vmatprep.subr.mxu0 0.0
      %2667 = vmatpush1.xpose.msra.mxu0 0.0
      %2668 = vmatprep.subr.mxu0 0.0
      %2669 = vmatpush1.xpose.msra.mxu0 0.0
      %2670 = vmatprep.subr.mxu0 0.0
      %2671 = vmatpush1.xpose.msra.mxu0 0.0
      %2672 = vmatprep.subr.mxu0 0.0
      %2673 = vmatpush1.xpose.msra.mxu0 0.0
      %2674 = vmatprep.subr.mxu0 0.0
      %2675 = vmatpush1.xpose.msra.mxu0 0.0
      %2676 = vmatprep.subr.mxu0 0.0
      %2677 = vmatpush1.xpose.msra.mxu0 0.0
      %2678 = vmatprep.subr.mxu0 0.0
      %2679 = vmatpush1.xpose.msra.mxu0 0.0
      %2680 = vmatprep.subr.mxu0 0.0
      %2681 = vmatpush1.xpose.msra.mxu0 0.0
      %2682 = vmatprep.subr.mxu0 0.0
      %2683 = vmatpush1.xpose.msra.mxu0 0.0
      %2684 = vmatprep.subr.mxu0 0.0
      %2685 = vmatpush1.xpose.msra.mxu0 %v2652
      %2686 = vmatprep.subr.mxu0 0.0
      %2687 = vmatpush2.xpose.msra.mxu0 0.0
      %2688 = vmatprep.subr.mxu0 0.0
      %2689 = vmatpush2.xpose.msra.mxu0 0.0
      %2690 = vmatprep.subr.mxu0 0.0
      %2691 = vmatpush2.xpose.msra.mxu0 0.0
      %2692 = vmatprep.subr.mxu0 0.0
      %2693 = vmatpush2.xpose.msra.mxu0 0.0
      %2694 = vmatprep.subr.mxu0 0.0
      %2695 = vmatpush2.xpose.msra.mxu0 0.0
      %2696 = vmatprep.subr.mxu0 0.0
      %2697 = vmatpush2.xpose.msra.mxu0 0.0
      %2698 = vmatprep.subr.mxu0 0.0
      %2699 = vmatpush2.xpose.msra.mxu0 0.0
      %2700 = vmatprep.subr.mxu0 0.0
      %2701 = vmatpush2.xpose.msra.mxu0 0.0
      %2702 = vmatprep.subr.mxu0 0.0
      %2703 = vmatpush2.xpose.msra.mxu0 0.0
      %2704 = vmatprep.subr.mxu0 0.0
      %2705 = vmatpush2.xpose.msra.mxu0 0.0
      %2706 = vmatprep.subr.mxu0 0.0
      %2707 = vmatpush2.xpose.msra.mxu0 0.0
      %2708 = vmatprep.subr.mxu0 0.0
      %2709 = vmatpush2.xpose.msra.mxu0 0.0
      %2710 = vmatprep.subr.mxu0 0.0
      %2711 = vmatpush2.xpose.msra.mxu0 0.0
      %2712 = vmatprep.subr.mxu0 0.0
      %2713 = vmatpush2.xpose.msra.mxu0 0.0
      %2714 = vmatprep.subr.mxu0 0.0
      %2715 = vmatpush2.xpose.msra.mxu0 0.0
      %2716 = vmatprep.subr.mxu0 0.0
      %2717 = vmatpush2.xpose.msra.mxu0 0.0
      %2718 = vmatprep.mubr.f32.mxu0 0.0
      %2719 = vmatmul.mubr.f32.gmra.mxu0 %v2650
      %v2720 = vpop.f32.mrf.mxu0
      %v2721 = vadd.f32 0.0, %v2720
      %v2722 = vpop.f32.mrf.mxu0
      %2723 = vdwg.mxu0
      %2725 = vrot.lane.b32.xlu0 %v2629, 96
      %v2726 = vpop.permute.xlu0 %2725
      %v2727 = vsel %vm605, %v2629, 0
      %v2729 = vsel %vm605, %v2726, 0
      %2731 = vmatprep.subr.mxu0 0.0
      %2732 = vmatpush1.xpose.msra.mxu0 0.0
      %2733 = vmatprep.subr.mxu0 0.0
      %2734 = vmatpush1.xpose.msra.mxu0 0.0
      %2735 = vmatprep.subr.mxu0 0.0
      %2736 = vmatpush1.xpose.msra.mxu0 0.0
      %2737 = vmatprep.subr.mxu0 0.0
      %2738 = vmatpush1.xpose.msra.mxu0 0.0
      %2739 = vmatprep.subr.mxu0 0.0
      %2740 = vmatpush1.xpose.msra.mxu0 0.0
      %2741 = vmatprep.subr.mxu0 0.0
      %2742 = vmatpush1.xpose.msra.mxu0 0.0
      %2743 = vmatprep.subr.mxu0 0.0
      %2744 = vmatpush1.xpose.msra.mxu0 0.0
      %2745 = vmatprep.subr.mxu0 0.0
      %2746 = vmatpush1.xpose.msra.mxu0 0.0
      %2747 = vmatprep.subr.mxu0 0.0
      %2748 = vmatpush1.xpose.msra.mxu0 0.0
      %2749 = vmatprep.subr.mxu0 0.0
      %2750 = vmatpush1.xpose.msra.mxu0 0.0
      %2751 = vmatprep.subr.mxu0 0.0
      %2752 = vmatpush1.xpose.msra.mxu0 0.0
      %2753 = vmatprep.subr.mxu0 0.0
      %2754 = vmatpush1.xpose.msra.mxu0 0.0
      %2755 = vmatprep.subr.mxu0 0.0
      %2756 = vmatpush1.xpose.msra.mxu0 0.0
      %2757 = vmatprep.subr.mxu0 0.0
      %2758 = vmatpush1.xpose.msra.mxu0 0.0
      %2759 = vmatprep.subr.mxu0 0.0
      %2760 = vmatpush1.xpose.msra.mxu0 0.0
      %2761 = vmatprep.subr.mxu0 0.0
      %2762 = vmatpush1.xpose.msra.mxu0 %v2729
      %2763 = vmatprep.subr.mxu0 0.0
      %2764 = vmatpush2.xpose.msra.mxu0 0.0
      %2765 = vmatprep.subr.mxu0 0.0
      %2766 = vmatpush2.xpose.msra.mxu0 0.0
      %2767 = vmatprep.subr.mxu0 0.0
      %2768 = vmatpush2.xpose.msra.mxu0 0.0
      %2769 = vmatprep.subr.mxu0 0.0
      %2770 = vmatpush2.xpose.msra.mxu0 0.0
      %2771 = vmatprep.subr.mxu0 0.0
      %2772 = vmatpush2.xpose.msra.mxu0 0.0
      %2773 = vmatprep.subr.mxu0 0.0
      %2774 = vmatpush2.xpose.msra.mxu0 0.0
      %2775 = vmatprep.subr.mxu0 0.0
      %2776 = vmatpush2.xpose.msra.mxu0 0.0
      %2777 = vmatprep.subr.mxu0 0.0
      %2778 = vmatpush2.xpose.msra.mxu0 0.0
      %2779 = vmatprep.subr.mxu0 0.0
      %2780 = vmatpush2.xpose.msra.mxu0 0.0
      %2781 = vmatprep.subr.mxu0 0.0
      %2782 = vmatpush2.xpose.msra.mxu0 0.0
      %2783 = vmatprep.subr.mxu0 0.0
      %2784 = vmatpush2.xpose.msra.mxu0 0.0
      %2785 = vmatprep.subr.mxu0 0.0
      %2786 = vmatpush2.xpose.msra.mxu0 0.0
      %2787 = vmatprep.subr.mxu0 0.0
      %2788 = vmatpush2.xpose.msra.mxu0 0.0
      %2789 = vmatprep.subr.mxu0 0.0
      %2790 = vmatpush2.xpose.msra.mxu0 0.0
      %2791 = vmatprep.subr.mxu0 0.0
      %2792 = vmatpush2.xpose.msra.mxu0 0.0
      %2793 = vmatprep.subr.mxu0 0.0
      %2794 = vmatpush2.xpose.msra.mxu0 0.0
      %2795 = vmatprep.mubr.f32.mxu0 0.0
      %2796 = vmatmul.mubr.f32.gmra.mxu0 %v2727
      %v2797 = vpop.f32.mrf.mxu0
      %v2798 = vadd.f32 0.0, %v2797
      %v2799 = vpop.f32.mrf.mxu0
      %2800 = vdwg.mxu0
      %2802 = vrot.lane.b32.xlu0 %v2634, 96
      %v2803 = vpop.permute.xlu0 %2802
      %v2804 = vsel %vm605, %v2634, 0
      %v2806 = vsel %vm605, %v2803, 0
      %2808 = vmatprep.subr.mxu0 0.0
      %2809 = vmatpush1.xpose.msra.mxu0 0.0
      %2810 = vmatprep.subr.mxu0 0.0
      %2811 = vmatpush1.xpose.msra.mxu0 0.0
      %2812 = vmatprep.subr.mxu0 0.0
      %2813 = vmatpush1.xpose.msra.mxu0 0.0
      %2814 = vmatprep.subr.mxu0 0.0
      %2815 = vmatpush1.xpose.msra.mxu0 0.0
      %2816 = vmatprep.subr.mxu0 0.0
      %2817 = vmatpush1.xpose.msra.mxu0 0.0
      %2818 = vmatprep.subr.mxu0 0.0
      %2819 = vmatpush1.xpose.msra.mxu0 0.0
      %2820 = vmatprep.subr.mxu0 0.0
      %2821 = vmatpush1.xpose.msra.mxu0 0.0
      %2822 = vmatprep.subr.mxu0 0.0
      %2823 = vmatpush1.xpose.msra.mxu0 0.0
      %2824 = vmatprep.subr.mxu0 0.0
      %2825 = vmatpush1.xpose.msra.mxu0 0.0
      %2826 = vmatprep.subr.mxu0 0.0
      %2827 = vmatpush1.xpose.msra.mxu0 0.0
      %2828 = vmatprep.subr.mxu0 0.0
      %2829 = vmatpush1.xpose.msra.mxu0 0.0
      %2830 = vmatprep.subr.mxu0 0.0
      %2831 = vmatpush1.xpose.msra.mxu0 0.0
      %2832 = vmatprep.subr.mxu0 0.0
      %2833 = vmatpush1.xpose.msra.mxu0 0.0
      %2834 = vmatprep.subr.mxu0 0.0
      %2835 = vmatpush1.xpose.msra.mxu0 0.0
      %2836 = vmatprep.subr.mxu0 0.0
      %2837 = vmatpush1.xpose.msra.mxu0 0.0
      %2838 = vmatprep.subr.mxu0 0.0
      %2839 = vmatpush1.xpose.msra.mxu0 %v2806
      %2840 = vmatprep.subr.mxu0 0.0
      %2841 = vmatpush2.xpose.msra.mxu0 0.0
      %2842 = vmatprep.subr.mxu0 0.0
      %2843 = vmatpush2.xpose.msra.mxu0 0.0
      %2844 = vmatprep.subr.mxu0 0.0
      %2845 = vmatpush2.xpose.msra.mxu0 0.0
      %2846 = vmatprep.subr.mxu0 0.0
      %2847 = vmatpush2.xpose.msra.mxu0 0.0
      %2848 = vmatprep.subr.mxu0 0.0
      %2849 = vmatpush2.xpose.msra.mxu0 0.0
      %2850 = vmatprep.subr.mxu0 0.0
      %2851 = vmatpush2.xpose.msra.mxu0 0.0
      %2852 = vmatprep.subr.mxu0 0.0
      %2853 = vmatpush2.xpose.msra.mxu0 0.0
      %2854 = vmatprep.subr.mxu0 0.0
      %2855 = vmatpush2.xpose.msra.mxu0 0.0
      %2856 = vmatprep.subr.mxu0 0.0
      %2857 = vmatpush2.xpose.msra.mxu0 0.0
      %2858 = vmatprep.subr.mxu0 0.0
      %2859 = vmatpush2.xpose.msra.mxu0 0.0
      %2860 = vmatprep.subr.mxu0 0.0
      %2861 = vmatpush2.xpose.msra.mxu0 0.0
      %2862 = vmatprep.subr.mxu0 0.0
      %2863 = vmatpush2.xpose.msra.mxu0 0.0
      %2864 = vmatprep.subr.mxu0 0.0
      %2865 = vmatpush2.xpose.msra.mxu0 0.0
      %2866 = vmatprep.subr.mxu0 0.0
      %2867 = vmatpush2.xpose.msra.mxu0 0.0
      %2868 = vmatprep.subr.mxu0 0.0
      %2869 = vmatpush2.xpose.msra.mxu0 0.0
      %2870 = vmatprep.subr.mxu0 0.0
      %2871 = vmatpush2.xpose.msra.mxu0 0.0
      %2872 = vmatprep.mubr.f32.mxu0 0.0
      %2873 = vmatmul.mubr.f32.gmra.mxu0 %v2804
      %v2874 = vpop.f32.mrf.mxu0
      %v2875 = vadd.f32 0.0, %v2874
      %v2876 = vpop.f32.mrf.mxu0
      %2877 = vdwg.mxu0
      %2879 = vrot.lane.b32.xlu0 %v2639, 96
      %v2880 = vpop.permute.xlu0 %2879
      %v2881 = vsel %vm605, %v2639, 0
      %v2883 = vsel %vm605, %v2880, 0
      %2885 = vmatprep.subr.mxu0 0.0
      %2886 = vmatpush1.xpose.msra.mxu0 0.0
      %2887 = vmatprep.subr.mxu0 0.0
      %2888 = vmatpush1.xpose.msra.mxu0 0.0
      %2889 = vmatprep.subr.mxu0 0.0
      %2890 = vmatpush1.xpose.msra.mxu0 0.0
      %2891 = vmatprep.subr.mxu0 0.0
      %2892 = vmatpush1.xpose.msra.mxu0 0.0
      %2893 = vmatprep.subr.mxu0 0.0
      %2894 = vmatpush1.xpose.msra.mxu0 0.0
      %2895 = vmatprep.subr.mxu0 0.0
      %2896 = vmatpush1.xpose.msra.mxu0 0.0
      %2897 = vmatprep.subr.mxu0 0.0
      %2898 = vmatpush1.xpose.msra.mxu0 0.0
      %2899 = vmatprep.subr.mxu0 0.0
      %2900 = vmatpush1.xpose.msra.mxu0 0.0
      %2901 = vmatprep.subr.mxu0 0.0
      %2902 = vmatpush1.xpose.msra.mxu0 0.0
      %2903 = vmatprep.subr.mxu0 0.0
      %2904 = vmatpush1.xpose.msra.mxu0 0.0
      %2905 = vmatprep.subr.mxu0 0.0
      %2906 = vmatpush1.xpose.msra.mxu0 0.0
      %2907 = vmatprep.subr.mxu0 0.0
      %2908 = vmatpush1.xpose.msra.mxu0 0.0
      %2909 = vmatprep.subr.mxu0 0.0
      %2910 = vmatpush1.xpose.msra.mxu0 0.0
      %2911 = vmatprep.subr.mxu0 0.0
      %2912 = vmatpush1.xpose.msra.mxu0 0.0
      %2913 = vmatprep.subr.mxu0 0.0
      %2914 = vmatpush1.xpose.msra.mxu0 0.0
      %2915 = vmatprep.subr.mxu0 0.0
      %2916 = vmatpush1.xpose.msra.mxu0 %v2883
      %2917 = vmatprep.subr.mxu0 0.0
      %2918 = vmatpush2.xpose.msra.mxu0 0.0
      %2919 = vmatprep.subr.mxu0 0.0
      %2920 = vmatpush2.xpose.msra.mxu0 0.0
      %2921 = vmatprep.subr.mxu0 0.0
      %2922 = vmatpush2.xpose.msra.mxu0 0.0
      %2923 = vmatprep.subr.mxu0 0.0
      %2924 = vmatpush2.xpose.msra.mxu0 0.0
      %2925 = vmatprep.subr.mxu0 0.0
      %2926 = vmatpush2.xpose.msra.mxu0 0.0
      %2927 = vmatprep.subr.mxu0 0.0
      %2928 = vmatpush2.xpose.msra.mxu0 0.0
      %2929 = vmatprep.subr.mxu0 0.0
      %2930 = vmatpush2.xpose.msra.mxu0 0.0
      %2931 = vmatprep.subr.mxu0 0.0
      %2932 = vmatpush2.xpose.msra.mxu0 0.0
      %2933 = vmatprep.subr.mxu0 0.0
      %2934 = vmatpush2.xpose.msra.mxu0 0.0
      %2935 = vmatprep.subr.mxu0 0.0
      %2936 = vmatpush2.xpose.msra.mxu0 0.0
      %2937 = vmatprep.subr.mxu0 0.0
      %2938 = vmatpush2.xpose.msra.mxu0 0.0
      %2939 = vmatprep.subr.mxu0 0.0
      %2940 = vmatpush2.xpose.msra.mxu0 0.0
      %2941 = vmatprep.subr.mxu0 0.0
      %2942 = vmatpush2.xpose.msra.mxu0 0.0
      %2943 = vmatprep.subr.mxu0 0.0
      %2944 = vmatpush2.xpose.msra.mxu0 0.0
      %2945 = vmatprep.subr.mxu0 0.0
      %2946 = vmatpush2.xpose.msra.mxu0 0.0
      %2947 = vmatprep.subr.mxu0 0.0
      %2948 = vmatpush2.xpose.msra.mxu0 0.0
      %2949 = vmatprep.mubr.f32.mxu0 0.0
      %2950 = vmatmul.mubr.f32.gmra.mxu0 %v2881
      %v2951 = vpop.f32.mrf.mxu0
      %v2952 = vadd.f32 0.0, %v2951
      %v2953 = vpop.f32.mrf.mxu0
      %2954 = vdwg.mxu0
      %v2955 = vmul.f32 %v2721, 0.25
      %v2956 = vmul.f32 %v2798, 0.25
      %v2957 = vmul.f32 %v2875, 0.25
      %v2958 = vmul.f32 %v2952, 0.25
      %v2959 = vsel %vm915, %v2955, -inf
      %2960 = vmax.xlane.f32.xlu0 %v2959
      %v2961 = vpop.xlane.xlu0 %2960
      %v2962 = vsel %vm915, %v2956, -inf
      %2963 = vmax.xlane.f32.xlu0 %v2962
      %v2964 = vpop.xlane.xlu0 %2963
      %v2965 = vsel %vm915, %v2957, -inf
      %2966 = vmax.xlane.f32.xlu0 %v2965
      %v2967 = vpop.xlane.xlu0 %2966
      %v2968 = vsel %vm915, %v2958, -inf
      %2969 = vmax.xlane.f32.xlu0 %v2968
      %v2970 = vpop.xlane.xlu0 %2969
      %v2971 = vsub.f32 %v2955, %v2961
      %v2972 = vsub.f32 %v2956, %v2964
      %v2973 = vsub.f32 %v2957, %v2967
      %v2974 = vsub.f32 %v2958, %v2970
      %v2975 = vmul.f32 %v2971, 1.442695
      %v2976 = vpow.pop %v2975
      %v2977 = vmul.f32 %v2972, 1.442695
      %v2978 = vpow.pop %v2977
      %v2979 = vmul.f32 %v2973, 1.442695
      %v2980 = vpow.pop %v2979
      %v2981 = vmul.f32 %v2974, 1.442695
      %v2982 = vpow.pop %v2981
      %v2983 = vsel %vm915, %v2976, 0.0
      %2984 = vadd.xlane.f32.xlu0 %v2983
      %v2985 = vpop.xlane.xlu0 %2984
      %v2986 = vsel %vm915, %v2978, 0.0
      %2987 = vadd.xlane.f32.xlu0 %v2986
      %v2988 = vpop.xlane.xlu0 %2987
      %v2989 = vsel %vm915, %v2980, 0.0
      %2990 = vadd.xlane.f32.xlu0 %v2989
      %v2991 = vpop.xlane.xlu0 %2990
      %v2992 = vsel %vm915, %v2982, 0.0
      %2993 = vadd.xlane.f32.xlu0 %v2992
      %v2994 = vpop.xlane.xlu0 %2993
      %v2995 = vrcp.pop %v2985
      %v2996 = vrcp.pop %v2988
      %v2997 = vrcp.pop %v2991
      %v2998 = vrcp.pop %v2994
      %v2999 = vmul.f32 %v2976, %v2995
      %v3000 = vmul.f32 %v2978, %v2996
      %v3001 = vmul.f32 %v2980, %v2997
      %v3002 = vmul.f32 %v2982, %v2998
      %3003 = vrot.lane.b32.xlu0 %v2624, 64
      %v3004 = vpop.permute.xlu0 %3003
      %v3007 = vsel %vm915, %v2999, 0
      %3009 = vmatprep.subr.mxu0 0.0
      %3010 = vmatpush1.msra.mxu0 0.0
      %3011 = vmatprep.subr.mxu0 0.0
      %3012 = vmatpush1.msra.mxu0 0.0
      %3013 = vmatprep.subr.mxu0 0.0
      %3014 = vmatpush1.msra.mxu0 0.0
      %3015 = vmatprep.subr.mxu0 0.0
      %3016 = vmatpush1.msra.mxu0 0.0
      %3017 = vmatprep.subr.mxu0 0.0
      %3018 = vmatpush1.msra.mxu0 0.0
      %3019 = vmatprep.subr.mxu0 0.0
      %3020 = vmatpush1.msra.mxu0 0.0
      %3021 = vmatprep.subr.mxu0 0.0
      %3022 = vmatpush1.msra.mxu0 0.0
      %3023 = vmatprep.subr.mxu0 0.0
      %3024 = vmatpush1.msra.mxu0 0.0
      %3025 = vmatprep.subr.mxu0 0.0
      %3026 = vmatpush1.msra.mxu0 0.0
      %3027 = vmatprep.subr.mxu0 0.0
      %3028 = vmatpush1.msra.mxu0 0.0
      %3029 = vmatprep.subr.mxu0 0.0
      %3030 = vmatpush1.msra.mxu0 0.0
      %3031 = vmatprep.subr.mxu0 0.0
      %3032 = vmatpush1.msra.mxu0 0.0
      %3033 = vmatprep.subr.mxu0 0.0
      %3034 = vmatpush1.msra.mxu0 0.0
      %3035 = vmatprep.subr.mxu0 0.0
      %3036 = vmatpush1.msra.mxu0 0.0
      %3037 = vmatprep.subr.mxu0 0.0
      %3038 = vmatpush1.msra.mxu0 0.0
      %3039 = vmatprep.subr.mxu0 0.0
      %3040 = vmatpush1.msra.mxu0 %v3004
      %3041 = vmatprep.subr.mxu0 0.0
      %3042 = vmatpush2.msra.mxu0 0.0
      %3043 = vmatprep.subr.mxu0 0.0
      %3044 = vmatpush2.msra.mxu0 0.0
      %3045 = vmatprep.subr.mxu0 0.0
      %3046 = vmatpush2.msra.mxu0 0.0
      %3047 = vmatprep.subr.mxu0 0.0
      %3048 = vmatpush2.msra.mxu0 0.0
      %3049 = vmatprep.subr.mxu0 0.0
      %3050 = vmatpush2.msra.mxu0 0.0
      %3051 = vmatprep.subr.mxu0 0.0
      %3052 = vmatpush2.msra.mxu0 0.0
      %3053 = vmatprep.subr.mxu0 0.0
      %3054 = vmatpush2.msra.mxu0 0.0
      %3055 = vmatprep.subr.mxu0 0.0
      %3056 = vmatpush2.msra.mxu0 0.0
      %3057 = vmatprep.subr.mxu0 0.0
      %3058 = vmatpush2.msra.mxu0 0.0
      %3059 = vmatprep.subr.mxu0 0.0
      %3060 = vmatpush2.msra.mxu0 0.0
      %3061 = vmatprep.subr.mxu0 0.0
      %3062 = vmatpush2.msra.mxu0 0.0
      %3063 = vmatprep.subr.mxu0 0.0
      %3064 = vmatpush2.msra.mxu0 0.0
      %3065 = vmatprep.subr.mxu0 0.0
      %3066 = vmatpush2.msra.mxu0 0.0
      %3067 = vmatprep.subr.mxu0 0.0
      %3068 = vmatpush2.msra.mxu0 0.0
      %3069 = vmatprep.subr.mxu0 0.0
      %3070 = vmatpush2.msra.mxu0 0.0
      %3071 = vmatprep.subr.mxu0 0.0
      %3072 = vmatpush2.msra.mxu0 0.0
      %3073 = vmatprep.mubr.f32.mxu0 0.0
      %3074 = vmatmul.mubr.f32.gmra.mxu0 %v3007
      %v3075 = vpop.f32.mrf.mxu0
      %v3076 = vadd.f32 0.0, %v3075
      %v3077 = vpop.f32.mrf.mxu0
      %3078 = vdwg.mxu0
      %3079 = vrot.lane.b32.xlu0 %v2629, 64
      %v3080 = vpop.permute.xlu0 %3079
      %v3083 = vsel %vm915, %v3000, 0
      %3085 = vmatprep.subr.mxu0 0.0
      %3086 = vmatpush1.msra.mxu0 0.0
      %3087 = vmatprep.subr.mxu0 0.0
      %3088 = vmatpush1.msra.mxu0 0.0
      %3089 = vmatprep.subr.mxu0 0.0
      %3090 = vmatpush1.msra.mxu0 0.0
      %3091 = vmatprep.subr.mxu0 0.0
      %3092 = vmatpush1.msra.mxu0 0.0
      %3093 = vmatprep.subr.mxu0 0.0
      %3094 = vmatpush1.msra.mxu0 0.0
      %3095 = vmatprep.subr.mxu0 0.0
      %3096 = vmatpush1.msra.mxu0 0.0
      %3097 = vmatprep.subr.mxu0 0.0
      %3098 = vmatpush1.msra.mxu0 0.0
      %3099 = vmatprep.subr.mxu0 0.0
      %3100 = vmatpush1.msra.mxu0 0.0
      %3101 = vmatprep.subr.mxu0 0.0
      %3102 = vmatpush1.msra.mxu0 0.0
      %3103 = vmatprep.subr.mxu0 0.0
      %3104 = vmatpush1.msra.mxu0 0.0
      %3105 = vmatprep.subr.mxu0 0.0
      %3106 = vmatpush1.msra.mxu0 0.0
      %3107 = vmatprep.subr.mxu0 0.0
      %3108 = vmatpush1.msra.mxu0 0.0
      %3109 = vmatprep.subr.mxu0 0.0
      %3110 = vmatpush1.msra.mxu0 0.0
      %3111 = vmatprep.subr.mxu0 0.0
      %3112 = vmatpush1.msra.mxu0 0.0
      %3113 = vmatprep.subr.mxu0 0.0
      %3114 = vmatpush1.msra.mxu0 0.0
      %3115 = vmatprep.subr.mxu0 0.0
      %3116 = vmatpush1.msra.mxu0 %v3080
      %3117 = vmatprep.subr.mxu0 0.0
      %3118 = vmatpush2.msra.mxu0 0.0
      %3119 = vmatprep.subr.mxu0 0.0
      %3120 = vmatpush2.msra.mxu0 0.0
      %3121 = vmatprep.subr.mxu0 0.0
      %3122 = vmatpush2.msra.mxu0 0.0
      %3123 = vmatprep.subr.mxu0 0.0
      %3124 = vmatpush2.msra.mxu0 0.0
      %3125 = vmatprep.subr.mxu0 0.0
      %3126 = vmatpush2.msra.mxu0 0.0
      %3127 = vmatprep.subr.mxu0 0.0
      %3128 = vmatpush2.msra.mxu0 0.0
      %3129 = vmatprep.subr.mxu0 0.0
      %3130 = vmatpush2.msra.mxu0 0.0
      %3131 = vmatprep.subr.mxu0 0.0
      %3132 = vmatpush2.msra.mxu0 0.0
      %3133 = vmatprep.subr.mxu0 0.0
      %3134 = vmatpush2.msra.mxu0 0.0
      %3135 = vmatprep.subr.mxu0 0.0
      %3136 = vmatpush2.msra.mxu0 0.0
      %3137 = vmatprep.subr.mxu0 0.0
      %3138 = vmatpush2.msra.mxu0 0.0
      %3139 = vmatprep.subr.mxu0 0.0
      %3140 = vmatpush2.msra.mxu0 0.0
      %3141 = vmatprep.subr.mxu0 0.0
      %3142 = vmatpush2.msra.mxu0 0.0
      %3143 = vmatprep.subr.mxu0 0.0
      %3144 = vmatpush2.msra.mxu0 0.0
      %3145 = vmatprep.subr.mxu0 0.0
      %3146 = vmatpush2.msra.mxu0 0.0
      %3147 = vmatprep.subr.mxu0 0.0
      %3148 = vmatpush2.msra.mxu0 0.0
      %3149 = vmatprep.mubr.f32.mxu0 0.0
      %3150 = vmatmul.mubr.f32.gmra.mxu0 %v3083
      %v3151 = vpop.f32.mrf.mxu0
      %v3152 = vadd.f32 0.0, %v3151
      %v3153 = vpop.f32.mrf.mxu0
      %3154 = vdwg.mxu0
      %3155 = vrot.lane.b32.xlu0 %v2634, 64
      %v3156 = vpop.permute.xlu0 %3155
      %v3159 = vsel %vm915, %v3001, 0
      %3161 = vmatprep.subr.mxu0 0.0
      %3162 = vmatpush1.msra.mxu0 0.0
      %3163 = vmatprep.subr.mxu0 0.0
      %3164 = vmatpush1.msra.mxu0 0.0
      %3165 = vmatprep.subr.mxu0 0.0
      %3166 = vmatpush1.msra.mxu0 0.0
      %3167 = vmatprep.subr.mxu0 0.0
      %3168 = vmatpush1.msra.mxu0 0.0
      %3169 = vmatprep.subr.mxu0 0.0
      %3170 = vmatpush1.msra.mxu0 0.0
      %3171 = vmatprep.subr.mxu0 0.0
      %3172 = vmatpush1.msra.mxu0 0.0
      %3173 = vmatprep.subr.mxu0 0.0
      %3174 = vmatpush1.msra.mxu0 0.0
      %3175 = vmatprep.subr.mxu0 0.0
      %3176 = vmatpush1.msra.mxu0 0.0
      %3177 = vmatprep.subr.mxu0 0.0
      %3178 = vmatpush1.msra.mxu0 0.0
      %3179 = vmatprep.subr.mxu0 0.0
      %3180 = vmatpush1.msra.mxu0 0.0
      %3181 = vmatprep.subr.mxu0 0.0
      %3182 = vmatpush1.msra.mxu0 0.0
      %3183 = vmatprep.subr.mxu0 0.0
      %3184 = vmatpush1.msra.mxu0 0.0
      %3185 = vmatprep.subr.mxu0 0.0
      %3186 = vmatpush1.msra.mxu0 0.0
      %3187 = vmatprep.subr.mxu0 0.0
      %3188 = vmatpush1.msra.mxu0 0.0
      %3189 = vmatprep.subr.mxu0 0.0
      %3190 = vmatpush1.msra.mxu0 0.0
      %3191 = vmatprep.subr.mxu0 0.0
      %3192 = vmatpush1.msra.mxu0 %v3156
      %3193 = vmatprep.subr.mxu0 0.0
      %3194 = vmatpush2.msra.mxu0 0.0
      %3195 = vmatprep.subr.mxu0 0.0
      %3196 = vmatpush2.msra.mxu0 0.0
      %3197 = vmatprep.subr.mxu0 0.0
      %3198 = vmatpush2.msra.mxu0 0.0
      %3199 = vmatprep.subr.mxu0 0.0
      %3200 = vmatpush2.msra.mxu0 0.0
      %3201 = vmatprep.subr.mxu0 0.0
      %3202 = vmatpush2.msra.mxu0 0.0
      %3203 = vmatprep.subr.mxu0 0.0
      %3204 = vmatpush2.msra.mxu0 0.0
      %3205 = vmatprep.subr.mxu0 0.0
      %3206 = vmatpush2.msra.mxu0 0.0
      %3207 = vmatprep.subr.mxu0 0.0
      %3208 = vmatpush2.msra.mxu0 0.0
      %3209 = vmatprep.subr.mxu0 0.0
      %3210 = vmatpush2.msra.mxu0 0.0
      %3211 = vmatprep.subr.mxu0 0.0
      %3212 = vmatpush2.msra.mxu0 0.0
      %3213 = vmatprep.subr.mxu0 0.0
      %3214 = vmatpush2.msra.mxu0 0.0
      %3215 = vmatprep.subr.mxu0 0.0
      %3216 = vmatpush2.msra.mxu0 0.0
      %3217 = vmatprep.subr.mxu0 0.0
      %3218 = vmatpush2.msra.mxu0 0.0
      %3219 = vmatprep.subr.mxu0 0.0
      %3220 = vmatpush2.msra.mxu0 0.0
      %3221 = vmatprep.subr.mxu0 0.0
      %3222 = vmatpush2.msra.mxu0 0.0
      %3223 = vmatprep.subr.mxu0 0.0
      %3224 = vmatpush2.msra.mxu0 0.0
      %3225 = vmatprep.mubr.f32.mxu0 0.0
      %3226 = vmatmul.mubr.f32.gmra.mxu0 %v3159
      %v3227 = vpop.f32.mrf.mxu0
      %v3228 = vadd.f32 0.0, %v3227
      %v3229 = vpop.f32.mrf.mxu0
      %3230 = vdwg.mxu0
      %3231 = vrot.lane.b32.xlu0 %v2639, 64
      %v3232 = vpop.permute.xlu0 %3231
      %v3235 = vsel %vm915, %v3002, 0
      %3237 = vmatprep.subr.mxu0 0.0
      %3238 = vmatpush1.msra.mxu0 0.0
      %3239 = vmatprep.subr.mxu0 0.0
      %3240 = vmatpush1.msra.mxu0 0.0
      %3241 = vmatprep.subr.mxu0 0.0
      %3242 = vmatpush1.msra.mxu0 0.0
      %3243 = vmatprep.subr.mxu0 0.0
      %3244 = vmatpush1.msra.mxu0 0.0
      %3245 = vmatprep.subr.mxu0 0.0
      %3246 = vmatpush1.msra.mxu0 0.0
      %3247 = vmatprep.subr.mxu0 0.0
      %3248 = vmatpush1.msra.mxu0 0.0
      %3249 = vmatprep.subr.mxu0 0.0
      %3250 = vmatpush1.msra.mxu0 0.0
      %3251 = vmatprep.subr.mxu0 0.0
      %3252 = vmatpush1.msra.mxu0 0.0
      %3253 = vmatprep.subr.mxu0 0.0
      %3254 = vmatpush1.msra.mxu0 0.0
      %3255 = vmatprep.subr.mxu0 0.0
      %3256 = vmatpush1.msra.mxu0 0.0
      %3257 = vmatprep.subr.mxu0 0.0
      %3258 = vmatpush1.msra.mxu0 0.0
      %3259 = vmatprep.subr.mxu0 0.0
      %3260 = vmatpush1.msra.mxu0 0.0
      %3261 = vmatprep.subr.mxu0 0.0
      %3262 = vmatpush1.msra.mxu0 0.0
      %3263 = vmatprep.subr.mxu0 0.0
      %3264 = vmatpush1.msra.mxu0 0.0
      %3265 = vmatprep.subr.mxu0 0.0
      %3266 = vmatpush1.msra.mxu0 0.0
      %3267 = vmatprep.subr.mxu0 0.0
      %3268 = vmatpush1.msra.mxu0 %v3232
      %3269 = vmatprep.subr.mxu0 0.0
      %3270 = vmatpush2.msra.mxu0 0.0
      %3271 = vmatprep.subr.mxu0 0.0
      %3272 = vmatpush2.msra.mxu0 0.0
      %3273 = vmatprep.subr.mxu0 0.0
      %3274 = vmatpush2.msra.mxu0 0.0
      %3275 = vmatprep.subr.mxu0 0.0
      %3276 = vmatpush2.msra.mxu0 0.0
      %3277 = vmatprep.subr.mxu0 0.0
      %3278 = vmatpush2.msra.mxu0 0.0
      %3279 = vmatprep.subr.mxu0 0.0
      %3280 = vmatpush2.msra.mxu0 0.0
      %3281 = vmatprep.subr.mxu0 0.0
      %3282 = vmatpush2.msra.mxu0 0.0
      %3283 = vmatprep.subr.mxu0 0.0
      %3284 = vmatpush2.msra.mxu0 0.0
      %3285 = vmatprep.subr.mxu0 0.0
      %3286 = vmatpush2.msra.mxu0 0.0
      %3287 = vmatprep.subr.mxu0 0.0
      %3288 = vmatpush2.msra.mxu0 0.0
      %3289 = vmatprep.subr.mxu0 0.0
      %3290 = vmatpush2.msra.mxu0 0.0
      %3291 = vmatprep.subr.mxu0 0.0
      %3292 = vmatpush2.msra.mxu0 0.0
      %3293 = vmatprep.subr.mxu0 0.0
      %3294 = vmatpush2.msra.mxu0 0.0
      %3295 = vmatprep.subr.mxu0 0.0
      %3296 = vmatpush2.msra.mxu0 0.0
      %3297 = vmatprep.subr.mxu0 0.0
      %3298 = vmatpush2.msra.mxu0 0.0
      %3299 = vmatprep.subr.mxu0 0.0
      %3300 = vmatpush2.msra.mxu0 0.0
      %3301 = vmatprep.mubr.f32.mxu0 0.0
      %3302 = vmatmul.mubr.f32.gmra.mxu0 %v3235
      %v3303 = vpop.f32.mrf.mxu0
      %v3304 = vadd.f32 0.0, %v3303
      %v3305 = vpop.f32.mrf.mxu0
      %3306 = vdwg.mxu0
      %3307 = vrot.lane.b32.xlu0 %v2624, 112
      %v3308 = vpop.permute.xlu0 %3307
      %3309 = vrot.lane.b32.xlu0 %v2624, 80
      %v3310 = vpop.permute.xlu0 %3309
      %v3311 = vsel %vm605, %v3308, 0
      %v3313 = vsel %vm605, %v3310, 0
      %3315 = vmatprep.subr.mxu0 0.0
      %3316 = vmatpush1.xpose.msra.mxu0 0.0
      %3317 = vmatprep.subr.mxu0 0.0
      %3318 = vmatpush1.xpose.msra.mxu0 0.0
      %3319 = vmatprep.subr.mxu0 0.0
      %3320 = vmatpush1.xpose.msra.mxu0 0.0
      %3321 = vmatprep.subr.mxu0 0.0
      %3322 = vmatpush1.xpose.msra.mxu0 0.0
      %3323 = vmatprep.subr.mxu0 0.0
      %3324 = vmatpush1.xpose.msra.mxu0 0.0
      %3325 = vmatprep.subr.mxu0 0.0
      %3326 = vmatpush1.xpose.msra.mxu0 0.0
      %3327 = vmatprep.subr.mxu0 0.0
      %3328 = vmatpush1.xpose.msra.mxu0 0.0
      %3329 = vmatprep.subr.mxu0 0.0
      %3330 = vmatpush1.xpose.msra.mxu0 0.0
      %3331 = vmatprep.subr.mxu0 0.0
      %3332 = vmatpush1.xpose.msra.mxu0 0.0
      %3333 = vmatprep.subr.mxu0 0.0
      %3334 = vmatpush1.xpose.msra.mxu0 0.0
      %3335 = vmatprep.subr.mxu0 0.0
      %3336 = vmatpush1.xpose.msra.mxu0 0.0
      %3337 = vmatprep.subr.mxu0 0.0
      %3338 = vmatpush1.xpose.msra.mxu0 0.0
      %3339 = vmatprep.subr.mxu0 0.0
      %3340 = vmatpush1.xpose.msra.mxu0 0.0
      %3341 = vmatprep.subr.mxu0 0.0
      %3342 = vmatpush1.xpose.msra.mxu0 0.0
      %3343 = vmatprep.subr.mxu0 0.0
      %3344 = vmatpush1.xpose.msra.mxu0 0.0
      %3345 = vmatprep.subr.mxu0 0.0
      %3346 = vmatpush1.xpose.msra.mxu0 %v3313
      %3347 = vmatprep.subr.mxu0 0.0
      %3348 = vmatpush2.xpose.msra.mxu0 0.0
      %3349 = vmatprep.subr.mxu0 0.0
      %3350 = vmatpush2.xpose.msra.mxu0 0.0
      %3351 = vmatprep.subr.mxu0 0.0
      %3352 = vmatpush2.xpose.msra.mxu0 0.0
      %3353 = vmatprep.subr.mxu0 0.0
      %3354 = vmatpush2.xpose.msra.mxu0 0.0
      %3355 = vmatprep.subr.mxu0 0.0
      %3356 = vmatpush2.xpose.msra.mxu0 0.0
      %3357 = vmatprep.subr.mxu0 0.0
      %3358 = vmatpush2.xpose.msra.mxu0 0.0
      %3359 = vmatprep.subr.mxu0 0.0
      %3360 = vmatpush2.xpose.msra.mxu0 0.0
      %3361 = vmatprep.subr.mxu0 0.0
      %3362 = vmatpush2.xpose.msra.mxu0 0.0
      %3363 = vmatprep.subr.mxu0 0.0
      %3364 = vmatpush2.xpose.msra.mxu0 0.0
      %3365 = vmatprep.subr.mxu0 0.0
      %3366 = vmatpush2.xpose.msra.mxu0 0.0
      %3367 = vmatprep.subr.mxu0 0.0
      %3368 = vmatpush2.xpose.msra.mxu0 0.0
      %3369 = vmatprep.subr.mxu0 0.0
      %3370 = vmatpush2.xpose.msra.mxu0 0.0
      %3371 = vmatprep.subr.mxu0 0.0
      %3372 = vmatpush2.xpose.msra.mxu0 0.0
      %3373 = vmatprep.subr.mxu0 0.0
      %3374 = vmatpush2.xpose.msra.mxu0 0.0
      %3375 = vmatprep.subr.mxu0 0.0
      %3376 = vmatpush2.xpose.msra.mxu0 0.0
      %3377 = vmatprep.subr.mxu0 0.0
      %3378 = vmatpush2.xpose.msra.mxu0 0.0
      %3379 = vmatprep.mubr.f32.mxu0 0.0
      %3380 = vmatmul.mubr.f32.gmra.mxu0 %v3311
      %v3381 = vpop.f32.mrf.mxu0
      %v3382 = vadd.f32 0.0, %v3381
      %v3383 = vpop.f32.mrf.mxu0
      %3384 = vdwg.mxu0
      %3385 = vrot.lane.b32.xlu0 %v2629, 112
      %v3386 = vpop.permute.xlu0 %3385
      %3387 = vrot.lane.b32.xlu0 %v2629, 80
      %v3388 = vpop.permute.xlu0 %3387
      %v3389 = vsel %vm605, %v3386, 0
      %v3391 = vsel %vm605, %v3388, 0
      %3393 = vmatprep.subr.mxu0 0.0
      %3394 = vmatpush1.xpose.msra.mxu0 0.0
      %3395 = vmatprep.subr.mxu0 0.0
      %3396 = vmatpush1.xpose.msra.mxu0 0.0
      %3397 = vmatprep.subr.mxu0 0.0
      %3398 = vmatpush1.xpose.msra.mxu0 0.0
      %3399 = vmatprep.subr.mxu0 0.0
      %3400 = vmatpush1.xpose.msra.mxu0 0.0
      %3401 = vmatprep.subr.mxu0 0.0
      %3402 = vmatpush1.xpose.msra.mxu0 0.0
      %3403 = vmatprep.subr.mxu0 0.0
      %3404 = vmatpush1.xpose.msra.mxu0 0.0
      %3405 = vmatprep.subr.mxu0 0.0
      %3406 = vmatpush1.xpose.msra.mxu0 0.0
      %3407 = vmatprep.subr.mxu0 0.0
      %3408 = vmatpush1.xpose.msra.mxu0 0.0
      %3409 = vmatprep.subr.mxu0 0.0
      %3410 = vmatpush1.xpose.msra.mxu0 0.0
      %3411 = vmatprep.subr.mxu0 0.0
      %3412 = vmatpush1.xpose.msra.mxu0 0.0
      %3413 = vmatprep.subr.mxu0 0.0
      %3414 = vmatpush1.xpose.msra.mxu0 0.0
      %3415 = vmatprep.subr.mxu0 0.0
      %3416 = vmatpush1.xpose.msra.mxu0 0.0
      %3417 = vmatprep.subr.mxu0 0.0
      %3418 = vmatpush1.xpose.msra.mxu0 0.0
      %3419 = vmatprep.subr.mxu0 0.0
      %3420 = vmatpush1.xpose.msra.mxu0 0.0
      %3421 = vmatprep.subr.mxu0 0.0
      %3422 = vmatpush1.xpose.msra.mxu0 0.0
      %3423 = vmatprep.subr.mxu0 0.0
      %3424 = vmatpush1.xpose.msra.mxu0 %v3391
      %3425 = vmatprep.subr.mxu0 0.0
      %3426 = vmatpush2.xpose.msra.mxu0 0.0
      %3427 = vmatprep.subr.mxu0 0.0
      %3428 = vmatpush2.xpose.msra.mxu0 0.0
      %3429 = vmatprep.subr.mxu0 0.0
      %3430 = vmatpush2.xpose.msra.mxu0 0.0
      %3431 = vmatprep.subr.mxu0 0.0
      %3432 = vmatpush2.xpose.msra.mxu0 0.0
      %3433 = vmatprep.subr.mxu0 0.0
      %3434 = vmatpush2.xpose.msra.mxu0 0.0
      %3435 = vmatprep.subr.mxu0 0.0
      %3436 = vmatpush2.xpose.msra.mxu0 0.0
      %3437 = vmatprep.subr.mxu0 0.0
      %3438 = vmatpush2.xpose.msra.mxu0 0.0
      %3439 = vmatprep.subr.mxu0 0.0
      %3440 = vmatpush2.xpose.msra.mxu0 0.0
      %3441 = vmatprep.subr.mxu0 0.0
      %3442 = vmatpush2.xpose.msra.mxu0 0.0
      %3443 = vmatprep.subr.mxu0 0.0
      %3444 = vmatpush2.xpose.msra.mxu0 0.0
      %3445 = vmatprep.subr.mxu0 0.0
      %3446 = vmatpush2.xpose.msra.mxu0 0.0
      %3447 = vmatprep.subr.mxu0 0.0
      %3448 = vmatpush2.xpose.msra.mxu0 0.0
      %3449 = vmatprep.subr.mxu0 0.0
      %3450 = vmatpush2.xpose.msra.mxu0 0.0
      %3451 = vmatprep.subr.mxu0 0.0
      %3452 = vmatpush2.xpose.msra.mxu0 0.0
      %3453 = vmatprep.subr.mxu0 0.0
      %3454 = vmatpush2.xpose.msra.mxu0 0.0
      %3455 = vmatprep.subr.mxu0 0.0
      %3456 = vmatpush2.xpose.msra.mxu0 0.0
      %3457 = vmatprep.mubr.f32.mxu0 0.0
      %3458 = vmatmul.mubr.f32.gmra.mxu0 %v3389
      %v3459 = vpop.f32.mrf.mxu0
      %v3460 = vadd.f32 0.0, %v3459
      %v3461 = vpop.f32.mrf.mxu0
      %3462 = vdwg.mxu0
      %3463 = vrot.lane.b32.xlu0 %v2634, 112
      %v3464 = vpop.permute.xlu0 %3463
      %3465 = vrot.lane.b32.xlu0 %v2634, 80
      %v3466 = vpop.permute.xlu0 %3465
      %v3467 = vsel %vm605, %v3464, 0
      %v3469 = vsel %vm605, %v3466, 0
      %3471 = vmatprep.subr.mxu0 0.0
      %3472 = vmatpush1.xpose.msra.mxu0 0.0
      %3473 = vmatprep.subr.mxu0 0.0
      %3474 = vmatpush1.xpose.msra.mxu0 0.0
      %3475 = vmatprep.subr.mxu0 0.0
      %3476 = vmatpush1.xpose.msra.mxu0 0.0
      %3477 = vmatprep.subr.mxu0 0.0
      %3478 = vmatpush1.xpose.msra.mxu0 0.0
      %3479 = vmatprep.subr.mxu0 0.0
      %3480 = vmatpush1.xpose.msra.mxu0 0.0
      %3481 = vmatprep.subr.mxu0 0.0
      %3482 = vmatpush1.xpose.msra.mxu0 0.0
      %3483 = vmatprep.subr.mxu0 0.0
      %3484 = vmatpush1.xpose.msra.mxu0 0.0
      %3485 = vmatprep.subr.mxu0 0.0
      %3486 = vmatpush1.xpose.msra.mxu0 0.0
      %3487 = vmatprep.subr.mxu0 0.0
      %3488 = vmatpush1.xpose.msra.mxu0 0.0
      %3489 = vmatprep.subr.mxu0 0.0
      %3490 = vmatpush1.xpose.msra.mxu0 0.0
      %3491 = vmatprep.subr.mxu0 0.0
      %3492 = vmatpush1.xpose.msra.mxu0 0.0
      %3493 = vmatprep.subr.mxu0 0.0
      %3494 = vmatpush1.xpose.msra.mxu0 0.0
      %3495 = vmatprep.subr.mxu0 0.0
      %3496 = vmatpush1.xpose.msra.mxu0 0.0
      %3497 = vmatprep.subr.mxu0 0.0
      %3498 = vmatpush1.xpose.msra.mxu0 0.0
      %3499 = vmatprep.subr.mxu0 0.0
      %3500 = vmatpush1.xpose.msra.mxu0 0.0
      %3501 = vmatprep.subr.mxu0 0.0
      %3502 = vmatpush1.xpose.msra.mxu0 %v3469
      %3503 = vmatprep.subr.mxu0 0.0
      %3504 = vmatpush2.xpose.msra.mxu0 0.0
      %3505 = vmatprep.subr.mxu0 0.0
      %3506 = vmatpush2.xpose.msra.mxu0 0.0
      %3507 = vmatprep.subr.mxu0 0.0
      %3508 = vmatpush2.xpose.msra.mxu0 0.0
      %3509 = vmatprep.subr.mxu0 0.0
      %3510 = vmatpush2.xpose.msra.mxu0 0.0
      %3511 = vmatprep.subr.mxu0 0.0
      %3512 = vmatpush2.xpose.msra.mxu0 0.0
      %3513 = vmatprep.subr.mxu0 0.0
      %3514 = vmatpush2.xpose.msra.mxu0 0.0
      %3515 = vmatprep.subr.mxu0 0.0
      %3516 = vmatpush2.xpose.msra.mxu0 0.0
      %3517 = vmatprep.subr.mxu0 0.0
      %3518 = vmatpush2.xpose.msra.mxu0 0.0
      %3519 = vmatprep.subr.mxu0 0.0
      %3520 = vmatpush2.xpose.msra.mxu0 0.0
      %3521 = vmatprep.subr.mxu0 0.0
      %3522 = vmatpush2.xpose.msra.mxu0 0.0
      %3523 = vmatprep.subr.mxu0 0.0
      %3524 = vmatpush2.xpose.msra.mxu0 0.0
      %3525 = vmatprep.subr.mxu0 0.0
      %3526 = vmatpush2.xpose.msra.mxu0 0.0
      %3527 = vmatprep.subr.mxu0 0.0
      %3528 = vmatpush2.xpose.msra.mxu0 0.0
      %3529 = vmatprep.subr.mxu0 0.0
      %3530 = vmatpush2.xpose.msra.mxu0 0.0
      %3531 = vmatprep.subr.mxu0 0.0
      %3532 = vmatpush2.xpose.msra.mxu0 0.0
      %3533 = vmatprep.subr.mxu0 0.0
      %3534 = vmatpush2.xpose.msra.mxu0 0.0
      %3535 = vmatprep.mubr.f32.mxu0 0.0
      %3536 = vmatmul.mubr.f32.gmra.mxu0 %v3467
      %v3537 = vpop.f32.mrf.mxu0
      %v3538 = vadd.f32 0.0, %v3537
      %v3539 = vpop.f32.mrf.mxu0
      %3540 = vdwg.mxu0
      %3541 = vrot.lane.b32.xlu0 %v2639, 112
      %v3542 = vpop.permute.xlu0 %3541
      %3543 = vrot.lane.b32.xlu0 %v2639, 80
      %v3544 = vpop.permute.xlu0 %3543
      %v3545 = vsel %vm605, %v3542, 0
      %v3547 = vsel %vm605, %v3544, 0
      %3549 = vmatprep.subr.mxu0 0.0
      %3550 = vmatpush1.xpose.msra.mxu0 0.0
      %3551 = vmatprep.subr.mxu0 0.0
      %3552 = vmatpush1.xpose.msra.mxu0 0.0
      %3553 = vmatprep.subr.mxu0 0.0
      %3554 = vmatpush1.xpose.msra.mxu0 0.0
      %3555 = vmatprep.subr.mxu0 0.0
      %3556 = vmatpush1.xpose.msra.mxu0 0.0
      %3557 = vmatprep.subr.mxu0 0.0
      %3558 = vmatpush1.xpose.msra.mxu0 0.0
      %3559 = vmatprep.subr.mxu0 0.0
      %3560 = vmatpush1.xpose.msra.mxu0 0.0
      %3561 = vmatprep.subr.mxu0 0.0
      %3562 = vmatpush1.xpose.msra.mxu0 0.0
      %3563 = vmatprep.subr.mxu0 0.0
      %3564 = vmatpush1.xpose.msra.mxu0 0.0
      %3565 = vmatprep.subr.mxu0 0.0
      %3566 = vmatpush1.xpose.msra.mxu0 0.0
      %3567 = vmatprep.subr.mxu0 0.0
      %3568 = vmatpush1.xpose.msra.mxu0 0.0
      %3569 = vmatprep.subr.mxu0 0.0
      %3570 = vmatpush1.xpose.msra.mxu0 0.0
      %3571 = vmatprep.subr.mxu0 0.0
      %3572 = vmatpush1.xpose.msra.mxu0 0.0
      %3573 = vmatprep.subr.mxu0 0.0
      %3574 = vmatpush1.xpose.msra.mxu0 0.0
      %3575 = vmatprep.subr.mxu0 0.0
      %3576 = vmatpush1.xpose.msra.mxu0 0.0
      %3577 = vmatprep.subr.mxu0 0.0
      %3578 = vmatpush1.xpose.msra.mxu0 0.0
      %3579 = vmatprep.subr.mxu0 0.0
      %3580 = vmatpush1.xpose.msra.mxu0 %v3547
      %3581 = vmatprep.subr.mxu0 0.0
      %3582 = vmatpush2.xpose.msra.mxu0 0.0
      %3583 = vmatprep.subr.mxu0 0.0
      %3584 = vmatpush2.xpose.msra.mxu0 0.0
      %3585 = vmatprep.subr.mxu0 0.0
      %3586 = vmatpush2.xpose.msra.mxu0 0.0
      %3587 = vmatprep.subr.mxu0 0.0
      %3588 = vmatpush2.xpose.msra.mxu0 0.0
      %3589 = vmatprep.subr.mxu0 0.0
      %3590 = vmatpush2.xpose.msra.mxu0 0.0
      %3591 = vmatprep.subr.mxu0 0.0
      %3592 = vmatpush2.xpose.msra.mxu0 0.0
      %3593 = vmatprep.subr.mxu0 0.0
      %3594 = vmatpush2.xpose.msra.mxu0 0.0
      %3595 = vmatprep.subr.mxu0 0.0
      %3596 = vmatpush2.xpose.msra.mxu0 0.0
      %3597 = vmatprep.subr.mxu0 0.0
      %3598 = vmatpush2.xpose.msra.mxu0 0.0
      %3599 = vmatprep.subr.mxu0 0.0
      %3600 = vmatpush2.xpose.msra.mxu0 0.0
      %3601 = vmatprep.subr.mxu0 0.0
      %3602 = vmatpush2.xpose.msra.mxu0 0.0
      %3603 = vmatprep.subr.mxu0 0.0
      %3604 = vmatpush2.xpose.msra.mxu0 0.0
      %3605 = vmatprep.subr.mxu0 0.0
      %3606 = vmatpush2.xpose.msra.mxu0 0.0
      %3607 = vmatprep.subr.mxu0 0.0
      %3608 = vmatpush2.xpose.msra.mxu0 0.0
      %3609 = vmatprep.subr.mxu0 0.0
      %3610 = vmatpush2.xpose.msra.mxu0 0.0
      %3611 = vmatprep.subr.mxu0 0.0
      %3612 = vmatpush2.xpose.msra.mxu0 0.0
      %3613 = vmatprep.mubr.f32.mxu0 0.0
      %3614 = vmatmul.mubr.f32.gmra.mxu0 %v3545
      %v3615 = vpop.f32.mrf.mxu0
      %v3616 = vadd.f32 0.0, %v3615
      %v3617 = vpop.f32.mrf.mxu0
      %3618 = vdwg.mxu0
      %v3619 = vmul.f32 %v3382, 0.25
      %v3620 = vmul.f32 %v3460, 0.25
      %v3621 = vmul.f32 %v3538, 0.25
      %v3622 = vmul.f32 %v3616, 0.25
      %v3623 = vsel %vm915, %v3619, -inf
      %3624 = vmax.xlane.f32.xlu0 %v3623
      %v3625 = vpop.xlane.xlu0 %3624
      %v3626 = vsel %vm915, %v3620, -inf
      %3627 = vmax.xlane.f32.xlu0 %v3626
      %v3628 = vpop.xlane.xlu0 %3627
      %v3629 = vsel %vm915, %v3621, -inf
      %3630 = vmax.xlane.f32.xlu0 %v3629
      %v3631 = vpop.xlane.xlu0 %3630
      %v3632 = vsel %vm915, %v3622, -inf
      %3633 = vmax.xlane.f32.xlu0 %v3632
      %v3634 = vpop.xlane.xlu0 %3633
      %v3635 = vsub.f32 %v3619, %v3625
      %v3636 = vsub.f32 %v3620, %v3628
      %v3637 = vsub.f32 %v3621, %v3631
      %v3638 = vsub.f32 %v3622, %v3634
      %v3639 = vmul.f32 %v3635, 1.442695
      %v3640 = vpow.pop %v3639
      %v3641 = vmul.f32 %v3636, 1.442695
      %v3642 = vpow.pop %v3641
      %v3643 = vmul.f32 %v3637, 1.442695
      %v3644 = vpow.pop %v3643
      %v3645 = vmul.f32 %v3638, 1.442695
      %v3646 = vpow.pop %v3645
      %v3647 = vsel %vm915, %v3640, 0.0
      %3648 = vadd.xlane.f32.xlu0 %v3647
      %v3649 = vpop.xlane.xlu0 %3648
      %v3650 = vsel %vm915, %v3642, 0.0
      %3651 = vadd.xlane.f32.xlu0 %v3650
      %v3652 = vpop.xlane.xlu0 %3651
      %v3653 = vsel %vm915, %v3644, 0.0
      %3654 = vadd.xlane.f32.xlu0 %v3653
      %v3655 = vpop.xlane.xlu0 %3654
      %v3656 = vsel %vm915, %v3646, 0.0
      %3657 = vadd.xlane.f32.xlu0 %v3656
      %v3658 = vpop.xlane.xlu0 %3657
      %v3659 = vrcp.pop %v3649
      %v3660 = vrcp.pop %v3652
      %v3661 = vrcp.pop %v3655
      %v3662 = vrcp.pop %v3658
      %v3663 = vmul.f32 %v3640, %v3659
      %v3664 = vmul.f32 %v3642, %v3660
      %v3665 = vmul.f32 %v3644, %v3661
      %v3666 = vmul.f32 %v3646, %v3662
      %3667 = vrot.lane.b32.xlu0 %v2624, 48
      %v3668 = vpop.permute.xlu0 %3667
      %v3671 = vsel %vm915, %v3663, 0
      %3673 = vmatprep.subr.mxu0 0.0
      %3674 = vmatpush1.msra.mxu0 0.0
      %3675 = vmatprep.subr.mxu0 0.0
      %3676 = vmatpush1.msra.mxu0 0.0
      %3677 = vmatprep.subr.mxu0 0.0
      %3678 = vmatpush1.msra.mxu0 0.0
      %3679 = vmatprep.subr.mxu0 0.0
      %3680 = vmatpush1.msra.mxu0 0.0
      %3681 = vmatprep.subr.mxu0 0.0
      %3682 = vmatpush1.msra.mxu0 0.0
      %3683 = vmatprep.subr.mxu0 0.0
      %3684 = vmatpush1.msra.mxu0 0.0
      %3685 = vmatprep.subr.mxu0 0.0
      %3686 = vmatpush1.msra.mxu0 0.0
      %3687 = vmatprep.subr.mxu0 0.0
      %3688 = vmatpush1.msra.mxu0 0.0
      %3689 = vmatprep.subr.mxu0 0.0
      %3690 = vmatpush1.msra.mxu0 0.0
      %3691 = vmatprep.subr.mxu0 0.0
      %3692 = vmatpush1.msra.mxu0 0.0
      %3693 = vmatprep.subr.mxu0 0.0
      %3694 = vmatpush1.msra.mxu0 0.0
      %3695 = vmatprep.subr.mxu0 0.0
      %3696 = vmatpush1.msra.mxu0 0.0
      %3697 = vmatprep.subr.mxu0 0.0
      %3698 = vmatpush1.msra.mxu0 0.0
      %3699 = vmatprep.subr.mxu0 0.0
      %3700 = vmatpush1.msra.mxu0 0.0
      %3701 = vmatprep.subr.mxu0 0.0
      %3702 = vmatpush1.msra.mxu0 0.0
      %3703 = vmatprep.subr.mxu0 0.0
      %3704 = vmatpush1.msra.mxu0 %v3668
      %3705 = vmatprep.subr.mxu0 0.0
      %3706 = vmatpush2.msra.mxu0 0.0
      %3707 = vmatprep.subr.mxu0 0.0
      %3708 = vmatpush2.msra.mxu0 0.0
      %3709 = vmatprep.subr.mxu0 0.0
      %3710 = vmatpush2.msra.mxu0 0.0
      %3711 = vmatprep.subr.mxu0 0.0
      %3712 = vmatpush2.msra.mxu0 0.0
      %3713 = vmatprep.subr.mxu0 0.0
      %3714 = vmatpush2.msra.mxu0 0.0
      %3715 = vmatprep.subr.mxu0 0.0
      %3716 = vmatpush2.msra.mxu0 0.0
      %3717 = vmatprep.subr.mxu0 0.0
      %3718 = vmatpush2.msra.mxu0 0.0
      %3719 = vmatprep.subr.mxu0 0.0
      %3720 = vmatpush2.msra.mxu0 0.0
      %3721 = vmatprep.subr.mxu0 0.0
      %3722 = vmatpush2.msra.mxu0 0.0
      %3723 = vmatprep.subr.mxu0 0.0
      %3724 = vmatpush2.msra.mxu0 0.0
      %3725 = vmatprep.subr.mxu0 0.0
      %3726 = vmatpush2.msra.mxu0 0.0
      %3727 = vmatprep.subr.mxu0 0.0
      %3728 = vmatpush2.msra.mxu0 0.0
      %3729 = vmatprep.subr.mxu0 0.0
      %3730 = vmatpush2.msra.mxu0 0.0
      %3731 = vmatprep.subr.mxu0 0.0
      %3732 = vmatpush2.msra.mxu0 0.0
      %3733 = vmatprep.subr.mxu0 0.0
      %3734 = vmatpush2.msra.mxu0 0.0
      %3735 = vmatprep.subr.mxu0 0.0
      %3736 = vmatpush2.msra.mxu0 0.0
      %3737 = vmatprep.mubr.f32.mxu0 0.0
      %3738 = vmatmul.mubr.f32.gmra.mxu0 %v3671
      %v3739 = vpop.f32.mrf.mxu0
      %v3740 = vadd.f32 0.0, %v3739
      %v3741 = vpop.f32.mrf.mxu0
      %3742 = vdwg.mxu0
      %3743 = vrot.lane.b32.xlu0 %v2629, 48
      %v3744 = vpop.permute.xlu0 %3743
      %v3747 = vsel %vm915, %v3664, 0
      %3749 = vmatprep.subr.mxu0 0.0
      %3750 = vmatpush1.msra.mxu0 0.0
      %3751 = vmatprep.subr.mxu0 0.0
      %3752 = vmatpush1.msra.mxu0 0.0
      %3753 = vmatprep.subr.mxu0 0.0
      %3754 = vmatpush1.msra.mxu0 0.0
      %3755 = vmatprep.subr.mxu0 0.0
      %3756 = vmatpush1.msra.mxu0 0.0
      %3757 = vmatprep.subr.mxu0 0.0
      %3758 = vmatpush1.msra.mxu0 0.0
      %3759 = vmatprep.subr.mxu0 0.0
      %3760 = vmatpush1.msra.mxu0 0.0
      %3761 = vmatprep.subr.mxu0 0.0
      %3762 = vmatpush1.msra.mxu0 0.0
      %3763 = vmatprep.subr.mxu0 0.0
      %3764 = vmatpush1.msra.mxu0 0.0
      %3765 = vmatprep.subr.mxu0 0.0
      %3766 = vmatpush1.msra.mxu0 0.0
      %3767 = vmatprep.subr.mxu0 0.0
      %3768 = vmatpush1.msra.mxu0 0.0
      %3769 = vmatprep.subr.mxu0 0.0
      %3770 = vmatpush1.msra.mxu0 0.0
      %3771 = vmatprep.subr.mxu0 0.0
      %3772 = vmatpush1.msra.mxu0 0.0
      %3773 = vmatprep.subr.mxu0 0.0
      %3774 = vmatpush1.msra.mxu0 0.0
      %3775 = vmatprep.subr.mxu0 0.0
      %3776 = vmatpush1.msra.mxu0 0.0
      %3777 = vmatprep.subr.mxu0 0.0
      %3778 = vmatpush1.msra.mxu0 0.0
      %3779 = vmatprep.subr.mxu0 0.0
      %3780 = vmatpush1.msra.mxu0 %v3744
      %3781 = vmatprep.subr.mxu0 0.0
      %3782 = vmatpush2.msra.mxu0 0.0
      %3783 = vmatprep.subr.mxu0 0.0
      %3784 = vmatpush2.msra.mxu0 0.0
      %3785 = vmatprep.subr.mxu0 0.0
      %3786 = vmatpush2.msra.mxu0 0.0
      %3787 = vmatprep.subr.mxu0 0.0
      %3788 = vmatpush2.msra.mxu0 0.0
      %3789 = vmatprep.subr.mxu0 0.0
      %3790 = vmatpush2.msra.mxu0 0.0
      %3791 = vmatprep.subr.mxu0 0.0
      %3792 = vmatpush2.msra.mxu0 0.0
      %3793 = vmatprep.subr.mxu0 0.0
      %3794 = vmatpush2.msra.mxu0 0.0
      %3795 = vmatprep.subr.mxu0 0.0
      %3796 = vmatpush2.msra.mxu0 0.0
      %3797 = vmatprep.subr.mxu0 0.0
      %3798 = vmatpush2.msra.mxu0 0.0
      %3799 = vmatprep.subr.mxu0 0.0
      %3800 = vmatpush2.msra.mxu0 0.0
      %3801 = vmatprep.subr.mxu0 0.0
      %3802 = vmatpush2.msra.mxu0 0.0
      %3803 = vmatprep.subr.mxu0 0.0
      %3804 = vmatpush2.msra.mxu0 0.0
      %3805 = vmatprep.subr.mxu0 0.0
      %3806 = vmatpush2.msra.mxu0 0.0
      %3807 = vmatprep.subr.mxu0 0.0
      %3808 = vmatpush2.msra.mxu0 0.0
      %3809 = vmatprep.subr.mxu0 0.0
      %3810 = vmatpush2.msra.mxu0 0.0
      %3811 = vmatprep.subr.mxu0 0.0
      %3812 = vmatpush2.msra.mxu0 0.0
      %3813 = vmatprep.mubr.f32.mxu0 0.0
      %3814 = vmatmul.mubr.f32.gmra.mxu0 %v3747
      %v3815 = vpop.f32.mrf.mxu0
      %v3816 = vadd.f32 0.0, %v3815
      %v3817 = vpop.f32.mrf.mxu0
      %3818 = vdwg.mxu0
      %3819 = vrot.lane.b32.xlu0 %v2634, 48
      %v3820 = vpop.permute.xlu0 %3819
      %v3823 = vsel %vm915, %v3665, 0
      %3825 = vmatprep.subr.mxu0 0.0
      %3826 = vmatpush1.msra.mxu0 0.0
      %3827 = vmatprep.subr.mxu0 0.0
      %3828 = vmatpush1.msra.mxu0 0.0
      %3829 = vmatprep.subr.mxu0 0.0
      %3830 = vmatpush1.msra.mxu0 0.0
      %3831 = vmatprep.subr.mxu0 0.0
      %3832 = vmatpush1.msra.mxu0 0.0
      %3833 = vmatprep.subr.mxu0 0.0
      %3834 = vmatpush1.msra.mxu0 0.0
      %3835 = vmatprep.subr.mxu0 0.0
      %3836 = vmatpush1.msra.mxu0 0.0
      %3837 = vmatprep.subr.mxu0 0.0
      %3838 = vmatpush1.msra.mxu0 0.0
      %3839 = vmatprep.subr.mxu0 0.0
      %3840 = vmatpush1.msra.mxu0 0.0
      %3841 = vmatprep.subr.mxu0 0.0
      %3842 = vmatpush1.msra.mxu0 0.0
      %3843 = vmatprep.subr.mxu0 0.0
      %3844 = vmatpush1.msra.mxu0 0.0
      %3845 = vmatprep.subr.mxu0 0.0
      %3846 = vmatpush1.msra.mxu0 0.0
      %3847 = vmatprep.subr.mxu0 0.0
      %3848 = vmatpush1.msra.mxu0 0.0
      %3849 = vmatprep.subr.mxu0 0.0
      %3850 = vmatpush1.msra.mxu0 0.0
      %3851 = vmatprep.subr.mxu0 0.0
      %3852 = vmatpush1.msra.mxu0 0.0
      %3853 = vmatprep.subr.mxu0 0.0
      %3854 = vmatpush1.msra.mxu0 0.0
      %3855 = vmatprep.subr.mxu0 0.0
      %3856 = vmatpush1.msra.mxu0 %v3820
      %3857 = vmatprep.subr.mxu0 0.0
      %3858 = vmatpush2.msra.mxu0 0.0
      %3859 = vmatprep.subr.mxu0 0.0
      %3860 = vmatpush2.msra.mxu0 0.0
      %3861 = vmatprep.subr.mxu0 0.0
      %3862 = vmatpush2.msra.mxu0 0.0
      %3863 = vmatprep.subr.mxu0 0.0
      %3864 = vmatpush2.msra.mxu0 0.0
      %3865 = vmatprep.subr.mxu0 0.0
      %3866 = vmatpush2.msra.mxu0 0.0
      %3867 = vmatprep.subr.mxu0 0.0
      %3868 = vmatpush2.msra.mxu0 0.0
      %3869 = vmatprep.subr.mxu0 0.0
      %3870 = vmatpush2.msra.mxu0 0.0
      %3871 = vmatprep.subr.mxu0 0.0
      %3872 = vmatpush2.msra.mxu0 0.0
      %3873 = vmatprep.subr.mxu0 0.0
      %3874 = vmatpush2.msra.mxu0 0.0
      %3875 = vmatprep.subr.mxu0 0.0
      %3876 = vmatpush2.msra.mxu0 0.0
      %3877 = vmatprep.subr.mxu0 0.0
      %3878 = vmatpush2.msra.mxu0 0.0
      %3879 = vmatprep.subr.mxu0 0.0
      %3880 = vmatpush2.msra.mxu0 0.0
      %3881 = vmatprep.subr.mxu0 0.0
      %3882 = vmatpush2.msra.mxu0 0.0
      %3883 = vmatprep.subr.mxu0 0.0
      %3884 = vmatpush2.msra.mxu0 0.0
      %3885 = vmatprep.subr.mxu0 0.0
      %3886 = vmatpush2.msra.mxu0 0.0
      %3887 = vmatprep.subr.mxu0 0.0
      %3888 = vmatpush2.msra.mxu0 0.0
      %3889 = vmatprep.mubr.f32.mxu0 0.0
      %3890 = vmatmul.mubr.f32.gmra.mxu0 %v3823
      %v3891 = vpop.f32.mrf.mxu0
      %v3892 = vadd.f32 0.0, %v3891
      %v3893 = vpop.f32.mrf.mxu0
      %3894 = vdwg.mxu0
      %3895 = vrot.lane.b32.xlu0 %v2639, 48
      %v3896 = vpop.permute.xlu0 %3895
      %v3899 = vsel %vm915, %v3666, 0
      %3901 = vmatprep.subr.mxu0 0.0
      %3902 = vmatpush1.msra.mxu0 0.0
      %3903 = vmatprep.subr.mxu0 0.0
      %3904 = vmatpush1.msra.mxu0 0.0
      %3905 = vmatprep.subr.mxu0 0.0
      %3906 = vmatpush1.msra.mxu0 0.0
      %3907 = vmatprep.subr.mxu0 0.0
      %3908 = vmatpush1.msra.mxu0 0.0
      %3909 = vmatprep.subr.mxu0 0.0
      %3910 = vmatpush1.msra.mxu0 0.0
      %3911 = vmatprep.subr.mxu0 0.0
      %3912 = vmatpush1.msra.mxu0 0.0
      %3913 = vmatprep.subr.mxu0 0.0
      %3914 = vmatpush1.msra.mxu0 0.0
      %3915 = vmatprep.subr.mxu0 0.0
      %3916 = vmatpush1.msra.mxu0 0.0
      %3917 = vmatprep.subr.mxu0 0.0
      %3918 = vmatpush1.msra.mxu0 0.0
      %3919 = vmatprep.subr.mxu0 0.0
      %3920 = vmatpush1.msra.mxu0 0.0
      %3921 = vmatprep.subr.mxu0 0.0
      %3922 = vmatpush1.msra.mxu0 0.0
      %3923 = vmatprep.subr.mxu0 0.0
      %3924 = vmatpush1.msra.mxu0 0.0
      %3925 = vmatprep.subr.mxu0 0.0
      %3926 = vmatpush1.msra.mxu0 0.0
      %3927 = vmatprep.subr.mxu0 0.0
      %3928 = vmatpush1.msra.mxu0 0.0
      %3929 = vmatprep.subr.mxu0 0.0
      %3930 = vmatpush1.msra.mxu0 0.0
      %3931 = vmatprep.subr.mxu0 0.0
      %3932 = vmatpush1.msra.mxu0 %v3896
      %3933 = vmatprep.subr.mxu0 0.0
      %3934 = vmatpush2.msra.mxu0 0.0
      %3935 = vmatprep.subr.mxu0 0.0
      %3936 = vmatpush2.msra.mxu0 0.0
      %3937 = vmatprep.subr.mxu0 0.0
      %3938 = vmatpush2.msra.mxu0 0.0
      %3939 = vmatprep.subr.mxu0 0.0
      %3940 = vmatpush2.msra.mxu0 0.0
      %3941 = vmatprep.subr.mxu0 0.0
      %3942 = vmatpush2.msra.mxu0 0.0
      %3943 = vmatprep.subr.mxu0 0.0
      %3944 = vmatpush2.msra.mxu0 0.0
      %3945 = vmatprep.subr.mxu0 0.0
      %3946 = vmatpush2.msra.mxu0 0.0
      %3947 = vmatprep.subr.mxu0 0.0
      %3948 = vmatpush2.msra.mxu0 0.0
      %3949 = vmatprep.subr.mxu0 0.0
      %3950 = vmatpush2.msra.mxu0 0.0
      %3951 = vmatprep.subr.mxu0 0.0
      %3952 = vmatpush2.msra.mxu0 0.0
      %3953 = vmatprep.subr.mxu0 0.0
      %3954 = vmatpush2.msra.mxu0 0.0
      %3955 = vmatprep.subr.mxu0 0.0
      %3956 = vmatpush2.msra.mxu0 0.0
      %3957 = vmatprep.subr.mxu0 0.0
      %3958 = vmatpush2.msra.mxu0 0.0
      %3959 = vmatprep.subr.mxu0 0.0
      %3960 = vmatpush2.msra.mxu0 0.0
      %3961 = vmatprep.subr.mxu0 0.0
      %3962 = vmatpush2.msra.mxu0 0.0
      %3963 = vmatprep.subr.mxu0 0.0
      %3964 = vmatpush2.msra.mxu0 0.0
      %3965 = vmatprep.mubr.f32.mxu0 0.0
      %3966 = vmatmul.mubr.f32.gmra.mxu0 %v3899
      %v3967 = vpop.f32.mrf.mxu0
      %v3968 = vadd.f32 0.0, %v3967
      %v3969 = vpop.f32.mrf.mxu0
      %3970 = vdwg.mxu0
      %v3972 = vsel %vm605, %v3740, 0
      %v3975 = vsel %vm605, %v3816, 0
      %v3978 = vsel %vm605, %v3892, 0
      %v3981 = vsel %vm605, %v3968, 0
      %3983 = vmatprep.subr.mxu0 0.0
      %3984 = vmatpush1.msra.mxu0 0.0
      %3985 = vmatprep.subr.mxu0 0.0
      %3986 = vmatpush1.msra.mxu0 0.0
      %3987 = vmatprep.subr.mxu0 0.0
      %3988 = vmatpush1.msra.mxu0 0.0
      %3989 = vmatprep.subr.mxu0 0.0
      %3990 = vmatpush1.msra.mxu0 0.0
      %3991 = vmatprep.subr.mxu0 0.0
      %3992 = vmatpush1.msra.mxu0 0.0
      %3993 = vmatprep.subr.mxu0 0.0
      %3994 = vmatpush1.msra.mxu0 0.0
      %3995 = vmatprep.subr.mxu0 0.0
      %3996 = vmatpush1.msra.mxu0 0.0
      %3997 = vmatprep.subr.mxu0 0.0
      %3998 = vmatpush1.msra.mxu0 0.0
      %3999 = vmatprep.subr.mxu0 0.0
      %4000 = vmatpush1.msra.mxu0 0.0
      %4001 = vmatprep.subr.mxu0 0.0
      %4002 = vmatpush1.msra.mxu0 0.0
      %4003 = vmatprep.subr.mxu0 0.0
      %4004 = vmatpush1.msra.mxu0 0.0
      %4005 = vmatprep.subr.mxu0 0.0
      %4006 = vmatpush1.msra.mxu0 0.0
      %4007 = vmatprep.subr.mxu0 0.0
      %4008 = vmatpush1.msra.mxu0 0.0
      %4009 = vmatprep.subr.mxu0 0.0
      %4010 = vmatpush1.msra.mxu0 0.0
      %4011 = vmatprep.subr.mxu0 0.0
      %4012 = vmatpush1.msra.mxu0 %v2646
      %4013 = vmatprep.subr.mxu0 0.0
      %4014 = vmatpush1.msra.mxu0 %v2645
      %4015 = vmatprep.subr.mxu0 0.0
      %4016 = vmatpush2.msra.mxu0 0.0
      %4017 = vmatprep.subr.mxu0 0.0
      %4018 = vmatpush2.msra.mxu0 0.0
      %4019 = vmatprep.subr.mxu0 0.0
      %4020 = vmatpush2.msra.mxu0 0.0
      %4021 = vmatprep.subr.mxu0 0.0
      %4022 = vmatpush2.msra.mxu0 0.0
      %4023 = vmatprep.subr.mxu0 0.0
      %4024 = vmatpush2.msra.mxu0 0.0
      %4025 = vmatprep.subr.mxu0 0.0
      %4026 = vmatpush2.msra.mxu0 0.0
      %4027 = vmatprep.subr.mxu0 0.0
      %4028 = vmatpush2.msra.mxu0 0.0
      %4029 = vmatprep.subr.mxu0 0.0
      %4030 = vmatpush2.msra.mxu0 0.0
      %4031 = vmatprep.subr.mxu0 0.0
      %4032 = vmatpush2.msra.mxu0 0.0
      %4033 = vmatprep.subr.mxu0 0.0
      %4034 = vmatpush2.msra.mxu0 0.0
      %4035 = vmatprep.subr.mxu0 0.0
      %4036 = vmatpush2.msra.mxu0 0.0
      %4037 = vmatprep.subr.mxu0 0.0
      %4038 = vmatpush2.msra.mxu0 0.0
      %4039 = vmatprep.subr.mxu0 0.0
      %4040 = vmatpush2.msra.mxu0 0.0
      %4041 = vmatprep.subr.mxu0 0.0
      %4042 = vmatpush2.msra.mxu0 0.0
      %4043 = vmatprep.subr.mxu0 0.0
      %4044 = vmatpush2.msra.mxu0 0.0
      %4045 = vmatprep.subr.mxu0 0.0
      %4046 = vmatpush2.msra.mxu0 0.0
      %4047 = vmatprep.mubr.f32.mxu0 0.0
      %4048 = vmatmul.mubr.f32.gmra.mxu0 %v3972
      %v4049 = vpop.f32.mrf.mxu0
      %v4050 = vadd.f32 0.0, %v4049
      %v4051 = vpop.f32.mrf.mxu0
      %4052 = vmatprep.mubr.f32.mxu0 0.0
      %4053 = vmatmul.mubr.f32.gmra.mxu0 %v3975
      %v4054 = vpop.f32.mrf.mxu0
      %v4055 = vadd.f32 0.0, %v4054
      %v4056 = vpop.f32.mrf.mxu0
      %4057 = vmatprep.mubr.f32.mxu0 0.0
      %4058 = vmatmul.mubr.f32.gmra.mxu0 %v3978
      %v4059 = vpop.f32.mrf.mxu0
      %v4060 = vadd.f32 0.0, %v4059
      %v4061 = vpop.f32.mrf.mxu0
      %4062 = vmatprep.mubr.f32.mxu0 0.0
      %4063 = vmatmul.mubr.f32.gmra.mxu0 %v3981
      %v4064 = vpop.f32.mrf.mxu0
      %v4065 = vadd.f32 0.0, %v4064
      %v4066 = vpop.f32.mrf.mxu0
      %4067 = vdwg.mxu0
      %v4069 = vsel %vm605, %v3076, 0
      %v4072 = vsel %vm605, %v3152, 0
      %v4075 = vsel %vm605, %v3228, 0
      %v4078 = vsel %vm605, %v3304, 0
      %4080 = vmatprep.subr.mxu0 0.0
      %4081 = vmatpush1.msra.mxu0 0.0
      %4082 = vmatprep.subr.mxu0 0.0
      %4083 = vmatpush1.msra.mxu0 0.0
      %4084 = vmatprep.subr.mxu0 0.0
      %4085 = vmatpush1.msra.mxu0 0.0
      %4086 = vmatprep.subr.mxu0 0.0
      %4087 = vmatpush1.msra.mxu0 0.0
      %4088 = vmatprep.subr.mxu0 0.0
      %4089 = vmatpush1.msra.mxu0 0.0
      %4090 = vmatprep.subr.mxu0 0.0
      %4091 = vmatpush1.msra.mxu0 0.0
      %4092 = vmatprep.subr.mxu0 0.0
      %4093 = vmatpush1.msra.mxu0 0.0
      %4094 = vmatprep.subr.mxu0 0.0
      %4095 = vmatpush1.msra.mxu0 0.0
      %4096 = vmatprep.subr.mxu0 0.0
      %4097 = vmatpush1.msra.mxu0 0.0
      %4098 = vmatprep.subr.mxu0 0.0
      %4099 = vmatpush1.msra.mxu0 0.0
      %4100 = vmatprep.subr.mxu0 0.0
      %4101 = vmatpush1.msra.mxu0 0.0
      %4102 = vmatprep.subr.mxu0 0.0
      %4103 = vmatpush1.msra.mxu0 0.0
      %4104 = vmatprep.subr.mxu0 0.0
      %4105 = vmatpush1.msra.mxu0 0.0
      %4106 = vmatprep.subr.mxu0 0.0
      %4107 = vmatpush1.msra.mxu0 0.0
      %4108 = vmatprep.subr.mxu0 0.0
      %4109 = vmatpush1.msra.mxu0 %v2644
      %4110 = vmatprep.subr.mxu0 0.0
      %4111 = vmatpush1.msra.mxu0 %v2643
      %4112 = vmatprep.subr.mxu0 0.0
      %4113 = vmatpush2.msra.mxu0 0.0
      %4114 = vmatprep.subr.mxu0 0.0
      %4115 = vmatpush2.msra.mxu0 0.0
      %4116 = vmatprep.subr.mxu0 0.0
      %4117 = vmatpush2.msra.mxu0 0.0
      %4118 = vmatprep.subr.mxu0 0.0
      %4119 = vmatpush2.msra.mxu0 0.0
      %4120 = vmatprep.subr.mxu0 0.0
      %4121 = vmatpush2.msra.mxu0 0.0
      %4122 = vmatprep.subr.mxu0 0.0
      %4123 = vmatpush2.msra.mxu0 0.0
      %4124 = vmatprep.subr.mxu0 0.0
      %4125 = vmatpush2.msra.mxu0 0.0
      %4126 = vmatprep.subr.mxu0 0.0
      %4127 = vmatpush2.msra.mxu0 0.0
      %4128 = vmatprep.subr.mxu0 0.0
      %4129 = vmatpush2.msra.mxu0 0.0
      %4130 = vmatprep.subr.mxu0 0.0
      %4131 = vmatpush2.msra.mxu0 0.0
      %4132 = vmatprep.subr.mxu0 0.0
      %4133 = vmatpush2.msra.mxu0 0.0
      %4134 = vmatprep.subr.mxu0 0.0
      %4135 = vmatpush2.msra.mxu0 0.0
      %4136 = vmatprep.subr.mxu0 0.0
      %4137 = vmatpush2.msra.mxu0 0.0
      %4138 = vmatprep.subr.mxu0 0.0
      %4139 = vmatpush2.msra.mxu0 0.0
      %4140 = vmatprep.subr.mxu0 0.0
      %4141 = vmatpush2.msra.mxu0 0.0
      %4142 = vmatprep.subr.mxu0 0.0
      %4143 = vmatpush2.msra.mxu0 0.0
      %4144 = vmatprep.mubr.f32.mxu0 0.0
      %4145 = vmatmul.mubr.f32.gmra.mxu0 %v4069
      %v4146 = vpop.f32.mrf.mxu0
      %v4147 = vadd.f32 %v4050, %v4146
      %v4148 = vpop.f32.mrf.mxu0
      %4149 = vmatprep.mubr.f32.mxu0 0.0
      %4150 = vmatmul.mubr.f32.gmra.mxu0 %v4072
      %v4151 = vpop.f32.mrf.mxu0
      %v4152 = vadd.f32 %v4055, %v4151
      %v4153 = vpop.f32.mrf.mxu0
      %4154 = vmatprep.mubr.f32.mxu0 0.0
      %4155 = vmatmul.mubr.f32.gmra.mxu0 %v4075
      %v4156 = vpop.f32.mrf.mxu0
      %v4157 = vadd.f32 %v4060, %v4156
      %v4158 = vpop.f32.mrf.mxu0
      %4159 = vmatprep.mubr.f32.mxu0 0.0
      %4160 = vmatmul.mubr.f32.gmra.mxu0 %v4078
      %v4161 = vpop.f32.mrf.mxu0
      %v4162 = vadd.f32 %v4065, %v4161
      %v4163 = vpop.f32.mrf.mxu0
      %4164 = vdwg.mxu0
      %s4165 = scalar_lea.vmem %s5, 1
      %v4166 = vld [vmem:[%s4165] sm:$0x1]
      %v4168 = vlaneseq
      %v4169 = vshrl.u32 %v4168, 7
      %v4170 = vsub.s32 0, %v4169
      %v4171 = vrot.slane %v4166, %v4170
      %v4173 = vadd.f32 %v4147, %v4171
      %v4174 = vadd.f32 %v4152, %v4171
      %v4175 = vadd.f32 %v4157, %v4171
      %v4176 = vadd.f32 %v4162, %v4171
      %v4177 = vadd.f32 %v4173, %v2460
      %v4178 = vadd.f32 %v4174, %v2461
      %v4179 = vadd.f32 %v4175, %v2462
      %v4180 = vadd.f32 %v4176, %v2463
      %s4181 = scalar_lea.vmem %s6, 1
      %v4182 = vld [vmem:[%s4181] sm:$0x1]
      %s4183 = scalar_lea.vmem %s7, 1
      %v4184 = vld [vmem:[%s4183] sm:$0x1]
      %v4185 = vsel %vm423, %v4177, 0.0
      %4186 = vadd.xlane.f32.xlu0 %v4185
      %v4187 = vpop.xlane.xlu0 %4186
      %v4188 = vsel %vm423, %v4178, 0.0
      %4189 = vadd.xlane.f32.xlu0 %v4188
      %v4190 = vpop.xlane.xlu0 %4189
      %v4191 = vsel %vm423, %v4179, 0.0
      %4192 = vadd.xlane.f32.xlu0 %v4191
      %v4193 = vpop.xlane.xlu0 %4192
      %v4194 = vsel %vm423, %v4180, 0.0
      %4195 = vadd.xlane.f32.xlu0 %v4194
      %v4196 = vpop.xlane.xlu0 %4195
      %v4197 = vmul.f32 %v4187, %v436
      %v4198 = vmul.f32 %v4190, %v436
      %v4199 = vmul.f32 %v4193, %v436
      %v4200 = vmul.f32 %v4196, %v436
      %v4201 = vsub.f32 %v4177, %v4197
      %v4202 = vsub.f32 %v4178, %v4198
      %v4203 = vsub.f32 %v4179, %v4199
      %v4204 = vsub.f32 %v4180, %v4200
      %v4205 = vmul.f32 %v4201, %v4201
      %v4206 = vmul.f32 %v4202, %v4202
      %v4207 = vmul.f32 %v4203, %v4203
      %v4208 = vmul.f32 %v4204, %v4204
      %v4209 = vsel %vm423, %v4205, 0.0
      %4210 = vadd.xlane.f32.xlu0 %v4209
      %v4211 = vpop.xlane.xlu0 %4210
      %v4212 = vsel %vm423, %v4206, 0.0
      %4213 = vadd.xlane.f32.xlu0 %v4212
      %v4214 = vpop.xlane.xlu0 %4213
      %v4215 = vsel %vm423, %v4207, 0.0
      %4216 = vadd.xlane.f32.xlu0 %v4215
      %v4217 = vpop.xlane.xlu0 %4216
      %v4218 = vsel %vm423, %v4208, 0.0
      %4219 = vadd.xlane.f32.xlu0 %v4218
      %v4220 = vpop.xlane.xlu0 %4219
      %v4221 = vmul.f32 %v4211, %v436
      %v4222 = vmul.f32 %v4214, %v436
      %v4223 = vmul.f32 %v4217, %v436
      %v4224 = vmul.f32 %v4220, %v436
      %v4225 = vadd.f32 %v4221, 1e-05
      %v4226 = vadd.f32 %v4222, 1e-05
      %v4227 = vadd.f32 %v4223, 1e-05
      %v4228 = vadd.f32 %v4224, 1e-05
      %v4229 = vrsqrt.pop %v4225
      %v4230 = vrsqrt.pop %v4226
      %v4231 = vrsqrt.pop %v4227
      %v4232 = vrsqrt.pop %v4228
      %v4233 = vmul.f32 %v4201, %v4229
      %v4234 = vmul.f32 %v4202, %v4230
      %v4235 = vmul.f32 %v4203, %v4231
      %v4236 = vmul.f32 %v4204, %v4232
      %v4238 = vlaneseq
      %v4239 = vshrl.u32 %v4238, 7
      %v4240 = vsub.s32 0, %v4239
      %v4241 = vrot.slane %v4182, %v4240
      %v4243 = vmul.f32 %v4233, %v4241
      %v4244 = vmul.f32 %v4234, %v4241
      %v4245 = vmul.f32 %v4235, %v4241
      %v4246 = vmul.f32 %v4236, %v4241
      %v4248 = vlaneseq
      %v4249 = vshrl.u32 %v4248, 7
      %v4250 = vsub.s32 0, %v4249
      %v4251 = vrot.slane %v4184, %v4250
      %v4253 = vadd.f32 %v4243, %v4251
      %v4254 = vadd.f32 %v4244, %v4251
      %v4255 = vadd.f32 %v4245, %v4251
      %v4256 = vadd.f32 %v4246, %v4251
      %s4257 = scalar_lea.vmem %s8, 32
      %v4258 = vld [vmem:[%s4257] sm:$0xff]
      %v4259 = vld [vmem:[%s4257 + $0x8] sm:$0xff]
      %v4260 = vld [vmem:[%s4257 + $0x10] sm:$0xff]
      %v4261 = vld [vmem:[%s4257 + $0x18] sm:$0xff]
      %s4262 = scalar_lea.vmem %s9, 1
      %v4263 = vld [vmem:[%s4262] sm:$0x1]
      %v4265 = vlaneseq
      %v4266 = vshrl.u32 %v4265, 7
      %v4267 = vsub.s32 0, %v4266
      %v4268 = vrot.slane %v4263, %v4267
      %v4271 = vsel %vm423, %v4253, 0
      %v4274 = vsel %vm423, %v4254, 0
      %v4277 = vsel %vm423, %v4255, 0
      %v4280 = vsel %vm423, %v4256, 0
      %4282 = vmatprep.subr.mxu0 0.0
      %4283 = vmatpush1.msra.mxu0 0.0
      %4284 = vmatprep.subr.mxu0 0.0
      %4285 = vmatpush1.msra.mxu0 0.0
      %4286 = vmatprep.subr.mxu0 0.0
      %4287 = vmatpush1.msra.mxu0 0.0
      %4288 = vmatprep.subr.mxu0 0.0
      %4289 = vmatpush1.msra.mxu0 0.0
      %4290 = vmatprep.subr.mxu0 0.0
      %4291 = vmatpush1.msra.mxu0 0.0
      %4292 = vmatprep.subr.mxu0 0.0
      %4293 = vmatpush1.msra.mxu0 0.0
      %4294 = vmatprep.subr.mxu0 0.0
      %4295 = vmatpush1.msra.mxu0 0.0
      %4296 = vmatprep.subr.mxu0 0.0
      %4297 = vmatpush1.msra.mxu0 0.0
      %4298 = vmatprep.subr.mxu0 0.0
      %4299 = vmatpush1.msra.mxu0 0.0
      %4300 = vmatprep.subr.mxu0 0.0
      %4301 = vmatpush1.msra.mxu0 0.0
      %4302 = vmatprep.subr.mxu0 0.0
      %4303 = vmatpush1.msra.mxu0 0.0
      %4304 = vmatprep.subr.mxu0 0.0
      %4305 = vmatpush1.msra.mxu0 0.0
      %4306 = vmatprep.subr.mxu0 0.0
      %4307 = vmatpush1.msra.mxu0 %v4261
      %4308 = vmatprep.subr.mxu0 0.0
      %4309 = vmatpush1.msra.mxu0 %v4260
      %4310 = vmatprep.subr.mxu0 0.0
      %4311 = vmatpush1.msra.mxu0 %v4259
      %4312 = vmatprep.subr.mxu0 0.0
      %4313 = vmatpush1.msra.mxu0 %v4258
      %4314 = vmatprep.subr.mxu0 0.0
      %4315 = vmatpush2.msra.mxu0 0.0
      %4316 = vmatprep.subr.mxu0 0.0
      %4317 = vmatpush2.msra.mxu0 0.0
      %4318 = vmatprep.subr.mxu0 0.0
      %4319 = vmatpush2.msra.mxu0 0.0
      %4320 = vmatprep.subr.mxu0 0.0
      %4321 = vmatpush2.msra.mxu0 0.0
      %4322 = vmatprep.subr.mxu0 0.0
      %4323 = vmatpush2.msra.mxu0 0.0
      %4324 = vmatprep.subr.mxu0 0.0
      %4325 = vmatpush2.msra.mxu0 0.0
      %4326 = vmatprep.subr.mxu0 0.0
      %4327 = vmatpush2.msra.mxu0 0.0
      %4328 = vmatprep.subr.mxu0 0.0
      %4329 = vmatpush2.msra.mxu0 0.0
      %4330 = vmatprep.subr.mxu0 0.0
      %4331 = vmatpush2.msra.mxu0 0.0
      %4332 = vmatprep.subr.mxu0 0.0
      %4333 = vmatpush2.msra.mxu0 0.0
      %4334 = vmatprep.subr.mxu0 0.0
      %4335 = vmatpush2.msra.mxu0 0.0
      %4336 = vmatprep.subr.mxu0 0.0
      %4337 = vmatpush2.msra.mxu0 0.0
      %4338 = vmatprep.subr.mxu0 0.0
      %4339 = vmatpush2.msra.mxu0 0.0
      %4340 = vmatprep.subr.mxu0 0.0
      %4341 = vmatpush2.msra.mxu0 0.0
      %4342 = vmatprep.subr.mxu0 0.0
      %4343 = vmatpush2.msra.mxu0 0.0
      %4344 = vmatprep.subr.mxu0 0.0
      %4345 = vmatpush2.msra.mxu0 0.0
      %4346 = vmatprep.mubr.f32.mxu0 0.0
      %4347 = vmatmul.mubr.f32.gmra.mxu0 %v4271
      %v4348 = vpop.f32.mrf.mxu0
      %v4349 = vadd.f32 %v4268, %v4348
      %v4350 = vpop.f32.mrf.mxu0
      %4351 = vmatprep.mubr.f32.mxu0 0.0
      %4352 = vmatmul.mubr.f32.gmra.mxu0 %v4274
      %v4353 = vpop.f32.mrf.mxu0
      %v4354 = vadd.f32 %v4268, %v4353
      %v4355 = vpop.f32.mrf.mxu0
      %4356 = vmatprep.mubr.f32.mxu0 0.0
      %4357 = vmatmul.mubr.f32.gmra.mxu0 %v4277
      %v4358 = vpop.f32.mrf.mxu0
      %v4359 = vadd.f32 %v4268, %v4358
      %v4360 = vpop.f32.mrf.mxu0
      %4361 = vmatprep.mubr.f32.mxu0 0.0
      %4362 = vmatmul.mubr.f32.gmra.mxu0 %v4280
      %v4363 = vpop.f32.mrf.mxu0
      %v4364 = vadd.f32 %v4268, %v4363
      %v4365 = vpop.f32.mrf.mxu0
      %4366 = vdwg.mxu0
      %v4367 = vxor.u32 %v4349, 2147483648
      %v4368 = vxor.u32 %v4354, 2147483648
      %v4369 = vxor.u32 %v4359, 2147483648
      %v4370 = vxor.u32 %v4364, 2147483648
      %v4371 = vmul.f32 %v4367, 1.442695
      %v4372 = vpow.pop %v4371
      %v4373 = vmul.f32 %v4368, 1.442695
      %v4374 = vpow.pop %v4373
      %v4375 = vmul.f32 %v4369, 1.442695
      %v4376 = vpow.pop %v4375
      %v4377 = vmul.f32 %v4370, 1.442695
      %v4378 = vpow.pop %v4377
      %v4379 = vadd.f32 %v4372, 1.0
      %v4380 = vadd.f32 %v4374, 1.0
      %v4381 = vadd.f32 %v4376, 1.0
      %v4382 = vadd.f32 %v4378, 1.0
      %v4383 = vrcp.pop %v4379
      %v4384 = vmul.f32 1.0, %v4383
      %v4385 = vrcp.pop %v4380
      %v4386 = vmul.f32 1.0, %v4385
      %v4387 = vrcp.pop %v4381
      %v4388 = vmul.f32 1.0, %v4387
      %v4389 = vrcp.pop %v4382
      %v4390 = vmul.f32 1.0, %v4389
      %v4391 = vmul.f32 %v4349, %v4384
      %v4392 = vmul.f32 %v4354, %v4386
      %v4393 = vmul.f32 %v4359, %v4388
      %v4394 = vmul.f32 %v4364, %v4390
      %s4395 = scalar_lea.vmem %s10, 64
      %v4396 = vld [vmem:[%s4395] sm:$0xff]
      %v4397 = vld [vmem:[%s4395 + $0x8] sm:$0xff]
      %v4398 = vld [vmem:[%s4395 + $0x10] sm:$0xff]
      %v4399 = vld [vmem:[%s4395 + $0x18] sm:$0xff]
      %v4400 = vld [vmem:[%s4395 + $0x20] sm:$0xff]
      %v4401 = vld [vmem:[%s4395 + $0x28] sm:$0xff]
      %v4402 = vld [vmem:[%s4395 + $0x30] sm:$0xff]
      %v4403 = vld [vmem:[%s4395 + $0x38] sm:$0xff]
      %s4404 = scalar_lea.vmem %s11, 1
      %v4405 = vld [vmem:[%s4404] sm:$0x1]
      %v4407 = vlaneseq
      %v4408 = vshrl.u32 %v4407, 7
      %v4409 = vsub.s32 0, %v4408
      %v4410 = vrot.slane %v4405, %v4409
      %v4413 = vsel %vm2362, %v4391, 0
      %v4416 = vsel %vm2362, %v4392, 0
      %v4419 = vsel %vm2362, %v4393, 0
      %v4422 = vsel %vm2362, %v4394, 0
      %4424 = vmatprep.subr.mxu0 0.0
      %4425 = vmatpush1.msra.mxu0 0.0
      %4426 = vmatprep.subr.mxu0 0.0
      %4427 = vmatpush1.msra.mxu0 0.0
      %4428 = vmatprep.subr.mxu0 0.0
      %4429 = vmatpush1.msra.mxu0 0.0
      %4430 = vmatprep.subr.mxu0 0.0
      %4431 = vmatpush1.msra.mxu0 0.0
      %4432 = vmatprep.subr.mxu0 0.0
      %4433 = vmatpush1.msra.mxu0 0.0
      %4434 = vmatprep.subr.mxu0 0.0
      %4435 = vmatpush1.msra.mxu0 0.0
      %4436 = vmatprep.subr.mxu0 0.0
      %4437 = vmatpush1.msra.mxu0 0.0
      %4438 = vmatprep.subr.mxu0 0.0
      %4439 = vmatpush1.msra.mxu0 0.0
      %4440 = vmatprep.subr.mxu0 0.0
      %4441 = vmatpush1.msra.mxu0 %v4403
      %4442 = vmatprep.subr.mxu0 0.0
      %4443 = vmatpush1.msra.mxu0 %v4402
      %4444 = vmatprep.subr.mxu0 0.0
      %4445 = vmatpush1.msra.mxu0 %v4401
      %4446 = vmatprep.subr.mxu0 0.0
      %4447 = vmatpush1.msra.mxu0 %v4400
      %4448 = vmatprep.subr.mxu0 0.0
      %4449 = vmatpush1.msra.mxu0 %v4399
      %4450 = vmatprep.subr.mxu0 0.0
      %4451 = vmatpush1.msra.mxu0 %v4398
      %4452 = vmatprep.subr.mxu0 0.0
      %4453 = vmatpush1.msra.mxu0 %v4397
      %4454 = vmatprep.subr.mxu0 0.0
      %4455 = vmatpush1.msra.mxu0 %v4396
      %4456 = vmatprep.subr.mxu0 0.0
      %4457 = vmatpush2.msra.mxu0 0.0
      %4458 = vmatprep.subr.mxu0 0.0
      %4459 = vmatpush2.msra.mxu0 0.0
      %4460 = vmatprep.subr.mxu0 0.0
      %4461 = vmatpush2.msra.mxu0 0.0
      %4462 = vmatprep.subr.mxu0 0.0
      %4463 = vmatpush2.msra.mxu0 0.0
      %4464 = vmatprep.subr.mxu0 0.0
      %4465 = vmatpush2.msra.mxu0 0.0
      %4466 = vmatprep.subr.mxu0 0.0
      %4467 = vmatpush2.msra.mxu0 0.0
      %4468 = vmatprep.subr.mxu0 0.0
      %4469 = vmatpush2.msra.mxu0 0.0
      %4470 = vmatprep.subr.mxu0 0.0
      %4471 = vmatpush2.msra.mxu0 0.0
      %4472 = vmatprep.subr.mxu0 0.0
      %4473 = vmatpush2.msra.mxu0 0.0
      %4474 = vmatprep.subr.mxu0 0.0
      %4475 = vmatpush2.msra.mxu0 0.0
      %4476 = vmatprep.subr.mxu0 0.0
      %4477 = vmatpush2.msra.mxu0 0.0
      %4478 = vmatprep.subr.mxu0 0.0
      %4479 = vmatpush2.msra.mxu0 0.0
      %4480 = vmatprep.subr.mxu0 0.0
      %4481 = vmatpush2.msra.mxu0 0.0
      %4482 = vmatprep.subr.mxu0 0.0
      %4483 = vmatpush2.msra.mxu0 0.0
      %4484 = vmatprep.subr.mxu0 0.0
      %4485 = vmatpush2.msra.mxu0 0.0
      %4486 = vmatprep.subr.mxu0 0.0
      %4487 = vmatpush2.msra.mxu0 0.0
      %4488 = vmatprep.mubr.f32.mxu0 0.0
      %4489 = vmatmul.mubr.f32.gmra.mxu0 %v4413
      %v4490 = vpop.f32.mrf.mxu0
      %v4491 = vadd.f32 %v4410, %v4490
      %v4492 = vpop.f32.mrf.mxu0
      %4493 = vmatprep.mubr.f32.mxu0 0.0
      %4494 = vmatmul.mubr.f32.gmra.mxu0 %v4416
      %v4495 = vpop.f32.mrf.mxu0
      %v4496 = vadd.f32 %v4410, %v4495
      %v4497 = vpop.f32.mrf.mxu0
      %4498 = vmatprep.mubr.f32.mxu0 0.0
      %4499 = vmatmul.mubr.f32.gmra.mxu0 %v4419
      %v4500 = vpop.f32.mrf.mxu0
      %v4501 = vadd.f32 %v4410, %v4500
      %v4502 = vpop.f32.mrf.mxu0
      %4503 = vmatprep.mubr.f32.mxu0 0.0
      %4504 = vmatmul.mubr.f32.gmra.mxu0 %v4422
      %v4505 = vpop.f32.mrf.mxu0
      %v4506 = vadd.f32 %v4410, %v4505
      %v4507 = vpop.f32.mrf.mxu0
      %4508 = vdwg.mxu0
      %v4509 = vadd.f32 %v4491, %v4177
      %v4510 = vadd.f32 %v4496, %v4178
      %v4511 = vadd.f32 %v4501, %v4179
      %v4512 = vadd.f32 %v4506, %v4180
      %4513 = vst.msk [vmem:[%s415] sm:$0xff] %vm423, %v4509
      %4514 = vst.msk [vmem:[%s415 + $0x8] sm:$0xff] %vm423, %v4510
      %4515 = vst.msk [vmem:[%s415 + $0x10] sm:$0xff] %vm423, %v4511
      %4516 = vst.msk [vmem:[%s415 + $0x18] sm:$0xff] %vm423, %v4512
      %s4517 = smul.u32 4, %s23
      %p4518 = scmp.lt.s32.totalorder %s4517, 7
      %s4519 = scalar_select %p4518, %s4517, 7
      %s4520 = smul.addr %s4519, 8
      %s4521 = scalar_lea.vmem %s12, %s4520
      // Predicated region
      $region69: #{tpu_custom_call.1} parent=67 // pred_check
        %p4522 = pneg %p298
      $region70: #{tpu_custom_call.1} parent=67 // pred_check_branch
        %4524 = sbr.rel (%p4522) target = $region72
      $region71: #{tpu_custom_call.1} parent=67 // pred_region
        %s4525 = smul.u32 4, %s23
      $region72: #{tpu_custom_call.1} parent=67 // pred_fallthru
        _
    $region68: #{tpu_custom_call.1} parent=5 // pred_fallthru
      _
    %p4526 = scmp.le.s32.totalorder 2, %s18
    // Predicated region
    $region73: #{tpu_custom_call.1} parent=5 // pred_check
      %p4527 = pneg %p4526
    $region74: #{tpu_custom_call.1} parent=5 // pred_check_branch
      %4529 = sbr.rel (%p4527) target = $region76
    $region75: #{tpu_custom_call.1} parent=5 // pred_region
      %s4530 = ssub.s32 %s18, 2
      // Predicated region
      $region77: #{tpu_custom_call.1} parent=75 // pred_check
        %p4531 = pneg %p304
      $region78: #{tpu_custom_call.1} parent=75 // pred_check_branch
        %4533 = sbr.rel (%p4531) target = $region80
      $region79: #{tpu_custom_call.1} parent=75 // pred_region
        %s4534 = smul.u32 4, %s24
        %p4535 = scmp.lt.s32.totalorder %s4534, 7
        %s4536 = scalar_select %p4535, %s4534, 7
        %s4537 = smul.addr %s4536, 8
        %s4538 = scalar_lea.vmem %s12, %s4537
      $region80: #{tpu_custom_call.1} parent=75 // pred_fallthru
        _
    $region76: #{tpu_custom_call.1} parent=5 // pred_fallthru
      _
  $region6: #{tpu_custom_call.1} parent=0 // loop_footer
    %s22 = sadd.s32 1, %s18
  $region7: #{tpu_custom_call.1} parent=0 // loop_footer_branch
    %17 = sbr.rel target = $region3
  $region8: #{tpu_custom_call.1} parent=0 // loop_exit
    _

</llo_original>
